<compile_context>
chip_gen: v7x
topology: tpu7x:2x2x1
jax: 0.10.0
libtpu: 0.0.40
codegen_flags: <defaults>
</compile_context>

<pallas_src>
import functools

import numpy as np
import jax
import jax.numpy as jnp
from jax.experimental import pallas as pl
from jax.experimental.pallas import tpu as pltpu

EPS = 1e-5  # BatchNorm eps


# ---------------------------------------------------------------------------
# in-kernel helpers (traced inside Pallas kernel bodies; all shapes static)
# ---------------------------------------------------------------------------
def _zero_pad_lanes(x, pad_l, pad_r):
    parts = []
    if pad_l:
        parts.append(jnp.zeros((x.shape[0], pad_l), x.dtype))
    parts.append(x)
    if pad_r:
        parts.append(jnp.zeros((x.shape[0], pad_r), x.dtype))
    return jnp.concatenate(parts, axis=1) if len(parts) > 1 else x


def _conv1d_same_full(x, w2d, bias, *, ksize, stride):
    """'SAME'-padded conv evaluated at every unit-stride position.

    x: (Cin, Lin); w2d: (Cout, K*Cin), columns ordered tap-major
    (col = j*Cin + ci); bias: (Cout, 1).
    Returns y1: (Cout, L1) with L1 = Lin + p - K + 1.  The stride-s output is
    y1[:, ::s]; the caller selects it with a constant selection matmul.
    """
    cin, lin = x.shape
    lout = -(-lin // stride)
    p = max(0, (lout - 1) * stride + ksize - lin)
    xp = _zero_pad_lanes(x, p // 2, p - p // 2)
    l1 = lin + p - ksize + 1
    cols = [jax.lax.slice_in_dim(xp, j, j + l1, axis=1) for j in range(ksize)]
    im2col = jnp.concatenate(cols, axis=0)                     # (K*Cin, L1)
    return jnp.dot(w2d, im2col, preferred_element_type=jnp.float32) + bias


def _maxpool1d_same(x, pool_sel_ref, *, ks):
    """MyMaxPool1dPadSame: zero pad (stride=1 SAME formula), then
    MaxPool1d(kernel=ks, stride=ks).  Window extraction is done with constant
    0/1 selection matmuls (pool_sel_ref: (ks, Lp, Lpool))."""
    p = ks - 1
    xp = _zero_pad_lanes(x, p // 2, p - p // 2)
    out = None
    for t in range(ks):
        v = jnp.dot(xp, pool_sel_ref[t], preferred_element_type=jnp.float32)
        out = v if out is None else jnp.maximum(out, v)
    return out


# ---------------------------------------------------------------------------
# kernel factories (static config closed over)
# ---------------------------------------------------------------------------
def _make_stem_kernel(ksize):
    def kernel(x_ref, w_ref, b_ref, o_ref):
        # first_block_bn is folded into w/b host-side.
        y = _conv1d_same_full(x_ref[0], w_ref[...], b_ref[...],
                              ksize=ksize, stride=1)
        o_ref[0] = jnp.maximum(y, 0.0)
    return kernel


def _make_block_kernel(*, is_first, downsample, use_bn, ksize, stride,
                       cin, cout):
    def kernel(*refs):
        i = 0
        x_ref = refs[i]; i += 1
        if (not is_first) and use_bn:
            bn1_s = refs[i]; bn1_b = refs[i + 1]; i += 2
        w1 = refs[i]; b1 = refs[i + 1]; w2 = refs[i + 2]; b2 = refs[i + 3]
        i += 4
        if downsample:
            csel = refs[i]; psel = refs[i + 1]; i += 2
        o_ref = refs[i]

        x = x_ref[0]                                   # (Cin, Lin) f32
        out = x
        if not is_first:
            if use_bn:
                out = out * bn1_s[...] + bn1_b[...]    # eval-mode BN1
            out = jnp.maximum(out, 0.0)                # ReLU1
            # Dropout(p=0.5): eval-mode identity.

        # conv1 (+ folded BN2); strided output picked with a selection matmul.
        y = _conv1d_same_full(out, w1[...], b1[...], ksize=ksize, stride=stride)
        if downsample:
            y = jnp.dot(y, csel[...], preferred_element_type=jnp.float32)
        y = jnp.maximum(y, 0.0)                        # ReLU2 (Dropout = id)
        z = _conv1d_same_full(y, w2[...], b2[...], ksize=ksize, stride=1)

        # identity / shortcut path
        ident = x
        if downsample:
            ident = _maxpool1d_same(ident, psel, ks=stride)
        if cout != cin:
            ch1 = (cout - cin) // 2
            ch2 = cout - cin - ch1
            parts = []
            if ch1:
                parts.append(jnp.zeros((ch1, ident.shape[1]), ident.dtype))
            parts.append(ident)
            if ch2:
                parts.append(jnp.zeros((ch2, ident.shape[1]), ident.dtype))
            ident = jnp.concatenate(parts, axis=0)

        o_ref[0] = z + ident
    return kernel


def _make_head_kernel(n_len):
    inv_len = 1.0 / float(n_len)

    def kernel(x_ref, s_ref, b_ref, wd_ref, bd_ref, cls_ref, feat_ref):
        x = x_ref[0]                                            # (C, L)
        x = jnp.maximum(x * s_ref[...] + b_ref[...], 0.0)       # final_bn + relu
        feat = jnp.sum(x, axis=1, keepdims=True) * inv_len      # (C, 1) mean(-1)
        cls = jnp.dot(wd_ref[...], feat,
                      preferred_element_type=jnp.float32) + bd_ref[...]
        feat_ref[0] = feat
        cls_ref[0] = cls
    return kernel


# ---------------------------------------------------------------------------
# BlockSpec helpers
# ---------------------------------------------------------------------------
_PARALLEL = pltpu.CompilerParams(dimension_semantics=("parallel",))


def _batched_spec(shape):   # (B, d1, d2) arrays, block = one sample
    return pl.BlockSpec((1,) + tuple(shape[1:]), lambda b: (b, 0, 0))


def _resident_spec(arr):    # full array, constant index map -> stays in VMEM
    if arr.ndim == 2:
        return pl.BlockSpec(arr.shape, lambda b: (0, 0))
    if arr.ndim == 3:
        return pl.BlockSpec(arr.shape, lambda b: (0, 0, 0))
    raise ValueError("unsupported weight rank")


# ---------------------------------------------------------------------------
# parameter / config construction (deterministic)
# ---------------------------------------------------------------------------
def _conv_init(key, cout, cin, k):
    k1, k2 = jax.random.split(key)
    bound = 1.0 / float(np.sqrt(cin * k))
    w = jax.random.uniform(k1, (cout, cin, k), jnp.float32, -bound, bound)
    b = jax.random.uniform(k2, (cout,), jnp.float32, -bound, bound)
    return w, b


def _linear_init(key, cout, cin):
    k1, k2 = jax.random.split(key)
    bound = 1.0 / float(np.sqrt(cin))
    w = jax.random.uniform(k1, (cout, cin), jnp.float32, -bound, bound)
    b = jax.random.uniform(k2, (cout,), jnp.float32, -bound, bound)
    return w, b


def _fold_bn_into_conv(w, b, cout):
    """Fold an eval-mode BatchNorm (init stats: mean=0, var=1, g=1, beta=0)
    that directly follows the conv into (w, b)."""
    scale = jnp.full((cout,), 1.0 / np.sqrt(1.0 + EPS), jnp.float32)
    shift = jnp.zeros((cout,), jnp.float32)
    return w * scale[:, None, None], b * scale + shift


def _pack_w(w):   # (Cout, Cin, K) -> (Cout, K*Cin), tap-major columns
    cout, cin, k = w.shape
    return jnp.transpose(w, (0, 2, 1)).reshape(cout, k * cin)


def _conv_subsample_sel(l1, lout, stride):
    s = np.zeros((l1, lout), np.float32)
    for l in range(lout):
        s[stride * l, l] = 1.0
    return jnp.asarray(s)


def _pool_sel(lin, ks):
    lp = lin + ks - 1
    lpool = -(-lin // ks)
    s = np.zeros((ks, lp, lpool), np.float32)
    for t in range(ks):
        for l in range(lpool):
            s[t, ks * l + t, l] = 1.0
    return jnp.asarray(s)


def make_resnet1d(key, *, in_channels, base_filters, kernel_size, stride,
                  n_block, n_classes, seq_len, downsample_gap=2,
                  increasefilter_gap=4, use_bn=True):
    keys = jax.random.split(key, 2 * n_block + 4)
    ki = iter(keys)

    params = {}
    blocks_cfg = []

    # ---- stem: first_block_conv (+ folded first_block_bn) + ReLU ----
    w, b = _conv_init(next(ki), base_filters, in_channels, kernel_size)
    if use_bn:
        w, b = _fold_bn_into_conv(w, b, base_filters)
    params["stem_w"] = _pack_w(w)
    params["stem_b"] = b.reshape(base_filters, 1)

    cur_len = seq_len
    out_channels = base_filters
    for i_block in range(n_block):
        is_first = (i_block == 0)
        downsample = (i_block % downsample_gap == 1)
        if is_first:
            cin = base_filters
            cout = cin
        else:
            cin = int(base_filters * 2 ** ((i_block - 1) // increasefilter_gap))
            if i_block % increasefilter_gap == 0 and i_block != 0:
                cout = cin * 2
            else:
                cout = cin
        eff_stride = stride if downsample else 1
        lin = cur_len
        lmid = -(-lin // eff_stride)

        bp = {}
        if (not is_first) and use_bn:
            bp["bn1_s"] = jnp.full((cin, 1), 1.0 / np.sqrt(1.0 + EPS),
                                   jnp.float32)
            bp["bn1_b"] = jnp.zeros((cin, 1), jnp.float32)

        w1, b1 = _conv_init(next(ki), cout, cin, kernel_size)
        if use_bn:                       # fold bn2 (post-conv1) into conv1
            w1, b1 = _fold_bn_into_conv(w1, b1, cout)
        w2, b2 = _conv_init(next(ki), cout, cout, kernel_size)
        bp["w1"] = _pack_w(w1)
        bp["b1"] = b1.reshape(cout, 1)
        bp["w2"] = _pack_w(w2)
        bp["b2"] = b2.reshape(cout, 1)

        if downsample:
            p = max(0, (lmid - 1) * eff_stride + kernel_size - lin)
            l1 = lin + p - kernel_size + 1
            bp["csel"] = _conv_subsample_sel(l1, lmid, eff_stride)
            bp["psel"] = _pool_sel(lin, eff_stride)

        params[f"block{i_block}"] = bp
        blocks_cfg.append(dict(is_first=is_first, downsample=downsample,
                               cin=cin, cout=cout, eff_stride=eff_stride,
                               lin=lin, lmid=lmid))
        cur_len = lmid
        out_channels = cout

    # ---- head: final_bn + ReLU + mean + dense ----
    params["head_bn_s"] = jnp.full((out_channels, 1), 1.0 / np.sqrt(1.0 + EPS),
                                   jnp.float32)
    params["head_bn_b"] = jnp.zeros((out_channels, 1), jnp.float32)
    wd, bd = _linear_init(next(ki), n_classes, out_channels)
    params["dense_w"] = wd
    params["dense_b"] = bd.reshape(n_classes, 1)

    cfg = dict(base_filters=base_filters, kernel_size=kernel_size,
               n_classes=n_classes, seq_len=seq_len, use_bn=use_bn,
               blocks=blocks_cfg, out_channels=out_channels,
               final_len=cur_len)
    return params, cfg


# ---------------------------------------------------------------------------
# forward pass (one fused pallas_call per stage, grid over batch)
# ---------------------------------------------------------------------------
def resnet1d_forward(x, params, cfg):
    """x: (B, L, C_in) float32 -- ResNet1D.forward transposes to (B, C_in, L).
    Returns (out_class, out) = ((B, n_classes), (B, out_channels))."""
    ks = cfg["kernel_size"]
    bsz = x.shape[0]
    x = jnp.transpose(x, (0, 2, 1))                 # (B, C_in, L)

    # ---- stem ----
    bf, lin = cfg["base_filters"], cfg["seq_len"]
    out = pl.pallas_call(
        _make_stem_kernel(ks),
        grid=(bsz,),
        out_shape=jax.ShapeDtypeStruct((bsz, bf, lin), jnp.float32),
        in_specs=[_batched_spec(x.shape),
                  _resident_spec(params["stem_w"]),
                  _resident_spec(params["stem_b"])],
        out_specs=_batched_spec((bsz, bf, lin)),
        compiler_params=_PARALLEL,
    )(x, params["stem_w"], params["stem_b"])

    # ---- basic blocks (one fused kernel per block) ----
    for i_block, bc in enumerate(cfg["blocks"]):
        bp = params[f"block{i_block}"]
        kernel = _make_block_kernel(
            is_first=bc["is_first"], downsample=bc["downsample"],
            use_bn=cfg["use_bn"], ksize=ks, stride=bc["eff_stride"],
            cin=bc["cin"], cout=bc["cout"])
        args = [out]
        if (not bc["is_first"]) and cfg["use_bn"]:
            args += [bp["bn1_s"], bp["bn1_b"]]
        args += [bp["w1"], bp["b1"], bp["w2"], bp["b2"]]
        if bc["downsample"]:
            args += [bp["csel"], bp["psel"]]
        in_specs = ([_batched_spec(out.shape)]
                    + [_resident_spec(a) for a in args[1:]])
        out = pl.pallas_call(
            kernel,
            grid=(bsz,),
            out_shape=jax.ShapeDtypeStruct((bsz, bc["cout"], bc["lmid"]),
                                           jnp.float32),
            in_specs=in_specs,
            out_specs=_batched_spec((bsz, bc["cout"], bc["lmid"])),
            compiler_params=_PARALLEL,
        )(*args)

    # ---- head ----
    cch, flen, ncls = cfg["out_channels"], cfg["final_len"], cfg["n_classes"]
    cls, feat = pl.pallas_call(
        _make_head_kernel(flen),
        grid=(bsz,),
        out_shape=(jax.ShapeDtypeStruct((bsz, ncls, 1), jnp.float32),
                   jax.ShapeDtypeStruct((bsz, cch, 1), jnp.float32)),
        in_specs=[_batched_spec(out.shape),
                  _resident_spec(params["head_bn_s"]),
                  _resident_spec(params["head_bn_b"]),
                  _resident_spec(params["dense_w"]),
                  _resident_spec(params["dense_b"])],
        out_specs=(_batched_spec((bsz, ncls, 1)),
                   _batched_spec((bsz, cch, 1))),
        compiler_params=_PARALLEL,
    )(out, params["head_bn_s"], params["head_bn_b"],
      params["dense_w"], params["dense_b"])

    return cls[:, :, 0], feat[:, :, 0]


# ---------------------------------------------------------------------------
if __name__ == "__main__":
    B, L, C_IN = 2, 16, 4
    BASE_FILTERS, KSIZE, STRIDE = 8, 3, 2
    N_BLOCK, N_CLASSES = 5, 5      # block 4 doubles channels (8 -> 16)

    key = jax.random.PRNGKey(0)
    k_x, k_p = jax.random.split(key)
    x = jax.random.normal(k_x, (B, L, C_IN), jnp.float32)
    params, cfg = make_resnet1d(
        k_p, in_channels=C_IN, base_filters=BASE_FILTERS, kernel_size=KSIZE,
        stride=STRIDE, n_block=N_BLOCK, n_classes=N_CLASSES, seq_len=L)

    fwd = jax.jit(functools.partial(resnet1d_forward, cfg=cfg))
    out_class, out_feat = fwd(x, params)
    jax.block_until_ready((out_class, out_feat))

    assert out_class.shape == (B, N_CLASSES)
    assert out_feat.shape == (B, cfg["out_channels"])
    assert bool(jnp.isfinite(out_class).all())
    assert bool(jnp.isfinite(out_feat).all())
    print("KERNEL_OK")
</pallas_src>

<mosaic_0001>
module attributes {stable_mosaic.version = 11 : i64} {
  func.func @kernel(%arg0: i32, %arg1: memref<1x4x16xf32, #tpu.memory_space<vmem>>, %arg2: memref<8x12xf32, #tpu.memory_space<vmem>>, %arg3: memref<8x1xf32, #tpu.memory_space<vmem>>, %arg4: memref<1x8x16xf32, #tpu.memory_space<vmem>>) attributes {dimension_semantics = [#tpu.dimension_semantics<parallel>], iteration_bounds = array<i64: 2>, scalar_prefetch = 0 : i64, scratch_operands = 0 : i64, tpu.core_type = #tpu.core_type<tc>, window_params = [{transform_indices = @transform_0, window_bounds = array<i64: 1, 4, 16>}, {pipeline_mode = #tpu.pipeline_mode<synchronous>, transform_indices = @transform_1, window_bounds = array<i64: 8, 12>}, {pipeline_mode = #tpu.pipeline_mode<synchronous>, transform_indices = @transform_2, window_bounds = array<i64: 8, 1>}, {transform_indices = @transform_3, window_bounds = array<i64: 1, 8, 16>}]} {
    %c0 = arith.constant 0 : index
    %c0_0 = arith.constant 0 : index
    %c0_1 = arith.constant 0 : index
    %0 = vector.load %arg1[%c0, %c0_0, %c0_1] : memref<1x4x16xf32, #tpu.memory_space<vmem>>, vector<1x4x16xf32>
    %1 = vector.shape_cast %0 : vector<1x4x16xf32> to vector<4x16xf32>
    %c0_2 = arith.constant 0 : index
    %c0_3 = arith.constant 0 : index
    %2 = vector.load %arg2[%c0_2, %c0_3] : memref<8x12xf32, #tpu.memory_space<vmem>>, vector<8x12xf32>
    %c0_4 = arith.constant 0 : index
    %c0_5 = arith.constant 0 : index
    %3 = vector.load %arg3[%c0_4, %c0_5] : memref<8x1xf32, #tpu.memory_space<vmem>>, vector<8x1xf32>
    %cst = arith.constant 0.000000e+00 : f32
    %4 = vector.broadcast %cst : f32 to vector<4x1xf32>
    %cst_6 = arith.constant 0.000000e+00 : f32
    %5 = vector.broadcast %cst_6 : f32 to vector<4x1xf32>
    %6 = tpu.concatenate %4, %1, %5 in 1 : vector<4x1xf32>, vector<4x16xf32>, vector<4x1xf32> -> vector<4x18xf32>
    %7 = vector.extract_strided_slice %6 {offsets = [0, 0], sizes = [4, 16], strides = [1, 1]} : vector<4x18xf32> to vector<4x16xf32>
    %8 = vector.extract_strided_slice %6 {offsets = [0, 1], sizes = [4, 16], strides = [1, 1]} : vector<4x18xf32> to vector<4x16xf32>
    %9 = vector.extract_strided_slice %6 {offsets = [0, 2], sizes = [4, 16], strides = [1, 1]} : vector<4x18xf32> to vector<4x16xf32>
    %10 = tpu.concatenate %7, %8, %9 in 0 : vector<4x16xf32>, vector<4x16xf32>, vector<4x16xf32> -> vector<12x16xf32>
    %cst_7 = arith.constant dense<0.000000e+00> : vector<8x16xf32>
    %11 = tpu.matmul %2, %10, %cst_7 {dimension_numbers = #tpu.dot_dimension_numbers<[1], [0], [0], [1], [0, 0, 1, 1], [], []>} : vector<8x12xf32>, vector<12x16xf32>, vector<8x16xf32> -> vector<8x16xf32>
    %12 = vector.broadcast %3 : vector<8x1xf32> to vector<8x16xf32>
    %13 = arith.addf %11, %12 : vector<8x16xf32>
    %cst_8 = arith.constant 0.000000e+00 : f32
    %14 = vector.broadcast %cst_8 : f32 to vector<8x16xf32>
    %15 = arith.maximumf %13, %14 : vector<8x16xf32>
    %c0_9 = arith.constant 0 : index
    %c0_10 = arith.constant 0 : index
    %c0_11 = arith.constant 0 : index
    %16 = vector.load %arg4[%c0_9, %c0_10, %c0_11] : memref<1x8x16xf32, #tpu.memory_space<vmem>>, vector<1x8x16xf32>
    %17 = vector.shape_cast %16 : vector<1x8x16xf32> to vector<8x16xf32>
    %18 = vector.shape_cast %15 : vector<8x16xf32> to vector<1x8x16xf32>
    tpu.vector_store %arg4[%c0_9, %c0_10, %c0_11], %18 {strides = array<i32>} : memref<1x8x16xf32, #tpu.memory_space<vmem>>, vector<1x8x16xf32>,
    return
  }
  func.func @transform_0(%arg0: i32) -> (i32, i32, i32) {
    %c0_i32 = arith.constant 0 : i32
    %c0_i32_0 = arith.constant 0 : i32
    %c0_i32_1 = arith.constant 0 : i32
    return %arg0, %c0_i32, %c0_i32_0 : i32, i32, i32
  }
  func.func @transform_1(%arg0: i32) -> (i32, i32) {
    %c0_i32 = arith.constant 0 : i32
    %c0_i32_0 = arith.constant 0 : i32
    %c0_i32_1 = arith.constant 0 : i32
    return %c0_i32, %c0_i32_0 : i32, i32
  }
  func.func @transform_2(%arg0: i32) -> (i32, i32) {
    %c0_i32 = arith.constant 0 : i32
    %c0_i32_0 = arith.constant 0 : i32
    %c0_i32_1 = arith.constant 0 : i32
    return %c0_i32, %c0_i32_0 : i32, i32
  }
  func.func @transform_3(%arg0: i32) -> (i32, i32, i32) {
    %c0_i32 = arith.constant 0 : i32
    %c0_i32_0 = arith.constant 0 : i32
    %c0_i32_1 = arith.constant 0 : i32
    return %arg0, %c0_i32, %c0_i32_0 : i32, i32, i32
  }
}

module attributes {stable_mosaic.version = 11 : i64} {
  func.func @kernel(%arg0: i32, %arg1: memref<1x8x16xf32, #tpu.memory_space<vmem>>, %arg2: memref<8x24xf32, #tpu.memory_space<vmem>>, %arg3: memref<8x1xf32, #tpu.memory_space<vmem>>, %arg4: memref<8x24xf32, #tpu.memory_space<vmem>>, %arg5: memref<8x1xf32, #tpu.memory_space<vmem>>, %arg6: memref<1x8x16xf32, #tpu.memory_space<vmem>>) attributes {dimension_semantics = [#tpu.dimension_semantics<parallel>], iteration_bounds = array<i64: 2>, scalar_prefetch = 0 : i64, scratch_operands = 0 : i64, tpu.core_type = #tpu.core_type<tc>, window_params = [{transform_indices = @transform_0, window_bounds = array<i64: 1, 8, 16>}, {pipeline_mode = #tpu.pipeline_mode<synchronous>, transform_indices = @transform_1, window_bounds = array<i64: 8, 24>}, {pipeline_mode = #tpu.pipeline_mode<synchronous>, transform_indices = @transform_2, window_bounds = array<i64: 8, 1>}, {pipeline_mode = #tpu.pipeline_mode<synchronous>, transform_indices = @transform_3, window_bounds = array<i64: 8, 24>}, {pipeline_mode = #tpu.pipeline_mode<synchronous>, transform_indices = @transform_4, window_bounds = array<i64: 8, 1>}, {transform_indices = @transform_5, window_bounds = array<i64: 1, 8, 16>}]} {
    %c0 = arith.constant 0 : index
    %c0_0 = arith.constant 0 : index
    %c0_1 = arith.constant 0 : index
    %0 = vector.load %arg1[%c0, %c0_0, %c0_1] : memref<1x8x16xf32, #tpu.memory_space<vmem>>, vector<1x8x16xf32>
    %1 = vector.shape_cast %0 : vector<1x8x16xf32> to vector<8x16xf32>
    %c0_2 = arith.constant 0 : index
    %c0_3 = arith.constant 0 : index
    %2 = vector.load %arg2[%c0_2, %c0_3] : memref<8x24xf32, #tpu.memory_space<vmem>>, vector<8x24xf32>
    %c0_4 = arith.constant 0 : index
    %c0_5 = arith.constant 0 : index
    %3 = vector.load %arg3[%c0_4, %c0_5] : memref<8x1xf32, #tpu.memory_space<vmem>>, vector<8x1xf32>
    %cst = arith.constant 0.000000e+00 : f32
    %4 = vector.broadcast %cst : f32 to vector<8x1xf32>
    %cst_6 = arith.constant 0.000000e+00 : f32
    %5 = vector.broadcast %cst_6 : f32 to vector<8x1xf32>
    %6 = tpu.concatenate %4, %1, %5 in 1 : vector<8x1xf32>, vector<8x16xf32>, vector<8x1xf32> -> vector<8x18xf32>
    %7 = vector.extract_strided_slice %6 {offsets = [0, 0], sizes = [8, 16], strides = [1, 1]} : vector<8x18xf32> to vector<8x16xf32>
    %8 = vector.extract_strided_slice %6 {offsets = [0, 1], sizes = [8, 16], strides = [1, 1]} : vector<8x18xf32> to vector<8x16xf32>
    %9 = vector.extract_strided_slice %6 {offsets = [0, 2], sizes = [8, 16], strides = [1, 1]} : vector<8x18xf32> to vector<8x16xf32>
    %10 = tpu.concatenate %7, %8, %9 in 0 : vector<8x16xf32>, vector<8x16xf32>, vector<8x16xf32> -> vector<24x16xf32>
    %cst_7 = arith.constant dense<0.000000e+00> : vector<8x16xf32>
    %11 = tpu.matmul %2, %10, %cst_7 {dimension_numbers = #tpu.dot_dimension_numbers<[1], [0], [0], [1], [0, 0, 1, 1], [], []>} : vector<8x24xf32>, vector<24x16xf32>, vector<8x16xf32> -> vector<8x16xf32>
    %12 = vector.broadcast %3 : vector<8x1xf32> to vector<8x16xf32>
    %13 = arith.addf %11, %12 : vector<8x16xf32>
    %cst_8 = arith.constant 0.000000e+00 : f32
    %14 = vector.broadcast %cst_8 : f32 to vector<8x16xf32>
    %15 = arith.maximumf %13, %14 : vector<8x16xf32>
    %c0_9 = arith.constant 0 : index
    %c0_10 = arith.constant 0 : index
    %16 = vector.load %arg4[%c0_9, %c0_10] : memref<8x24xf32, #tpu.memory_space<vmem>>, vector<8x24xf32>
    %c0_11 = arith.constant 0 : index
    %c0_12 = arith.constant 0 : index
    %17 = vector.load %arg5[%c0_11, %c0_12] : memref<8x1xf32, #tpu.memory_space<vmem>>, vector<8x1xf32>
    %cst_13 = arith.constant 0.000000e+00 : f32
    %18 = vector.broadcast %cst_13 : f32 to vector<8x1xf32>
    %cst_14 = arith.constant 0.000000e+00 : f32
    %19 = vector.broadcast %cst_14 : f32 to vector<8x1xf32>
    %20 = tpu.concatenate %18, %15, %19 in 1 : vector<8x1xf32>, vector<8x16xf32>, vector<8x1xf32> -> vector<8x18xf32>
    %21 = vector.extract_strided_slice %20 {offsets = [0, 0], sizes = [8, 16], strides = [1, 1]} : vector<8x18xf32> to vector<8x16xf32>
    %22 = vector.extract_strided_slice %20 {offsets = [0, 1], sizes = [8, 16], strides = [1, 1]} : vector<8x18xf32> to vector<8x16xf32>
    %23 = vector.extract_strided_slice %20 {offsets = [0, 2], sizes = [8, 16], strides = [1, 1]} : vector<8x18xf32> to vector<8x16xf32>
    %24 = tpu.concatenate %21, %22, %23 in 0 : vector<8x16xf32>, vector<8x16xf32>, vector<8x16xf32> -> vector<24x16xf32>
    %cst_15 = arith.constant dense<0.000000e+00> : vector<8x16xf32>
    %25 = tpu.matmul %16, %24, %cst_15 {dimension_numbers = #tpu.dot_dimension_numbers<[1], [0], [0], [1], [0, 0, 1, 1], [], []>} : vector<8x24xf32>, vector<24x16xf32>, vector<8x16xf32> -> vector<8x16xf32>
    %26 = vector.broadcast %17 : vector<8x1xf32> to vector<8x16xf32>
    %27 = arith.addf %25, %26 : vector<8x16xf32>
    %28 = arith.addf %27, %1 : vector<8x16xf32>
    %c0_16 = arith.constant 0 : index
    %c0_17 = arith.constant 0 : index
    %c0_18 = arith.constant 0 : index
    %29 = vector.load %arg6[%c0_16, %c0_17, %c0_18] : memref<1x8x16xf32, #tpu.memory_space<vmem>>, vector<1x8x16xf32>
    %30 = vector.shape_cast %29 : vector<1x8x16xf32> to vector<8x16xf32>
    %31 = vector.shape_cast %28 : vector<8x16xf32> to vector<1x8x16xf32>
    tpu.vector_store %arg6[%c0_16, %c0_17, %c0_18], %31 {strides = array<i32>} : memref<1x8x16xf32, #tpu.memory_space<vmem>>, vector<1x8x16xf32>,
    return
  }
  func.func @transform_0(%arg0: i32) -> (i32, i32, i32) {
    %c0_i32 = arith.constant 0 : i32
    %c0_i32_0 = arith.constant 0 : i32
    %c0_i32_1 = arith.constant 0 : i32
    return %arg0, %c0_i32, %c0_i32_0 : i32, i32, i32
  }
  func.func @transform_1(%arg0: i32) -> (i32, i32) {
    %c0_i32 = arith.constant 0 : i32
    %c0_i32_0 = arith.constant 0 : i32
    %c0_i32_1 = arith.constant 0 : i32
    return %c0_i32, %c0_i32_0 : i32, i32
  }
  func.func @transform_2(%arg0: i32) -> (i32, i32) {
    %c0_i32 = arith.constant 0 : i32
    %c0_i32_0 = arith.constant 0 : i32
    %c0_i32_1 = arith.constant 0 : i32
    return %c0_i32, %c0_i32_0 : i32, i32
  }
  func.func @transform_3(%arg0: i32) -> (i32, i32) {
    %c0_i32 = arith.constant 0 : i32
    %c0_i32_0 = arith.constant 0 : i32
    %c0_i32_1 = arith.constant 0 : i32
    return %c0_i32, %c0_i32_0 : i32, i32
  }
  func.func @transform_4(%arg0: i32) -> (i32, i32) {
    %c0_i32 = arith.constant 0 : i32
    %c0_i32_0 = arith.constant 0 : i32
    %c0_i32_1 = arith.constant 0 : i32
    return %c0_i32, %c0_i32_0 : i32, i32
  }
  func.func @transform_5(%arg0: i32) -> (i32, i32, i32) {
    %c0_i32 = arith.constant 0 : i32
    %c0_i32_0 = arith.constant 0 : i32
    %c0_i32_1 = arith.constant 0 : i32
    return %arg0, %c0_i32, %c0_i32_0 : i32, i32, i32
  }
}

module attributes {stable_mosaic.version = 11 : i64} {
  func.func @kernel(%arg0: i32, %arg1: memref<1x8x16xf32, #tpu.memory_space<vmem>>, %arg2: memref<8x1xf32, #tpu.memory_space<vmem>>, %arg3: memref<8x1xf32, #tpu.memory_space<vmem>>, %arg4: memref<8x24xf32, #tpu.memory_space<vmem>>, %arg5: memref<8x1xf32, #tpu.memory_space<vmem>>, %arg6: memref<8x24xf32, #tpu.memory_space<vmem>>, %arg7: memref<8x1xf32, #tpu.memory_space<vmem>>, %arg8: memref<15x8xf32, #tpu.memory_space<vmem>>, %arg9: memref<2x17x8xf32, #tpu.memory_space<vmem>>, %arg10: memref<1x8x8xf32, #tpu.memory_space<vmem>>) attributes {dimension_semantics = [#tpu.dimension_semantics<parallel>], iteration_bounds = array<i64: 2>, scalar_prefetch = 0 : i64, scratch_operands = 0 : i64, tpu.core_type = #tpu.core_type<tc>, window_params = [{transform_indices = @transform_0, window_bounds = array<i64: 1, 8, 16>}, {pipeline_mode = #tpu.pipeline_mode<synchronous>, transform_indices = @transform_1, window_bounds = array<i64: 8, 1>}, {pipeline_mode = #tpu.pipeline_mode<synchronous>, transform_indices = @transform_2, window_bounds = array<i64: 8, 1>}, {pipeline_mode = #tpu.pipeline_mode<synchronous>, transform_indices = @transform_3, window_bounds = array<i64: 8, 24>}, {pipeline_mode = #tpu.pipeline_mode<synchronous>, transform_indices = @transform_4, window_bounds = array<i64: 8, 1>}, {pipeline_mode = #tpu.pipeline_mode<synchronous>, transform_indices = @transform_5, window_bounds = array<i64: 8, 24>}, {pipeline_mode = #tpu.pipeline_mode<synchronous>, transform_indices = @transform_6, window_bounds = array<i64: 8, 1>}, {pipeline_mode = #tpu.pipeline_mode<synchronous>, transform_indices = @transform_7, window_bounds = array<i64: 15, 8>}, {pipeline_mode = #tpu.pipeline_mode<synchronous>, transform_indices = @transform_8, window_bounds = array<i64: 2, 17, 8>}, {transform_indices = @transform_9, window_bounds = array<i64: 1, 8, 8>}]} {
    %c0 = arith.constant 0 : index
    %c0_0 = arith.constant 0 : index
    %c0_1 = arith.constant 0 : index
    %0 = vector.load %arg1[%c0, %c0_0, %c0_1] : memref<1x8x16xf32, #tpu.memory_space<vmem>>, vector<1x8x16xf32>
    %1 = vector.shape_cast %0 : vector<1x8x16xf32> to vector<8x16xf32>
    %c0_2 = arith.constant 0 : index
    %c0_3 = arith.constant 0 : index
    %2 = vector.load %arg2[%c0_2, %c0_3] : memref<8x1xf32, #tpu.memory_space<vmem>>, vector<8x1xf32>
    %3 = vector.broadcast %2 : vector<8x1xf32> to vector<8x16xf32>
    %4 = arith.mulf %1, %3 : vector<8x16xf32>
    %c0_4 = arith.constant 0 : index
    %c0_5 = arith.constant 0 : index
    %5 = vector.load %arg3[%c0_4, %c0_5] : memref<8x1xf32, #tpu.memory_space<vmem>>, vector<8x1xf32>
    %6 = vector.broadcast %5 : vector<8x1xf32> to vector<8x16xf32>
    %7 = arith.addf %4, %6 : vector<8x16xf32>
    %cst = arith.constant 0.000000e+00 : f32
    %8 = vector.broadcast %cst : f32 to vector<8x16xf32>
    %9 = arith.maximumf %7, %8 : vector<8x16xf32>
    %c0_6 = arith.constant 0 : index
    %c0_7 = arith.constant 0 : index
    %10 = vector.load %arg4[%c0_6, %c0_7] : memref<8x24xf32, #tpu.memory_space<vmem>>, vector<8x24xf32>
    %c0_8 = arith.constant 0 : index
    %c0_9 = arith.constant 0 : index
    %11 = vector.load %arg5[%c0_8, %c0_9] : memref<8x1xf32, #tpu.memory_space<vmem>>, vector<8x1xf32>
    %cst_10 = arith.constant 0.000000e+00 : f32
    %12 = vector.broadcast %cst_10 : f32 to vector<8x1xf32>
    %13 = tpu.concatenate %9, %12 in 1 : vector<8x16xf32>, vector<8x1xf32> -> vector<8x17xf32>
    %14 = vector.extract_strided_slice %13 {offsets = [0, 0], sizes = [8, 15], strides = [1, 1]} : vector<8x17xf32> to vector<8x15xf32>
    %15 = vector.extract_strided_slice %13 {offsets = [0, 1], sizes = [8, 15], strides = [1, 1]} : vector<8x17xf32> to vector<8x15xf32>
    %16 = vector.extract_strided_slice %13 {offsets = [0, 2], sizes = [8, 15], strides = [1, 1]} : vector<8x17xf32> to vector<8x15xf32>
    %17 = tpu.concatenate %14, %15, %16 in 0 : vector<8x15xf32>, vector<8x15xf32>, vector<8x15xf32> -> vector<24x15xf32>
    %cst_11 = arith.constant dense<0.000000e+00> : vector<8x15xf32>
    %18 = tpu.matmul %10, %17, %cst_11 {dimension_numbers = #tpu.dot_dimension_numbers<[1], [0], [0], [1], [0, 0, 1, 1], [], []>} : vector<8x24xf32>, vector<24x15xf32>, vector<8x15xf32> -> vector<8x15xf32>
    %19 = vector.broadcast %11 : vector<8x1xf32> to vector<8x15xf32>
    %20 = arith.addf %18, %19 : vector<8x15xf32>
    %c0_12 = arith.constant 0 : index
    %c0_13 = arith.constant 0 : index
    %21 = vector.load %arg8[%c0_12, %c0_13] : memref<15x8xf32, #tpu.memory_space<vmem>>, vector<15x8xf32>
    %cst_14 = arith.constant dense<0.000000e+00> : vector<8x8xf32>
    %22 = tpu.matmul %20, %21, %cst_14 {dimension_numbers = #tpu.dot_dimension_numbers<[1], [0], [0], [1], [0, 0, 1, 1], [], []>} : vector<8x15xf32>, vector<15x8xf32>, vector<8x8xf32> -> vector<8x8xf32>
    %cst_15 = arith.constant 0.000000e+00 : f32
    %23 = vector.broadcast %cst_15 : f32 to vector<8x8xf32>
    %24 = arith.maximumf %22, %23 : vector<8x8xf32>
    %c0_16 = arith.constant 0 : index
    %c0_17 = arith.constant 0 : index
    %25 = vector.load %arg6[%c0_16, %c0_17] : memref<8x24xf32, #tpu.memory_space<vmem>>, vector<8x24xf32>
    %c0_18 = arith.constant 0 : index
    %c0_19 = arith.constant 0 : index
    %26 = vector.load %arg7[%c0_18, %c0_19] : memref<8x1xf32, #tpu.memory_space<vmem>>, vector<8x1xf32>
    %cst_20 = arith.constant 0.000000e+00 : f32
    %27 = vector.broadcast %cst_20 : f32 to vector<8x1xf32>
    %cst_21 = arith.constant 0.000000e+00 : f32
    %28 = vector.broadcast %cst_21 : f32 to vector<8x1xf32>
    %29 = tpu.concatenate %27, %24, %28 in 1 : vector<8x1xf32>, vector<8x8xf32>, vector<8x1xf32> -> vector<8x10xf32>
    %30 = vector.extract_strided_slice %29 {offsets = [0, 0], sizes = [8, 8], strides = [1, 1]} : vector<8x10xf32> to vector<8x8xf32>
    %31 = vector.extract_strided_slice %29 {offsets = [0, 1], sizes = [8, 8], strides = [1, 1]} : vector<8x10xf32> to vector<8x8xf32>
    %32 = vector.extract_strided_slice %29 {offsets = [0, 2], sizes = [8, 8], strides = [1, 1]} : vector<8x10xf32> to vector<8x8xf32>
    %33 = tpu.concatenate %30, %31, %32 in 0 : vector<8x8xf32>, vector<8x8xf32>, vector<8x8xf32> -> vector<24x8xf32>
    %cst_22 = arith.constant dense<0.000000e+00> : vector<8x8xf32>
    %34 = tpu.matmul %25, %33, %cst_22 {dimension_numbers = #tpu.dot_dimension_numbers<[1], [0], [0], [1], [0, 0, 1, 1], [], []>} : vector<8x24xf32>, vector<24x8xf32>, vector<8x8xf32> -> vector<8x8xf32>
    %35 = vector.broadcast %26 : vector<8x1xf32> to vector<8x8xf32>
    %36 = arith.addf %34, %35 : vector<8x8xf32>
    %cst_23 = arith.constant 0.000000e+00 : f32
    %37 = vector.broadcast %cst_23 : f32 to vector<8x1xf32>
    %38 = tpu.concatenate %1, %37 in 1 : vector<8x16xf32>, vector<8x1xf32> -> vector<8x17xf32>
    %c0_24 = arith.constant 0 : index
    %c0_25 = arith.constant 0 : index
    %c0_26 = arith.constant 0 : index
    %39 = vector.load %arg9[%c0_24, %c0_25, %c0_26] : memref<2x17x8xf32, #tpu.memory_space<vmem>>, vector<1x17x8xf32>
    %40 = vector.shape_cast %39 : vector<1x17x8xf32> to vector<17x8xf32>
    %cst_27 = arith.constant dense<0.000000e+00> : vector<8x8xf32>
    %41 = tpu.matmul %38, %40, %cst_27 {dimension_numbers = #tpu.dot_dimension_numbers<[1], [0], [0], [1], [0, 0, 1, 1], [], []>} : vector<8x17xf32>, vector<17x8xf32>, vector<8x8xf32> -> vector<8x8xf32>
    %c1 = arith.constant 1 : index
    %c0_28 = arith.constant 0 : index
    %c0_29 = arith.constant 0 : index
    %42 = vector.load %arg9[%c1, %c0_28, %c0_29] : memref<2x17x8xf32, #tpu.memory_space<vmem>>, vector<1x17x8xf32>
    %43 = vector.shape_cast %42 : vector<1x17x8xf32> to vector<17x8xf32>
    %cst_30 = arith.constant dense<0.000000e+00> : vector<8x8xf32>
    %44 = tpu.matmul %38, %43, %cst_30 {dimension_numbers = #tpu.dot_dimension_numbers<[1], [0], [0], [1], [0, 0, 1, 1], [], []>} : vector<8x17xf32>, vector<17x8xf32>, vector<8x8xf32> -> vector<8x8xf32>
    %45 = arith.maximumf %41, %44 : vector<8x8xf32>
    %46 = arith.addf %36, %45 : vector<8x8xf32>
    %c0_31 = arith.constant 0 : index
    %c0_32 = arith.constant 0 : index
    %c0_33 = arith.constant 0 : index
    %47 = vector.load %arg10[%c0_31, %c0_32, %c0_33] : memref<1x8x8xf32, #tpu.memory_space<vmem>>, vector<1x8x8xf32>
    %48 = vector.shape_cast %47 : vector<1x8x8xf32> to vector<8x8xf32>
    %49 = vector.shape_cast %46 : vector<8x8xf32> to vector<1x8x8xf32>
    tpu.vector_store %arg10[%c0_31, %c0_32, %c0_33], %49 {strides = array<i32>} : memref<1x8x8xf32, #tpu.memory_space<vmem>>, vector<1x8x8xf32>,
    return
  }
  func.func @transform_0(%arg0: i32) -> (i32, i32, i32) {
    %c0_i32 = arith.constant 0 : i32
    %c0_i32_0 = arith.constant 0 : i32
    %c0_i32_1 = arith.constant 0 : i32
    return %arg0, %c0_i32, %c0_i32_0 : i32, i32, i32
  }
  func.func @transform_1(%arg0: i32) -> (i32, i32) {
    %c0_i32 = arith.constant 0 : i32
    %c0_i32_0 = arith.constant 0 : i32
    %c0_i32_1 = arith.constant 0 : i32
    return %c0_i32, %c0_i32_0 : i32, i32
  }
  func.func @transform_2(%arg0: i32) -> (i32, i32) {
    %c0_i32 = arith.constant 0 : i32
    %c0_i32_0 = arith.constant 0 : i32
    %c0_i32_1 = arith.constant 0 : i32
    return %c0_i32, %c0_i32_0 : i32, i32
  }
  func.func @transform_3(%arg0: i32) -> (i32, i32) {
    %c0_i32 = arith.constant 0 : i32
    %c0_i32_0 = arith.constant 0 : i32
    %c0_i32_1 = arith.constant 0 : i32
    return %c0_i32, %c0_i32_0 : i32, i32
  }
  func.func @transform_4(%arg0: i32) -> (i32, i32) {
    %c0_i32 = arith.constant 0 : i32
    %c0_i32_0 = arith.constant 0 : i32
    %c0_i32_1 = arith.constant 0 : i32
    return %c0_i32, %c0_i32_0 : i32, i32
  }
  func.func @transform_5(%arg0: i32) -> (i32, i32) {
    %c0_i32 = arith.constant 0 : i32
    %c0_i32_0 = arith.constant 0 : i32
    %c0_i32_1 = arith.constant 0 : i32
    return %c0_i32, %c0_i32_0 : i32, i32
  }
  func.func @transform_6(%arg0: i32) -> (i32, i32) {
    %c0_i32 = arith.constant 0 : i32
    %c0_i32_0 = arith.constant 0 : i32
    %c0_i32_1 = arith.constant 0 : i32
    return %c0_i32, %c0_i32_0 : i32, i32
  }
  func.func @transform_7(%arg0: i32) -> (i32, i32) {
    %c0_i32 = arith.constant 0 : i32
    %c0_i32_0 = arith.constant 0 : i32
    %c0_i32_1 = arith.constant 0 : i32
    return %c0_i32, %c0_i32_0 : i32, i32
  }
  func.func @transform_8(%arg0: i32) -> (i32, i32, i32) {
    %c0_i32 = arith.constant 0 : i32
    %c0_i32_0 = arith.constant 0 : i32
    %c0_i32_1 = arith.constant 0 : i32
    %c0_i32_2 = arith.constant 0 : i32
    return %c0_i32, %c0_i32_0, %c0_i32_1 : i32, i32, i32
  }
  func.func @transform_9(%arg0: i32) -> (i32, i32, i32) {
    %c0_i32 = arith.constant 0 : i32
    %c0_i32_0 = arith.constant 0 : i32
    %c0_i32_1 = arith.constant 0 : i32
    return %arg0, %c0_i32, %c0_i32_0 : i32, i32, i32
  }
}

module attributes {stable_mosaic.version = 11 : i64} {
  func.func @kernel(%arg0: i32, %arg1: memref<1x8x8xf32, #tpu.memory_space<vmem>>, %arg2: memref<8x1xf32, #tpu.memory_space<vmem>>, %arg3: memref<8x1xf32, #tpu.memory_space<vmem>>, %arg4: memref<8x24xf32, #tpu.memory_space<vmem>>, %arg5: memref<8x1xf32, #tpu.memory_space<vmem>>, %arg6: memref<8x24xf32, #tpu.memory_space<vmem>>, %arg7: memref<8x1xf32, #tpu.memory_space<vmem>>, %arg8: memref<1x8x8xf32, #tpu.memory_space<vmem>>) attributes {dimension_semantics = [#tpu.dimension_semantics<parallel>], iteration_bounds = array<i64: 2>, scalar_prefetch = 0 : i64, scratch_operands = 0 : i64, tpu.core_type = #tpu.core_type<tc>, window_params = [{transform_indices = @transform_0, window_bounds = array<i64: 1, 8, 8>}, {pipeline_mode = #tpu.pipeline_mode<synchronous>, transform_indices = @transform_1, window_bounds = array<i64: 8, 1>}, {pipeline_mode = #tpu.pipeline_mode<synchronous>, transform_indices = @transform_2, window_bounds = array<i64: 8, 1>}, {pipeline_mode = #tpu.pipeline_mode<synchronous>, transform_indices = @transform_3, window_bounds = array<i64: 8, 24>}, {pipeline_mode = #tpu.pipeline_mode<synchronous>, transform_indices = @transform_4, window_bounds = array<i64: 8, 1>}, {pipeline_mode = #tpu.pipeline_mode<synchronous>, transform_indices = @transform_5, window_bounds = array<i64: 8, 24>}, {pipeline_mode = #tpu.pipeline_mode<synchronous>, transform_indices = @transform_6, window_bounds = array<i64: 8, 1>}, {transform_indices = @transform_7, window_bounds = array<i64: 1, 8, 8>}]} {
    %c0 = arith.constant 0 : index
    %c0_0 = arith.constant 0 : index
    %c0_1 = arith.constant 0 : index
    %0 = vector.load %arg1[%c0, %c0_0, %c0_1] : memref<1x8x8xf32, #tpu.memory_space<vmem>>, vector<1x8x8xf32>
    %1 = vector.shape_cast %0 : vector<1x8x8xf32> to vector<8x8xf32>
    %c0_2 = arith.constant 0 : index
    %c0_3 = arith.constant 0 : index
    %2 = vector.load %arg2[%c0_2, %c0_3] : memref<8x1xf32, #tpu.memory_space<vmem>>, vector<8x1xf32>
    %3 = vector.broadcast %2 : vector<8x1xf32> to vector<8x8xf32>
    %4 = arith.mulf %1, %3 : vector<8x8xf32>
    %c0_4 = arith.constant 0 : index
    %c0_5 = arith.constant 0 : index
    %5 = vector.load %arg3[%c0_4, %c0_5] : memref<8x1xf32, #tpu.memory_space<vmem>>, vector<8x1xf32>
    %6 = vector.broadcast %5 : vector<8x1xf32> to vector<8x8xf32>
    %7 = arith.addf %4, %6 : vector<8x8xf32>
    %cst = arith.constant 0.000000e+00 : f32
    %8 = vector.broadcast %cst : f32 to vector<8x8xf32>
    %9 = arith.maximumf %7, %8 : vector<8x8xf32>
    %c0_6 = arith.constant 0 : index
    %c0_7 = arith.constant 0 : index
    %10 = vector.load %arg4[%c0_6, %c0_7] : memref<8x24xf32, #tpu.memory_space<vmem>>, vector<8x24xf32>
    %c0_8 = arith.constant 0 : index
    %c0_9 = arith.constant 0 : index
    %11 = vector.load %arg5[%c0_8, %c0_9] : memref<8x1xf32, #tpu.memory_space<vmem>>, vector<8x1xf32>
    %cst_10 = arith.constant 0.000000e+00 : f32
    %12 = vector.broadcast %cst_10 : f32 to vector<8x1xf32>
    %cst_11 = arith.constant 0.000000e+00 : f32
    %13 = vector.broadcast %cst_11 : f32 to vector<8x1xf32>
    %14 = tpu.concatenate %12, %9, %13 in 1 : vector<8x1xf32>, vector<8x8xf32>, vector<8x1xf32> -> vector<8x10xf32>
    %15 = vector.extract_strided_slice %14 {offsets = [0, 0], sizes = [8, 8], strides = [1, 1]} : vector<8x10xf32> to vector<8x8xf32>
    %16 = vector.extract_strided_slice %14 {offsets = [0, 1], sizes = [8, 8], strides = [1, 1]} : vector<8x10xf32> to vector<8x8xf32>
    %17 = vector.extract_strided_slice %14 {offsets = [0, 2], sizes = [8, 8], strides = [1, 1]} : vector<8x10xf32> to vector<8x8xf32>
    %18 = tpu.concatenate %15, %16, %17 in 0 : vector<8x8xf32>, vector<8x8xf32>, vector<8x8xf32> -> vector<24x8xf32>
    %cst_12 = arith.constant dense<0.000000e+00> : vector<8x8xf32>
    %19 = tpu.matmul %10, %18, %cst_12 {dimension_numbers = #tpu.dot_dimension_numbers<[1], [0], [0], [1], [0, 0, 1, 1], [], []>} : vector<8x24xf32>, vector<24x8xf32>, vector<8x8xf32> -> vector<8x8xf32>
    %20 = vector.broadcast %11 : vector<8x1xf32> to vector<8x8xf32>
    %21 = arith.addf %19, %20 : vector<8x8xf32>
    %cst_13 = arith.constant 0.000000e+00 : f32
    %22 = vector.broadcast %cst_13 : f32 to vector<8x8xf32>
    %23 = arith.maximumf %21, %22 : vector<8x8xf32>
    %c0_14 = arith.constant 0 : index
    %c0_15 = arith.constant 0 : index
    %24 = vector.load %arg6[%c0_14, %c0_15] : memref<8x24xf32, #tpu.memory_space<vmem>>, vector<8x24xf32>
    %c0_16 = arith.constant 0 : index
    %c0_17 = arith.constant 0 : index
    %25 = vector.load %arg7[%c0_16, %c0_17] : memref<8x1xf32, #tpu.memory_space<vmem>>, vector<8x1xf32>
    %cst_18 = arith.constant 0.000000e+00 : f32
    %26 = vector.broadcast %cst_18 : f32 to vector<8x1xf32>
    %cst_19 = arith.constant 0.000000e+00 : f32
    %27 = vector.broadcast %cst_19 : f32 to vector<8x1xf32>
    %28 = tpu.concatenate %26, %23, %27 in 1 : vector<8x1xf32>, vector<8x8xf32>, vector<8x1xf32> -> vector<8x10xf32>
    %29 = vector.extract_strided_slice %28 {offsets = [0, 0], sizes = [8, 8], strides = [1, 1]} : vector<8x10xf32> to vector<8x8xf32>
    %30 = vector.extract_strided_slice %28 {offsets = [0, 1], sizes = [8, 8], strides = [1, 1]} : vector<8x10xf32> to vector<8x8xf32>
    %31 = vector.extract_strided_slice %28 {offsets = [0, 2], sizes = [8, 8], strides = [1, 1]} : vector<8x10xf32> to vector<8x8xf32>
    %32 = tpu.concatenate %29, %30, %31 in 0 : vector<8x8xf32>, vector<8x8xf32>, vector<8x8xf32> -> vector<24x8xf32>
    %cst_20 = arith.constant dense<0.000000e+00> : vector<8x8xf32>
    %33 = tpu.matmul %24, %32, %cst_20 {dimension_numbers = #tpu.dot_dimension_numbers<[1], [0], [0], [1], [0, 0, 1, 1], [], []>} : vector<8x24xf32>, vector<24x8xf32>, vector<8x8xf32> -> vector<8x8xf32>
    %34 = vector.broadcast %25 : vector<8x1xf32> to vector<8x8xf32>
    %35 = arith.addf %33, %34 : vector<8x8xf32>
    %36 = arith.addf %35, %1 : vector<8x8xf32>
    %c0_21 = arith.constant 0 : index
    %c0_22 = arith.constant 0 : index
    %c0_23 = arith.constant 0 : index
    %37 = vector.load %arg8[%c0_21, %c0_22, %c0_23] : memref<1x8x8xf32, #tpu.memory_space<vmem>>, vector<1x8x8xf32>
    %38 = vector.shape_cast %37 : vector<1x8x8xf32> to vector<8x8xf32>
    %39 = vector.shape_cast %36 : vector<8x8xf32> to vector<1x8x8xf32>
    tpu.vector_store %arg8[%c0_21, %c0_22, %c0_23], %39 {strides = array<i32>} : memref<1x8x8xf32, #tpu.memory_space<vmem>>, vector<1x8x8xf32>,
    return
  }
  func.func @transform_0(%arg0: i32) -> (i32, i32, i32) {
    %c0_i32 = arith.constant 0 : i32
    %c0_i32_0 = arith.constant 0 : i32
    %c0_i32_1 = arith.constant 0 : i32
    return %arg0, %c0_i32, %c0_i32_0 : i32, i32, i32
  }
  func.func @transform_1(%arg0: i32) -> (i32, i32) {
    %c0_i32 = arith.constant 0 : i32
    %c0_i32_0 = arith.constant 0 : i32
    %c0_i32_1 = arith.constant 0 : i32
    return %c0_i32, %c0_i32_0 : i32, i32
  }
  func.func @transform_2(%arg0: i32) -> (i32, i32) {
    %c0_i32 = arith.constant 0 : i32
    %c0_i32_0 = arith.constant 0 : i32
    %c0_i32_1 = arith.constant 0 : i32
    return %c0_i32, %c0_i32_0 : i32, i32
  }
  func.func @transform_3(%arg0: i32) -> (i32, i32) {
    %c0_i32 = arith.constant 0 : i32
    %c0_i32_0 = arith.constant 0 : i32
    %c0_i32_1 = arith.constant 0 : i32
    return %c0_i32, %c0_i32_0 : i32, i32
  }
  func.func @transform_4(%arg0: i32) -> (i32, i32) {
    %c0_i32 = arith.constant 0 : i32
    %c0_i32_0 = arith.constant 0 : i32
    %c0_i32_1 = arith.constant 0 : i32
    return %c0_i32, %c0_i32_0 : i32, i32
  }
  func.func @transform_5(%arg0: i32) -> (i32, i32) {
    %c0_i32 = arith.constant 0 : i32
    %c0_i32_0 = arith.constant 0 : i32
    %c0_i32_1 = arith.constant 0 : i32
    return %c0_i32, %c0_i32_0 : i32, i32
  }
  func.func @transform_6(%arg0: i32) -> (i32, i32) {
    %c0_i32 = arith.constant 0 : i32
    %c0_i32_0 = arith.constant 0 : i32
    %c0_i32_1 = arith.constant 0 : i32
    return %c0_i32, %c0_i32_0 : i32, i32
  }
  func.func @transform_7(%arg0: i32) -> (i32, i32, i32) {
    %c0_i32 = arith.constant 0 : i32
    %c0_i32_0 = arith.constant 0 : i32
    %c0_i32_1 = arith.constant 0 : i32
    return %arg0, %c0_i32, %c0_i32_0 : i32, i32, i32
  }
}

module attributes {stable_mosaic.version = 11 : i64} {
  func.func @kernel(%arg0: i32, %arg1: memref<1x8x8xf32, #tpu.memory_space<vmem>>, %arg2: memref<8x1xf32, #tpu.memory_space<vmem>>, %arg3: memref<8x1xf32, #tpu.memory_space<vmem>>, %arg4: memref<8x24xf32, #tpu.memory_space<vmem>>, %arg5: memref<8x1xf32, #tpu.memory_space<vmem>>, %arg6: memref<8x24xf32, #tpu.memory_space<vmem>>, %arg7: memref<8x1xf32, #tpu.memory_space<vmem>>, %arg8: memref<7x4xf32, #tpu.memory_space<vmem>>, %arg9: memref<2x9x4xf32, #tpu.memory_space<vmem>>, %arg10: memref<1x8x4xf32, #tpu.memory_space<vmem>>) attributes {dimension_semantics = [#tpu.dimension_semantics<parallel>], iteration_bounds = array<i64: 2>, scalar_prefetch = 0 : i64, scratch_operands = 0 : i64, tpu.core_type = #tpu.core_type<tc>, window_params = [{transform_indices = @transform_0, window_bounds = array<i64: 1, 8, 8>}, {pipeline_mode = #tpu.pipeline_mode<synchronous>, transform_indices = @transform_1, window_bounds = array<i64: 8, 1>}, {pipeline_mode = #tpu.pipeline_mode<synchronous>, transform_indices = @transform_2, window_bounds = array<i64: 8, 1>}, {pipeline_mode = #tpu.pipeline_mode<synchronous>, transform_indices = @transform_3, window_bounds = array<i64: 8, 24>}, {pipeline_mode = #tpu.pipeline_mode<synchronous>, transform_indices = @transform_4, window_bounds = array<i64: 8, 1>}, {pipeline_mode = #tpu.pipeline_mode<synchronous>, transform_indices = @transform_5, window_bounds = array<i64: 8, 24>}, {pipeline_mode = #tpu.pipeline_mode<synchronous>, transform_indices = @transform_6, window_bounds = array<i64: 8, 1>}, {pipeline_mode = #tpu.pipeline_mode<synchronous>, transform_indices = @transform_7, window_bounds = array<i64: 7, 4>}, {pipeline_mode = #tpu.pipeline_mode<synchronous>, transform_indices = @transform_8, window_bounds = array<i64: 2, 9, 4>}, {transform_indices = @transform_9, window_bounds = array<i64: 1, 8, 4>}]} {
    %c0 = arith.constant 0 : index
    %c0_0 = arith.constant 0 : index
    %c0_1 = arith.constant 0 : index
    %0 = vector.load %arg1[%c0, %c0_0, %c0_1] : memref<1x8x8xf32, #tpu.memory_space<vmem>>, vector<1x8x8xf32>
    %1 = vector.shape_cast %0 : vector<1x8x8xf32> to vector<8x8xf32>
    %c0_2 = arith.constant 0 : index
    %c0_3 = arith.constant 0 : index
    %2 = vector.load %arg2[%c0_2, %c0_3] : memref<8x1xf32, #tpu.memory_space<vmem>>, vector<8x1xf32>
    %3 = vector.broadcast %2 : vector<8x1xf32> to vector<8x8xf32>
    %4 = arith.mulf %1, %3 : vector<8x8xf32>
    %c0_4 = arith.constant 0 : index
    %c0_5 = arith.constant 0 : index
    %5 = vector.load %arg3[%c0_4, %c0_5] : memref<8x1xf32, #tpu.memory_space<vmem>>, vector<8x1xf32>
    %6 = vector.broadcast %5 : vector<8x1xf32> to vector<8x8xf32>
    %7 = arith.addf %4, %6 : vector<8x8xf32>
    %cst = arith.constant 0.000000e+00 : f32
    %8 = vector.broadcast %cst : f32 to vector<8x8xf32>
    %9 = arith.maximumf %7, %8 : vector<8x8xf32>
    %c0_6 = arith.constant 0 : index
    %c0_7 = arith.constant 0 : index
    %10 = vector.load %arg4[%c0_6, %c0_7] : memref<8x24xf32, #tpu.memory_space<vmem>>, vector<8x24xf32>
    %c0_8 = arith.constant 0 : index
    %c0_9 = arith.constant 0 : index
    %11 = vector.load %arg5[%c0_8, %c0_9] : memref<8x1xf32, #tpu.memory_space<vmem>>, vector<8x1xf32>
    %cst_10 = arith.constant 0.000000e+00 : f32
    %12 = vector.broadcast %cst_10 : f32 to vector<8x1xf32>
    %13 = tpu.concatenate %9, %12 in 1 : vector<8x8xf32>, vector<8x1xf32> -> vector<8x9xf32>
    %14 = vector.extract_strided_slice %13 {offsets = [0, 0], sizes = [8, 7], strides = [1, 1]} : vector<8x9xf32> to vector<8x7xf32>
    %15 = vector.extract_strided_slice %13 {offsets = [0, 1], sizes = [8, 7], strides = [1, 1]} : vector<8x9xf32> to vector<8x7xf32>
    %16 = vector.extract_strided_slice %13 {offsets = [0, 2], sizes = [8, 7], strides = [1, 1]} : vector<8x9xf32> to vector<8x7xf32>
    %17 = tpu.concatenate %14, %15, %16 in 0 : vector<8x7xf32>, vector<8x7xf32>, vector<8x7xf32> -> vector<24x7xf32>
    %cst_11 = arith.constant dense<0.000000e+00> : vector<8x7xf32>
    %18 = tpu.matmul %10, %17, %cst_11 {dimension_numbers = #tpu.dot_dimension_numbers<[1], [0], [0], [1], [0, 0, 1, 1], [], []>} : vector<8x24xf32>, vector<24x7xf32>, vector<8x7xf32> -> vector<8x7xf32>
    %19 = vector.broadcast %11 : vector<8x1xf32> to vector<8x7xf32>
    %20 = arith.addf %18, %19 : vector<8x7xf32>
    %c0_12 = arith.constant 0 : index
    %c0_13 = arith.constant 0 : index
    %21 = vector.load %arg8[%c0_12, %c0_13] : memref<7x4xf32, #tpu.memory_space<vmem>>, vector<7x4xf32>
    %cst_14 = arith.constant dense<0.000000e+00> : vector<8x4xf32>
    %22 = tpu.matmul %20, %21, %cst_14 {dimension_numbers = #tpu.dot_dimension_numbers<[1], [0], [0], [1], [0, 0, 1, 1], [], []>} : vector<8x7xf32>, vector<7x4xf32>, vector<8x4xf32> -> vector<8x4xf32>
    %cst_15 = arith.constant 0.000000e+00 : f32
    %23 = vector.broadcast %cst_15 : f32 to vector<8x4xf32>
    %24 = arith.maximumf %22, %23 : vector<8x4xf32>
    %c0_16 = arith.constant 0 : index
    %c0_17 = arith.constant 0 : index
    %25 = vector.load %arg6[%c0_16, %c0_17] : memref<8x24xf32, #tpu.memory_space<vmem>>, vector<8x24xf32>
    %c0_18 = arith.constant 0 : index
    %c0_19 = arith.constant 0 : index
    %26 = vector.load %arg7[%c0_18, %c0_19] : memref<8x1xf32, #tpu.memory_space<vmem>>, vector<8x1xf32>
    %cst_20 = arith.constant 0.000000e+00 : f32
    %27 = vector.broadcast %cst_20 : f32 to vector<8x1xf32>
    %cst_21 = arith.constant 0.000000e+00 : f32
    %28 = vector.broadcast %cst_21 : f32 to vector<8x1xf32>
    %29 = tpu.concatenate %27, %24, %28 in 1 : vector<8x1xf32>, vector<8x4xf32>, vector<8x1xf32> -> vector<8x6xf32>
    %30 = vector.extract_strided_slice %29 {offsets = [0, 0], sizes = [8, 4], strides = [1, 1]} : vector<8x6xf32> to vector<8x4xf32>
    %31 = vector.extract_strided_slice %29 {offsets = [0, 1], sizes = [8, 4], strides = [1, 1]} : vector<8x6xf32> to vector<8x4xf32>
    %32 = vector.extract_strided_slice %29 {offsets = [0, 2], sizes = [8, 4], strides = [1, 1]} : vector<8x6xf32> to vector<8x4xf32>
    %33 = tpu.concatenate %30, %31, %32 in 0 : vector<8x4xf32>, vector<8x4xf32>, vector<8x4xf32> -> vector<24x4xf32>
    %cst_22 = arith.constant dense<0.000000e+00> : vector<8x4xf32>
    %34 = tpu.matmul %25, %33, %cst_22 {dimension_numbers = #tpu.dot_dimension_numbers<[1], [0], [0], [1], [0, 0, 1, 1], [], []>} : vector<8x24xf32>, vector<24x4xf32>, vector<8x4xf32> -> vector<8x4xf32>
    %35 = vector.broadcast %26 : vector<8x1xf32> to vector<8x4xf32>
    %36 = arith.addf %34, %35 : vector<8x4xf32>
    %cst_23 = arith.constant 0.000000e+00 : f32
    %37 = vector.broadcast %cst_23 : f32 to vector<8x1xf32>
    %38 = tpu.concatenate %1, %37 in 1 : vector<8x8xf32>, vector<8x1xf32> -> vector<8x9xf32>
    %c0_24 = arith.constant 0 : index
    %c0_25 = arith.constant 0 : index
    %c0_26 = arith.constant 0 : index
    %39 = vector.load %arg9[%c0_24, %c0_25, %c0_26] : memref<2x9x4xf32, #tpu.memory_space<vmem>>, vector<1x9x4xf32>
    %40 = vector.shape_cast %39 : vector<1x9x4xf32> to vector<9x4xf32>
    %cst_27 = arith.constant dense<0.000000e+00> : vector<8x4xf32>
    %41 = tpu.matmul %38, %40, %cst_27 {dimension_numbers = #tpu.dot_dimension_numbers<[1], [0], [0], [1], [0, 0, 1, 1], [], []>} : vector<8x9xf32>, vector<9x4xf32>, vector<8x4xf32> -> vector<8x4xf32>
    %c1 = arith.constant 1 : index
    %c0_28 = arith.constant 0 : index
    %c0_29 = arith.constant 0 : index
    %42 = vector.load %arg9[%c1, %c0_28, %c0_29] : memref<2x9x4xf32, #tpu.memory_space<vmem>>, vector<1x9x4xf32>
    %43 = vector.shape_cast %42 : vector<1x9x4xf32> to vector<9x4xf32>
    %cst_30 = arith.constant dense<0.000000e+00> : vector<8x4xf32>
    %44 = tpu.matmul %38, %43, %cst_30 {dimension_numbers = #tpu.dot_dimension_numbers<[1], [0], [0], [1], [0, 0, 1, 1], [], []>} : vector<8x9xf32>, vector<9x4xf32>, vector<8x4xf32> -> vector<8x4xf32>
    %45 = arith.maximumf %41, %44 : vector<8x4xf32>
    %46 = arith.addf %36, %45 : vector<8x4xf32>
    %c0_31 = arith.constant 0 : index
    %c0_32 = arith.constant 0 : index
    %c0_33 = arith.constant 0 : index
    %47 = vector.load %arg10[%c0_31, %c0_32, %c0_33] : memref<1x8x4xf32, #tpu.memory_space<vmem>>, vector<1x8x4xf32>
    %48 = vector.shape_cast %47 : vector<1x8x4xf32> to vector<8x4xf32>
    %49 = vector.shape_cast %46 : vector<8x4xf32> to vector<1x8x4xf32>
    tpu.vector_store %arg10[%c0_31, %c0_32, %c0_33], %49 {strides = array<i32>} : memref<1x8x4xf32, #tpu.memory_space<vmem>>, vector<1x8x4xf32>,
    return
  }
  func.func @transform_0(%arg0: i32) -> (i32, i32, i32) {
    %c0_i32 = arith.constant 0 : i32
    %c0_i32_0 = arith.constant 0 : i32
    %c0_i32_1 = arith.constant 0 : i32
    return %arg0, %c0_i32, %c0_i32_0 : i32, i32, i32
  }
  func.func @transform_1(%arg0: i32) -> (i32, i32) {
    %c0_i32 = arith.constant 0 : i32
    %c0_i32_0 = arith.constant 0 : i32
    %c0_i32_1 = arith.constant 0 : i32
    return %c0_i32, %c0_i32_0 : i32, i32
  }
  func.func @transform_2(%arg0: i32) -> (i32, i32) {
    %c0_i32 = arith.constant 0 : i32
    %c0_i32_0 = arith.constant 0 : i32
    %c0_i32_1 = arith.constant 0 : i32
    return %c0_i32, %c0_i32_0 : i32, i32
  }
  func.func @transform_3(%arg0: i32) -> (i32, i32) {
    %c0_i32 = arith.constant 0 : i32
    %c0_i32_0 = arith.constant 0 : i32
    %c0_i32_1 = arith.constant 0 : i32
    return %c0_i32, %c0_i32_0 : i32, i32
  }
  func.func @transform_4(%arg0: i32) -> (i32, i32) {
    %c0_i32 = arith.constant 0 : i32
    %c0_i32_0 = arith.constant 0 : i32
    %c0_i32_1 = arith.constant 0 : i32
    return %c0_i32, %c0_i32_0 : i32, i32
  }
  func.func @transform_5(%arg0: i32) -> (i32, i32) {
    %c0_i32 = arith.constant 0 : i32
    %c0_i32_0 = arith.constant 0 : i32
    %c0_i32_1 = arith.constant 0 : i32
    return %c0_i32, %c0_i32_0 : i32, i32
  }
  func.func @transform_6(%arg0: i32) -> (i32, i32) {
    %c0_i32 = arith.constant 0 : i32
    %c0_i32_0 = arith.constant 0 : i32
    %c0_i32_1 = arith.constant 0 : i32
    return %c0_i32, %c0_i32_0 : i32, i32
  }
  func.func @transform_7(%arg0: i32) -> (i32, i32) {
    %c0_i32 = arith.constant 0 : i32
    %c0_i32_0 = arith.constant 0 : i32
    %c0_i32_1 = arith.constant 0 : i32
    return %c0_i32, %c0_i32_0 : i32, i32
  }
  func.func @transform_8(%arg0: i32) -> (i32, i32, i32) {
    %c0_i32 = arith.constant 0 : i32
    %c0_i32_0 = arith.constant 0 : i32
    %c0_i32_1 = arith.constant 0 : i32
    %c0_i32_2 = arith.constant 0 : i32
    return %c0_i32, %c0_i32_0, %c0_i32_1 : i32, i32, i32
  }
  func.func @transform_9(%arg0: i32) -> (i32, i32, i32) {
    %c0_i32 = arith.constant 0 : i32
    %c0_i32_0 = arith.constant 0 : i32
    %c0_i32_1 = arith.constant 0 : i32
    return %arg0, %c0_i32, %c0_i32_0 : i32, i32, i32
  }
}

module attributes {stable_mosaic.version = 11 : i64} {
  func.func @kernel(%arg0: i32, %arg1: memref<1x16x4xf32, #tpu.memory_space<vmem>>, %arg2: memref<16x1xf32, #tpu.memory_space<vmem>>, %arg3: memref<16x1xf32, #tpu.memory_space<vmem>>, %arg4: memref<5x16xf32, #tpu.memory_space<vmem>>, %arg5: memref<5x1xf32, #tpu.memory_space<vmem>>, %arg6: memref<1x5x1xf32, #tpu.memory_space<vmem>>, %arg7: memref<1x16x1xf32, #tpu.memory_space<vmem>>) attributes {dimension_semantics = [#tpu.dimension_semantics<parallel>], iteration_bounds = array<i64: 2>, scalar_prefetch = 0 : i64, scratch_operands = 0 : i64, tpu.core_type = #tpu.core_type<tc>, window_params = [{transform_indices = @transform_0, window_bounds = array<i64: 1, 16, 4>}, {pipeline_mode = #tpu.pipeline_mode<synchronous>, transform_indices = @transform_1, window_bounds = array<i64: 16, 1>}, {pipeline_mode = #tpu.pipeline_mode<synchronous>, transform_indices = @transform_2, window_bounds = array<i64: 16, 1>}, {pipeline_mode = #tpu.pipeline_mode<synchronous>, transform_indices = @transform_3, window_bounds = array<i64: 5, 16>}, {pipeline_mode = #tpu.pipeline_mode<synchronous>, transform_indices = @transform_4, window_bounds = array<i64: 5, 1>}, {transform_indices = @transform_5, window_bounds = array<i64: 1, 5, 1>}, {transform_indices = @transform_6, window_bounds = array<i64: 1, 16, 1>}]} {
    %c0 = arith.constant 0 : index
    %c0_0 = arith.constant 0 : index
    %c0_1 = arith.constant 0 : index
    %0 = vector.load %arg1[%c0, %c0_0, %c0_1] : memref<1x16x4xf32, #tpu.memory_space<vmem>>, vector<1x16x4xf32>
    %1 = vector.shape_cast %0 : vector<1x16x4xf32> to vector<16x4xf32>
    %c0_2 = arith.constant 0 : index
    %c0_3 = arith.constant 0 : index
    %2 = vector.load %arg2[%c0_2, %c0_3] : memref<16x1xf32, #tpu.memory_space<vmem>>, vector<16x1xf32>
    %3 = vector.broadcast %2 : vector<16x1xf32> to vector<16x4xf32>
    %4 = arith.mulf %1, %3 : vector<16x4xf32>
    %c0_4 = arith.constant 0 : index
    %c0_5 = arith.constant 0 : index
    %5 = vector.load %arg3[%c0_4, %c0_5] : memref<16x1xf32, #tpu.memory_space<vmem>>, vector<16x1xf32>
    %6 = vector.broadcast %5 : vector<16x1xf32> to vector<16x4xf32>
    %7 = arith.addf %4, %6 : vector<16x4xf32>
    %cst = arith.constant 0.000000e+00 : f32
    %8 = vector.broadcast %cst : f32 to vector<16x4xf32>
    %9 = arith.maximumf %7, %8 : vector<16x4xf32>
    %cst_6 = arith.constant dense<0.000000e+00> : vector<16xf32>
    %10 = vector.multi_reduction <add>, %9, %cst_6 [1] : vector<16x4xf32> to vector<16xf32>
    %11 = vector.shape_cast %10 : vector<16xf32> to vector<16x1xf32>
    %cst_7 = arith.constant 2.500000e-01 : f32
    %12 = vector.broadcast %cst_7 : f32 to vector<16x1xf32>
    %13 = arith.mulf %11, %12 : vector<16x1xf32>
    %c0_8 = arith.constant 0 : index
    %c0_9 = arith.constant 0 : index
    %14 = vector.load %arg4[%c0_8, %c0_9] : memref<5x16xf32, #tpu.memory_space<vmem>>, vector<5x16xf32>
    %cst_10 = arith.constant dense<0.000000e+00> : vector<5x1xf32>
    %15 = tpu.matmul %14, %13, %cst_10 {dimension_numbers = #tpu.dot_dimension_numbers<[1], [0], [0], [1], [0, 0, 1, 1], [], []>} : vector<5x16xf32>, vector<16x1xf32>, vector<5x1xf32> -> vector<5x1xf32>
    %c0_11 = arith.constant 0 : index
    %c0_12 = arith.constant 0 : index
    %16 = vector.load %arg5[%c0_11, %c0_12] : memref<5x1xf32, #tpu.memory_space<vmem>>, vector<5x1xf32>
    %17 = arith.addf %15, %16 : vector<5x1xf32>
    %c0_13 = arith.constant 0 : index
    %c0_14 = arith.constant 0 : index
    %c0_15 = arith.constant 0 : index
    %18 = vector.load %arg7[%c0_13, %c0_14, %c0_15] : memref<1x16x1xf32, #tpu.memory_space<vmem>>, vector<1x16x1xf32>
    %19 = vector.shape_cast %18 : vector<1x16x1xf32> to vector<16x1xf32>
    %20 = vector.shape_cast %13 : vector<16x1xf32> to vector<1x16x1xf32>
    tpu.vector_store %arg7[%c0_13, %c0_14, %c0_15], %20 {strides = array<i32>} : memref<1x16x1xf32, #tpu.memory_space<vmem>>, vector<1x16x1xf32>,
    %c0_16 = arith.constant 0 : index
    %c0_17 = arith.constant 0 : index
    %c0_18 = arith.constant 0 : index
    %21 = vector.load %arg6[%c0_16, %c0_17, %c0_18] : memref<1x5x1xf32, #tpu.memory_space<vmem>>, vector<1x5x1xf32>
    %22 = vector.shape_cast %21 : vector<1x5x1xf32> to vector<5x1xf32>
    %23 = vector.shape_cast %17 : vector<5x1xf32> to vector<1x5x1xf32>
    tpu.vector_store %arg6[%c0_16, %c0_17, %c0_18], %23 {strides = array<i32>} : memref<1x5x1xf32, #tpu.memory_space<vmem>>, vector<1x5x1xf32>,
    return
  }
  func.func @transform_0(%arg0: i32) -> (i32, i32, i32) {
    %c0_i32 = arith.constant 0 : i32
    %c0_i32_0 = arith.constant 0 : i32
    %c0_i32_1 = arith.constant 0 : i32
    return %arg0, %c0_i32, %c0_i32_0 : i32, i32, i32
  }
  func.func @transform_1(%arg0: i32) -> (i32, i32) {
    %c0_i32 = arith.constant 0 : i32
    %c0_i32_0 = arith.constant 0 : i32
    %c0_i32_1 = arith.constant 0 : i32
    return %c0_i32, %c0_i32_0 : i32, i32
  }
  func.func @transform_2(%arg0: i32) -> (i32, i32) {
    %c0_i32 = arith.constant 0 : i32
    %c0_i32_0 = arith.constant 0 : i32
    %c0_i32_1 = arith.constant 0 : i32
    return %c0_i32, %c0_i32_0 : i32, i32
  }
  func.func @transform_3(%arg0: i32) -> (i32, i32) {
    %c0_i32 = arith.constant 0 : i32
    %c0_i32_0 = arith.constant 0 : i32
    %c0_i32_1 = arith.constant 0 : i32
    return %c0_i32, %c0_i32_0 : i32, i32
  }
  func.func @transform_4(%arg0: i32) -> (i32, i32) {
    %c0_i32 = arith.constant 0 : i32
    %c0_i32_0 = arith.constant 0 : i32
    %c0_i32_1 = arith.constant 0 : i32
    return %c0_i32, %c0_i32_0 : i32, i32
  }
  func.func @transform_5(%arg0: i32) -> (i32, i32, i32) {
    %c0_i32 = arith.constant 0 : i32
    %c0_i32_0 = arith.constant 0 : i32
    %c0_i32_1 = arith.constant 0 : i32
    return %arg0, %c0_i32, %c0_i32_0 : i32, i32, i32
  }
  func.func @transform_6(%arg0: i32) -> (i32, i32, i32) {
    %c0_i32 = arith.constant 0 : i32
    %c0_i32_0 = arith.constant 0 : i32
    %c0_i32_1 = arith.constant 0 : i32
    return %arg0, %c0_i32, %c0_i32_0 : i32, i32, i32
  }
}

module attributes {stable_mosaic.version = 11 : i64} {
  func.func @kernel(%arg0: i32, %arg1: memref<1x8x4xf32, #tpu.memory_space<vmem>>, %arg2: memref<8x1xf32, #tpu.memory_space<vmem>>, %arg3: memref<8x1xf32, #tpu.memory_space<vmem>>, %arg4: memref<16x24xf32, #tpu.memory_space<vmem>>, %arg5: memref<16x1xf32, #tpu.memory_space<vmem>>, %arg6: memref<16x48xf32, #tpu.memory_space<vmem>>, %arg7: memref<16x1xf32, #tpu.memory_space<vmem>>, %arg8: memref<1x16x4xf32, #tpu.memory_space<vmem>>) attributes {dimension_semantics = [#tpu.dimension_semantics<parallel>], iteration_bounds = array<i64: 2>, scalar_prefetch = 0 : i64, scratch_operands = 0 : i64, tpu.core_type = #tpu.core_type<tc>, window_params = [{transform_indices = @transform_0, window_bounds = array<i64: 1, 8, 4>}, {pipeline_mode = #tpu.pipeline_mode<synchronous>, transform_indices = @transform_1, window_bounds = array<i64: 8, 1>}, {pipeline_mode = #tpu.pipeline_mode<synchronous>, transform_indices = @transform_2, window_bounds = array<i64: 8, 1>}, {pipeline_mode = #tpu.pipeline_mode<synchronous>, transform_indices = @transform_3, window_bounds = array<i64: 16, 24>}, {pipeline_mode = #tpu.pipeline_mode<synchronous>, transform_indices = @transform_4, window_bounds = array<i64: 16, 1>}, {pipeline_mode = #tpu.pipeline_mode<synchronous>, transform_indices = @transform_5, window_bounds = array<i64: 16, 48>}, {pipeline_mode = #tpu.pipeline_mode<synchronous>, transform_indices = @transform_6, window_bounds = array<i64: 16, 1>}, {transform_indices = @transform_7, window_bounds = array<i64: 1, 16, 4>}]} {
    %c0 = arith.constant 0 : index
    %c0_0 = arith.constant 0 : index
    %c0_1 = arith.constant 0 : index
    %0 = vector.load %arg1[%c0, %c0_0, %c0_1] : memref<1x8x4xf32, #tpu.memory_space<vmem>>, vector<1x8x4xf32>
    %1 = vector.shape_cast %0 : vector<1x8x4xf32> to vector<8x4xf32>
    %c0_2 = arith.constant 0 : index
    %c0_3 = arith.constant 0 : index
    %2 = vector.load %arg2[%c0_2, %c0_3] : memref<8x1xf32, #tpu.memory_space<vmem>>, vector<8x1xf32>
    %3 = vector.broadcast %2 : vector<8x1xf32> to vector<8x4xf32>
    %4 = arith.mulf %1, %3 : vector<8x4xf32>
    %c0_4 = arith.constant 0 : index
    %c0_5 = arith.constant 0 : index
    %5 = vector.load %arg3[%c0_4, %c0_5] : memref<8x1xf32, #tpu.memory_space<vmem>>, vector<8x1xf32>
    %6 = vector.broadcast %5 : vector<8x1xf32> to vector<8x4xf32>
    %7 = arith.addf %4, %6 : vector<8x4xf32>
    %cst = arith.constant 0.000000e+00 : f32
    %8 = vector.broadcast %cst : f32 to vector<8x4xf32>
    %9 = arith.maximumf %7, %8 : vector<8x4xf32>
    %c0_6 = arith.constant 0 : index
    %c0_7 = arith.constant 0 : index
    %10 = vector.load %arg4[%c0_6, %c0_7] : memref<16x24xf32, #tpu.memory_space<vmem>>, vector<16x24xf32>
    %c0_8 = arith.constant 0 : index
    %c0_9 = arith.constant 0 : index
    %11 = vector.load %arg5[%c0_8, %c0_9] : memref<16x1xf32, #tpu.memory_space<vmem>>, vector<16x1xf32>
    %cst_10 = arith.constant 0.000000e+00 : f32
    %12 = vector.broadcast %cst_10 : f32 to vector<8x1xf32>
    %cst_11 = arith.constant 0.000000e+00 : f32
    %13 = vector.broadcast %cst_11 : f32 to vector<8x1xf32>
    %14 = tpu.concatenate %12, %9, %13 in 1 : vector<8x1xf32>, vector<8x4xf32>, vector<8x1xf32> -> vector<8x6xf32>
    %15 = vector.extract_strided_slice %14 {offsets = [0, 0], sizes = [8, 4], strides = [1, 1]} : vector<8x6xf32> to vector<8x4xf32>
    %16 = vector.extract_strided_slice %14 {offsets = [0, 1], sizes = [8, 4], strides = [1, 1]} : vector<8x6xf32> to vector<8x4xf32>
    %17 = vector.extract_strided_slice %14 {offsets = [0, 2], sizes = [8, 4], strides = [1, 1]} : vector<8x6xf32> to vector<8x4xf32>
    %18 = tpu.concatenate %15, %16, %17 in 0 : vector<8x4xf32>, vector<8x4xf32>, vector<8x4xf32> -> vector<24x4xf32>
    %cst_12 = arith.constant dense<0.000000e+00> : vector<16x4xf32>
    %19 = tpu.matmul %10, %18, %cst_12 {dimension_numbers = #tpu.dot_dimension_numbers<[1], [0], [0], [1], [0, 0, 1, 1], [], []>} : vector<16x24xf32>, vector<24x4xf32>, vector<16x4xf32> -> vector<16x4xf32>
    %20 = vector.broadcast %11 : vector<16x1xf32> to vector<16x4xf32>
    %21 = arith.addf %19, %20 : vector<16x4xf32>
    %cst_13 = arith.constant 0.000000e+00 : f32
    %22 = vector.broadcast %cst_13 : f32 to vector<16x4xf32>
    %23 = arith.maximumf %21, %22 : vector<16x4xf32>
    %c0_14 = arith.constant 0 : index
    %c0_15 = arith.constant 0 : index
    %24 = vector.load %arg6[%c0_14, %c0_15] : memref<16x48xf32, #tpu.memory_space<vmem>>, vector<16x48xf32>
    %c0_16 = arith.constant 0 : index
    %c0_17 = arith.constant 0 : index
    %25 = vector.load %arg7[%c0_16, %c0_17] : memref<16x1xf32, #tpu.memory_space<vmem>>, vector<16x1xf32>
    %cst_18 = arith.constant 0.000000e+00 : f32
    %26 = vector.broadcast %cst_18 : f32 to vector<16x1xf32>
    %cst_19 = arith.constant 0.000000e+00 : f32
    %27 = vector.broadcast %cst_19 : f32 to vector<16x1xf32>
    %28 = tpu.concatenate %26, %23, %27 in 1 : vector<16x1xf32>, vector<16x4xf32>, vector<16x1xf32> -> vector<16x6xf32>
    %29 = vector.extract_strided_slice %28 {offsets = [0, 0], sizes = [16, 4], strides = [1, 1]} : vector<16x6xf32> to vector<16x4xf32>
    %30 = vector.extract_strided_slice %28 {offsets = [0, 1], sizes = [16, 4], strides = [1, 1]} : vector<16x6xf32> to vector<16x4xf32>
    %31 = vector.extract_strided_slice %28 {offsets = [0, 2], sizes = [16, 4], strides = [1, 1]} : vector<16x6xf32> to vector<16x4xf32>
    %32 = tpu.concatenate %29, %30, %31 in 0 : vector<16x4xf32>, vector<16x4xf32>, vector<16x4xf32> -> vector<48x4xf32>
    %cst_20 = arith.constant dense<0.000000e+00> : vector<16x4xf32>
    %33 = tpu.matmul %24, %32, %cst_20 {dimension_numbers = #tpu.dot_dimension_numbers<[1], [0], [0], [1], [0, 0, 1, 1], [], []>} : vector<16x48xf32>, vector<48x4xf32>, vector<16x4xf32> -> vector<16x4xf32>
    %34 = vector.broadcast %25 : vector<16x1xf32> to vector<16x4xf32>
    %35 = arith.addf %33, %34 : vector<16x4xf32>
    %cst_21 = arith.constant 0.000000e+00 : f32
    %36 = vector.broadcast %cst_21 : f32 to vector<4x4xf32>
    %cst_22 = arith.constant 0.000000e+00 : f32
    %37 = vector.broadcast %cst_22 : f32 to vector<4x4xf32>
    %38 = tpu.concatenate %36, %1, %37 in 0 : vector<4x4xf32>, vector<8x4xf32>, vector<4x4xf32> -> vector<16x4xf32>
    %39 = arith.addf %35, %38 : vector<16x4xf32>
    %c0_23 = arith.constant 0 : index
    %c0_24 = arith.constant 0 : index
    %c0_25 = arith.constant 0 : index
    %40 = vector.load %arg8[%c0_23, %c0_24, %c0_25] : memref<1x16x4xf32, #tpu.memory_space<vmem>>, vector<1x16x4xf32>
    %41 = vector.shape_cast %40 : vector<1x16x4xf32> to vector<16x4xf32>
    %42 = vector.shape_cast %39 : vector<16x4xf32> to vector<1x16x4xf32>
    tpu.vector_store %arg8[%c0_23, %c0_24, %c0_25], %42 {strides = array<i32>} : memref<1x16x4xf32, #tpu.memory_space<vmem>>, vector<1x16x4xf32>,
    return
  }
  func.func @transform_0(%arg0: i32) -> (i32, i32, i32) {
    %c0_i32 = arith.constant 0 : i32
    %c0_i32_0 = arith.constant 0 : i32
    %c0_i32_1 = arith.constant 0 : i32
    return %arg0, %c0_i32, %c0_i32_0 : i32, i32, i32
  }
  func.func @transform_1(%arg0: i32) -> (i32, i32) {
    %c0_i32 = arith.constant 0 : i32
    %c0_i32_0 = arith.constant 0 : i32
    %c0_i32_1 = arith.constant 0 : i32
    return %c0_i32, %c0_i32_0 : i32, i32
  }
  func.func @transform_2(%arg0: i32) -> (i32, i32) {
    %c0_i32 = arith.constant 0 : i32
    %c0_i32_0 = arith.constant 0 : i32
    %c0_i32_1 = arith.constant 0 : i32
    return %c0_i32, %c0_i32_0 : i32, i32
  }
  func.func @transform_3(%arg0: i32) -> (i32, i32) {
    %c0_i32 = arith.constant 0 : i32
    %c0_i32_0 = arith.constant 0 : i32
    %c0_i32_1 = arith.constant 0 : i32
    return %c0_i32, %c0_i32_0 : i32, i32
  }
  func.func @transform_4(%arg0: i32) -> (i32, i32) {
    %c0_i32 = arith.constant 0 : i32
    %c0_i32_0 = arith.constant 0 : i32
    %c0_i32_1 = arith.constant 0 : i32
    return %c0_i32, %c0_i32_0 : i32, i32
  }
  func.func @transform_5(%arg0: i32) -> (i32, i32) {
    %c0_i32 = arith.constant 0 : i32
    %c0_i32_0 = arith.constant 0 : i32
    %c0_i32_1 = arith.constant 0 : i32
    return %c0_i32, %c0_i32_0 : i32, i32
  }
  func.func @transform_6(%arg0: i32) -> (i32, i32) {
    %c0_i32 = arith.constant 0 : i32
    %c0_i32_0 = arith.constant 0 : i32
    %c0_i32_1 = arith.constant 0 : i32
    return %c0_i32, %c0_i32_0 : i32, i32
  }
  func.func @transform_7(%arg0: i32) -> (i32, i32, i32) {
    %c0_i32 = arith.constant 0 : i32
    %c0_i32_0 = arith.constant 0 : i32
    %c0_i32_1 = arith.constant 0 : i32
    return %arg0, %c0_i32, %c0_i32_0 : i32, i32, i32
  }
}

</mosaic_0001>

<llo_original>
// kernel: resnet1d_forward.7
$region0: #{resnet1d_forward.7}
  #allocation0 [shape = 'u32[]', space=smem, size = 0x4, offset = 0x4, fixed_abs, tag = 'smem constant byte address 0x4 - core index']
  #allocation1 [shape = 'u32[144,128]{1,0:T(1,128)}', space=vmem, size = 0x12000, scoped, tag = 'internal scratch']
  %s0 = inlined_call_operand.vmem [shape: f32[2,4,16], index: 0, kind: input, shape index: {}]
  %s1 = inlined_call_operand.vmem [shape: f32[8,12], index: 1, kind: input, shape index: {}]
  %s2 = inlined_call_operand.vmem [shape: f32[8,1], index: 2, kind: input, shape index: {}]
  %s3 = inlined_call_operand.vmem [shape: f32[2,8,16], index: 3, kind: output, shape index: {}]
  %s4 = sld [smem:[#allocation0]]
  $region45: #{resnet1d_forward.7} parent=0
    _
  %s6 = ssub.s32 1, %s4
  %s7 = scalar_select 0, %s6, %s4
  loop: start=0, step=1, limit=4
  $region2: #{resnet1d_forward.7} parent=0 // loop_pre_header
    _
  $region3: #{resnet1d_forward.7} parent=0 // loop_header
    %s9 = sphi 0, %s13
    %p10 = scmp.ge.s32.totalorder %s9, 4
    %s19 = sphi 0, %s21
    %s22 = sphi 0, %s19
    %s23 = sphi 0, %s22
    %s39 = sphi 0, %s23
    %s43 = sphi 0, %s43
    %s45 = sphi 0, %s43
    %s46 = sphi 0, %s45
    %s60 = sphi 0, %s46
    %s64 = sphi 0, %s64
    %s66 = sphi 0, %s64
    %s67 = sphi 0, %s66
    %s81 = sphi 0, %s67
    %s87 = sphi 0, %s89
    %s90 = sphi 0, %s87
    %s91 = sphi 0, %s90
    %s107 = sphi 0, %s91
  $region4: #{resnet1d_forward.7} parent=0 // loop_header_branch
    %12 = sbr.rel (%p10) target = $region8
  $region5: #{resnet1d_forward.7} parent=0 // loop_body
    %s14 = ssub.s32 %s9, 1
    %s15 = ssub.s32 %s9, 2
    %s16 = sadd.s32 %s9, 1
    %s17 = ssub.s32 %s9, %s16
    %p18 = scmp.eq.s32.totalorder %s17, 0
    %s20 = sadd.s32 %s19, 1
    %s21 = scalar_select %p18, %s19, %s20
    %p24 = pneg %p18
    %p25 = scmp.eq.s32.totalorder %s9, 1
    %p26 = por %p24, %p25
    %p27 = scmp.ne.s32.totalorder %s19, %s22
    %p28 = scmp.eq.s32.totalorder %s9, 0
    %p29 = por %p27, %p28
    %p30 = scmp.ne.s32.totalorder %s19, %s22
    %p31 = scmp.eq.s32.totalorder %s14, 1
    %p32 = por %p30, %p31
    %p33 = scmp.ne.s32.totalorder %s22, %s23
    %p34 = scmp.eq.s32.totalorder %s14, 0
    %p35 = por %p33, %p34
    %p36 = scmp.ne.s32.totalorder %s22, %s23
    %p37 = scmp.eq.s32.totalorder %s15, 1
    %p38 = por %p36, %p37
    %p40 = scmp.ne.s32.totalorder %s23, %s39
    %p41 = scmp.eq.s32.totalorder %s15, 0
    %p42 = por %p40, %p41
    %s44 = sadd.s32 %s43, 1
    %p47 = scmp.eq.s32.totalorder %s9, 1
    %p48 = scmp.ne.s32.totalorder %s43, %s45
    %p49 = scmp.eq.s32.totalorder %s9, 0
    %p50 = por %p48, %p49
    %p51 = scmp.ne.s32.totalorder %s43, %s45
    %p52 = scmp.eq.s32.totalorder %s14, 1
    %p53 = por %p51, %p52
    %p54 = scmp.ne.s32.totalorder %s45, %s46
    %p55 = scmp.eq.s32.totalorder %s14, 0
    %p56 = por %p54, %p55
    %p57 = scmp.ne.s32.totalorder %s45, %s46
    %p58 = scmp.eq.s32.totalorder %s15, 1
    %p59 = por %p57, %p58
    %p61 = scmp.ne.s32.totalorder %s46, %s60
    %p62 = scmp.eq.s32.totalorder %s15, 0
    %p63 = por %p61, %p62
    %s65 = sadd.s32 %s64, 1
    %p68 = scmp.eq.s32.totalorder %s9, 1
    %p69 = scmp.ne.s32.totalorder %s64, %s66
    %p70 = scmp.eq.s32.totalorder %s9, 0
    %p71 = por %p69, %p70
    %p72 = scmp.ne.s32.totalorder %s64, %s66
    %p73 = scmp.eq.s32.totalorder %s14, 1
    %p74 = por %p72, %p73
    %p75 = scmp.ne.s32.totalorder %s66, %s67
    %p76 = scmp.eq.s32.totalorder %s14, 0
    %p77 = por %p75, %p76
    %p78 = scmp.ne.s32.totalorder %s66, %s67
    %p79 = scmp.eq.s32.totalorder %s15, 1
    %p80 = por %p78, %p79
    %p82 = scmp.ne.s32.totalorder %s67, %s81
    %p83 = scmp.eq.s32.totalorder %s15, 0
    %p84 = por %p82, %p83
    %s85 = ssub.s32 %s9, %s16
    %p86 = scmp.eq.s32.totalorder %s85, 0
    %s88 = sadd.s32 %s87, 1
    %s89 = scalar_select %p86, %s87, %s88
    %p92 = pneg %p86
    %p93 = scmp.eq.s32.totalorder %s9, 1
    %p94 = por %p92, %p93
    %p95 = scmp.ne.s32.totalorder %s87, %s90
    %p96 = scmp.eq.s32.totalorder %s9, 0
    %p97 = por %p95, %p96
    %p98 = scmp.ne.s32.totalorder %s87, %s90
    %p99 = scmp.eq.s32.totalorder %s14, 1
    %p100 = por %p98, %p99
    %p101 = scmp.ne.s32.totalorder %s90, %s91
    %p102 = scmp.eq.s32.totalorder %s14, 0
    %p103 = por %p101, %p102
    %p104 = scmp.ne.s32.totalorder %s90, %s91
    %p105 = scmp.eq.s32.totalorder %s15, 1
    %p106 = por %p104, %p105
    %p108 = scmp.ne.s32.totalorder %s91, %s107
    %p109 = scmp.eq.s32.totalorder %s15, 0
    %p110 = por %p108, %p109
    %p111 = scmp.le.s32.totalorder 1, %s9
    %p112 = scmp.lt.s32.totalorder %s9, 3
    %p113 = pnand %p111, %p112
    %p114 = pneg %p113
    // Predicated region
    $region9: #{resnet1d_forward.7} parent=5 // pred_check
      _
    $region10: #{resnet1d_forward.7} parent=5 // pred_check_branch
      %116 = sbr.rel (%p113) target = $region12
    $region11: #{resnet1d_forward.7} parent=5 // pred_region
      %s117 = ssub.s32 %s9, 1
      // Predicated region
      $region13: #{resnet1d_forward.7} parent=11 // pred_check
        %p118 = pneg %p56
      $region14: #{resnet1d_forward.7} parent=11 // pred_check_branch
        %120 = sbr.rel (%p118) target = $region16
      $region15: #{resnet1d_forward.7} parent=11 // pred_region
        _
      $region16: #{resnet1d_forward.7} parent=11 // pred_fallthru
        _
      // Predicated region
      $region17: #{resnet1d_forward.7} parent=11 // pred_check
        %p121 = pneg %p77
      $region18: #{resnet1d_forward.7} parent=11 // pred_check_branch
        %123 = sbr.rel (%p121) target = $region20
      $region19: #{resnet1d_forward.7} parent=11 // pred_region
        _
      $region20: #{resnet1d_forward.7} parent=11 // pred_fallthru
        _
    $region12: #{resnet1d_forward.7} parent=5 // pred_fallthru
      _
    %p124 = scmp.lt.s32.totalorder %s9, 2
    // Predicated region
    $region21: #{resnet1d_forward.7} parent=5 // pred_check
      %p125 = pneg %p124
    $region22: #{resnet1d_forward.7} parent=5 // pred_check_branch
      %127 = sbr.rel (%p125) target = $region24
    $region23: #{resnet1d_forward.7} parent=5 // pred_region
      // Predicated region
      $region25: #{resnet1d_forward.7} parent=23 // pred_check
        %p128 = pneg %p29
      $region26: #{resnet1d_forward.7} parent=23 // pred_check_branch
        %130 = sbr.rel (%p128) target = $region28
      $region27: #{resnet1d_forward.7} parent=23 // pred_region
        %p131 = scmp.lt.s32.totalorder %s9, 1
        %s132 = scalar_select %p131, %s9, 1
        %s133 = smul.addr %s132, 4
        %s134 = scalar_lea.vmem %s0, %s133
      $region28: #{resnet1d_forward.7} parent=23 // pred_fallthru
        _
    $region24: #{resnet1d_forward.7} parent=5 // pred_fallthru
      _
    %p135 = scmp.le.s32.totalorder 1, %s9
    %p136 = scmp.lt.s32.totalorder %s9, 3
    %p137 = pnand %p135, %p136
    %p138 = pneg %p137
    // Predicated region
    $region29: #{resnet1d_forward.7} parent=5 // pred_check
      _
    $region30: #{resnet1d_forward.7} parent=5 // pred_check_branch
      %140 = sbr.rel (%p137) target = $region32
    $region31: #{resnet1d_forward.7} parent=5 // pred_region
      %s141 = ssub.s32 %s9, 1
      %p142 = scmp.lt.s32.totalorder %s14, 1
      %s143 = scalar_select %p142, %s14, 1
      %s144 = smul.addr %s143, 4
      %s145 = scalar_lea.vmem %s0, %s144
      %p146 = pneg %p35
      %p147 = pneg %p32
      %p148 = pneg %p56
      %p149 = pneg %p53
      %p150 = pneg %p77
      %p151 = pneg %p74
      %p152 = pneg %p103
      %p153 = pneg %p100
      %p154 = scmp.lt.s32.totalorder %s14, 1
      %s155 = scalar_select %p154, %s14, 1
      %s156 = smul.addr %s155, 8
      %s157 = scalar_lea.vmem %s3, %s156
      %p158 = scmp.lt.s32.totalorder %s14, 1
      %s159 = scalar_select %p158, %s14, 1
      %s160 = smul.addr %s159, 4
      %s161 = scalar_lea.vmem %s0, %s160
      %p162 = scmp.lt.s32.totalorder %s14, 1
      %s163 = scalar_select %p162, %s14, 1
      %s164 = smul.addr %s163, 8
      %s165 = scalar_lea.vmem %s3, %s164
      %v166 = vld [vmem:[%s161] sm:$0xf]
      %v167 = vld [vmem:[%s1] sm:$0xff]
      %v168 = vld [vmem:[%s2] sm:$0xff]
      %170 = vrot.lane.b32.xlu0 %v166, 1
      %v171 = vpop.permute.xlu0 %170
      %vm173 = vcmask 7168
      %v174 = vsel %vm173, 0.0, %v171
      %vm175 = vcmask 138240
      %v176 = vsel %vm175, %v174, 0.0
      %v178 = vrot.slane %v176, 4
      %179 = vrot.lane.b32.xlu0 %v178, 127
      %v180 = vpop.permute.xlu0 %179
      %182 = vrot.lane.b32.xlu0 %v176, 126
      %v183 = vpop.permute.xlu0 %182
      %vm184 = vcmask 1043456
      %v185 = vsel %vm184, %v176, %v180
      %187 = vset.pattern.permute.xlu0 0
      %188 = vperm.xlu0 %187, %v168
      %v189 = vpop.permute.xlu0 %188
      %vm191 = vcmask 97280
      %v193 = vsel %vm191, %v167, 0
      %v195 = vsel %vm184, %v183, 0
      %197 = vmatprep.subr.mxu0 0.0
      %198 = vmatpush1.msra.mxu0 %v185
      %199 = vmatprep.subr.mxu0 0.0
      %200 = vmatpush1.msra.mxu0 %v195
      %201 = vmatprep.subr.mxu0 0.0
      %202 = vmatpush1.msra.mxu0 0.0
      %203 = vmatprep.subr.mxu0 0.0
      %204 = vmatpush1.msra.mxu0 0.0
      %205 = vmatprep.subr.mxu0 0.0
      %206 = vmatpush1.msra.mxu0 0.0
      %207 = vmatprep.subr.mxu0 0.0
      %208 = vmatpush1.msra.mxu0 0.0
      %209 = vmatprep.subr.mxu0 0.0
      %210 = vmatpush1.msra.mxu0 0.0
      %211 = vmatprep.subr.mxu0 0.0
      %212 = vmatpush1.msra.mxu0 0.0
      %213 = vmatprep.subr.mxu0 0.0
      %214 = vmatpush1.msra.mxu0 0.0
      %215 = vmatprep.subr.mxu0 0.0
      %216 = vmatpush1.msra.mxu0 0.0
      %217 = vmatprep.subr.mxu0 0.0
      %218 = vmatpush1.msra.mxu0 0.0
      %219 = vmatprep.subr.mxu0 0.0
      %220 = vmatpush1.msra.mxu0 0.0
      %221 = vmatprep.subr.mxu0 0.0
      %222 = vmatpush1.msra.mxu0 0.0
      %223 = vmatprep.subr.mxu0 0.0
      %224 = vmatpush1.msra.mxu0 0.0
      %225 = vmatprep.subr.mxu0 0.0
      %226 = vmatpush1.msra.mxu0 0.0
      %227 = vmatprep.subr.mxu0 0.0
      %228 = vmatpush1.msra.mxu0 0.0
      %229 = vmatprep.subr.mxu0 0.0
      %230 = vmatpush1.msra.mxu0 0.0
      %231 = vmatprep.subr.mxu0 0.0
      %232 = vmatpush1.msra.mxu0 0.0
      %233 = vmatprep.subr.mxu0 0.0
      %234 = vmatpush1.msra.mxu0 0.0
      %235 = vmatprep.subr.mxu0 0.0
      %236 = vmatpush1.msra.mxu0 0.0
      %237 = vmatprep.subr.mxu0 0.0
      %238 = vmatpush1.msra.mxu0 0.0
      %239 = vmatprep.subr.mxu0 0.0
      %240 = vmatpush1.msra.mxu0 0.0
      %241 = vmatprep.subr.mxu0 0.0
      %242 = vmatpush1.msra.mxu0 0.0
      %243 = vmatprep.subr.mxu0 0.0
      %244 = vmatpush1.msra.mxu0 0.0
      %245 = vmatprep.subr.mxu0 0.0
      %246 = vmatpush1.msra.mxu0 0.0
      %247 = vmatprep.subr.mxu0 0.0
      %248 = vmatpush1.msra.mxu0 0.0
      %249 = vmatprep.subr.mxu0 0.0
      %250 = vmatpush1.msra.mxu0 0.0
      %251 = vmatprep.subr.mxu0 0.0
      %252 = vmatpush1.msra.mxu0 0.0
      %253 = vmatprep.subr.mxu0 0.0
      %254 = vmatpush1.msra.mxu0 0.0
      %255 = vmatprep.subr.mxu0 0.0
      %256 = vmatpush1.msra.mxu0 0.0
      %257 = vmatprep.subr.mxu0 0.0
      %258 = vmatpush1.msra.mxu0 0.0
      %259 = vmatprep.subr.mxu0 0.0
      %260 = vmatpush1.msra.mxu0 0.0
      %261 = vmatprep.mubr.f32.mxu0 0.0
      %262 = vmatmul.mubr.f32.gmra.mrb[0].mxu0 %v193
      %v263 = vpop.f32.mrb[0].mxu0
      %v264 = vadd.f32 %v189, %v263
      %v265 = vpop.f32.mrb[0].mxu0
      %266 = vdwg.mxu0
      %v267 = vmax.f32 %v264, 0.0
      %vm268 = vcmask 130048
      %269 = vst.msk [vmem:[%s165] sm:$0xff] %vm268, %v267
      %p270 = scmp.lt.s32.totalorder %s14, 1
      %s271 = scalar_select %p270, %s14, 1
      %s272 = smul.addr %s271, 8
      %s273 = scalar_lea.vmem %s3, %s272
      // Predicated region
      $region33: #{resnet1d_forward.7} parent=31 // pred_check
        %p274 = pneg %p100
      $region34: #{resnet1d_forward.7} parent=31 // pred_check_branch
        %276 = sbr.rel (%p274) target = $region36
      $region35: #{resnet1d_forward.7} parent=31 // pred_region
        _
      $region36: #{resnet1d_forward.7} parent=31 // pred_fallthru
        _
    $region32: #{resnet1d_forward.7} parent=5 // pred_fallthru
      _
    %p277 = scmp.le.s32.totalorder 2, %s9
    // Predicated region
    $region37: #{resnet1d_forward.7} parent=5 // pred_check
      %p278 = pneg %p277
    $region38: #{resnet1d_forward.7} parent=5 // pred_check_branch
      %280 = sbr.rel (%p278) target = $region40
    $region39: #{resnet1d_forward.7} parent=5 // pred_region
      %s281 = ssub.s32 %s9, 2
      // Predicated region
      $region41: #{resnet1d_forward.7} parent=39 // pred_check
        %p282 = pneg %p106
      $region42: #{resnet1d_forward.7} parent=39 // pred_check_branch
        %284 = sbr.rel (%p282) target = $region44
      $region43: #{resnet1d_forward.7} parent=39 // pred_region
        %p285 = scmp.lt.s32.totalorder %s15, 1
        %s286 = scalar_select %p285, %s15, 1
        %s287 = smul.addr %s286, 8
        %s288 = scalar_lea.vmem %s3, %s287
      $region44: #{resnet1d_forward.7} parent=39 // pred_fallthru
        _
    $region40: #{resnet1d_forward.7} parent=5 // pred_fallthru
      _
  $region6: #{resnet1d_forward.7} parent=0 // loop_footer
    %s13 = sadd.s32 1, %s9
  $region7: #{resnet1d_forward.7} parent=0 // loop_footer_branch
    %8 = sbr.rel target = $region3
  $region8: #{resnet1d_forward.7} parent=0 // loop_exit
    _

// kernel: resnet1d_forward.8
$region0: #{resnet1d_forward.8}
  #allocation0 [shape = 'u32[]', space=smem, size = 0x4, offset = 0x4, fixed_abs, tag = 'smem constant byte address 0x4 - core index']
  #allocation1 [shape = 'u32[144,128]{1,0:T(1,128)}', space=vmem, size = 0x12000, scoped, tag = 'internal scratch']
  %s0 = inlined_call_operand.vmem [shape: f32[2,8,16], index: 0, kind: input, shape index: {}]
  %s1 = inlined_call_operand.vmem [shape: f32[8,24], index: 1, kind: input, shape index: {}]
  %s2 = inlined_call_operand.vmem [shape: f32[8,1], index: 2, kind: input, shape index: {}]
  %s3 = inlined_call_operand.vmem [shape: f32[8,24], index: 3, kind: input, shape index: {}]
  %s4 = inlined_call_operand.vmem [shape: f32[8,1], index: 4, kind: input, shape index: {}]
  %s5 = inlined_call_operand.vmem [shape: f32[2,8,16], index: 5, kind: output, shape index: {}]
  %s6 = sld [smem:[#allocation0]]
  $region53: #{resnet1d_forward.8} parent=0
    _
  %s8 = ssub.s32 1, %s6
  %s9 = scalar_select 0, %s8, %s6
  loop: start=0, step=1, limit=4
  $region2: #{resnet1d_forward.8} parent=0 // loop_pre_header
    _
  $region3: #{resnet1d_forward.8} parent=0 // loop_header
    %s11 = sphi 0, %s15
    %p12 = scmp.ge.s32.totalorder %s11, 4
    %s21 = sphi 0, %s23
    %s24 = sphi 0, %s21
    %s25 = sphi 0, %s24
    %s41 = sphi 0, %s25
    %s45 = sphi 0, %s45
    %s47 = sphi 0, %s45
    %s48 = sphi 0, %s47
    %s62 = sphi 0, %s48
    %s66 = sphi 0, %s66
    %s68 = sphi 0, %s66
    %s69 = sphi 0, %s68
    %s83 = sphi 0, %s69
    %s87 = sphi 0, %s87
    %s89 = sphi 0, %s87
    %s90 = sphi 0, %s89
    %s104 = sphi 0, %s90
    %s108 = sphi 0, %s108
    %s110 = sphi 0, %s108
    %s111 = sphi 0, %s110
    %s125 = sphi 0, %s111
    %s131 = sphi 0, %s133
    %s134 = sphi 0, %s131
    %s135 = sphi 0, %s134
    %s151 = sphi 0, %s135
  $region4: #{resnet1d_forward.8} parent=0 // loop_header_branch
    %14 = sbr.rel (%p12) target = $region8
  $region5: #{resnet1d_forward.8} parent=0 // loop_body
    %s16 = ssub.s32 %s11, 1
    %s17 = ssub.s32 %s11, 2
    %s18 = sadd.s32 %s11, 1
    %s19 = ssub.s32 %s11, %s18
    %p20 = scmp.eq.s32.totalorder %s19, 0
    %s22 = sadd.s32 %s21, 1
    %s23 = scalar_select %p20, %s21, %s22
    %p26 = pneg %p20
    %p27 = scmp.eq.s32.totalorder %s11, 1
    %p28 = por %p26, %p27
    %p29 = scmp.ne.s32.totalorder %s21, %s24
    %p30 = scmp.eq.s32.totalorder %s11, 0
    %p31 = por %p29, %p30
    %p32 = scmp.ne.s32.totalorder %s21, %s24
    %p33 = scmp.eq.s32.totalorder %s16, 1
    %p34 = por %p32, %p33
    %p35 = scmp.ne.s32.totalorder %s24, %s25
    %p36 = scmp.eq.s32.totalorder %s16, 0
    %p37 = por %p35, %p36
    %p38 = scmp.ne.s32.totalorder %s24, %s25
    %p39 = scmp.eq.s32.totalorder %s17, 1
    %p40 = por %p38, %p39
    %p42 = scmp.ne.s32.totalorder %s25, %s41
    %p43 = scmp.eq.s32.totalorder %s17, 0
    %p44 = por %p42, %p43
    %s46 = sadd.s32 %s45, 1
    %p49 = scmp.eq.s32.totalorder %s11, 1
    %p50 = scmp.ne.s32.totalorder %s45, %s47
    %p51 = scmp.eq.s32.totalorder %s11, 0
    %p52 = por %p50, %p51
    %p53 = scmp.ne.s32.totalorder %s45, %s47
    %p54 = scmp.eq.s32.totalorder %s16, 1
    %p55 = por %p53, %p54
    %p56 = scmp.ne.s32.totalorder %s47, %s48
    %p57 = scmp.eq.s32.totalorder %s16, 0
    %p58 = por %p56, %p57
    %p59 = scmp.ne.s32.totalorder %s47, %s48
    %p60 = scmp.eq.s32.totalorder %s17, 1
    %p61 = por %p59, %p60
    %p63 = scmp.ne.s32.totalorder %s48, %s62
    %p64 = scmp.eq.s32.totalorder %s17, 0
    %p65 = por %p63, %p64
    %s67 = sadd.s32 %s66, 1
    %p70 = scmp.eq.s32.totalorder %s11, 1
    %p71 = scmp.ne.s32.totalorder %s66, %s68
    %p72 = scmp.eq.s32.totalorder %s11, 0
    %p73 = por %p71, %p72
    %p74 = scmp.ne.s32.totalorder %s66, %s68
    %p75 = scmp.eq.s32.totalorder %s16, 1
    %p76 = por %p74, %p75
    %p77 = scmp.ne.s32.totalorder %s68, %s69
    %p78 = scmp.eq.s32.totalorder %s16, 0
    %p79 = por %p77, %p78
    %p80 = scmp.ne.s32.totalorder %s68, %s69
    %p81 = scmp.eq.s32.totalorder %s17, 1
    %p82 = por %p80, %p81
    %p84 = scmp.ne.s32.totalorder %s69, %s83
    %p85 = scmp.eq.s32.totalorder %s17, 0
    %p86 = por %p84, %p85
    %s88 = sadd.s32 %s87, 1
    %p91 = scmp.eq.s32.totalorder %s11, 1
    %p92 = scmp.ne.s32.totalorder %s87, %s89
    %p93 = scmp.eq.s32.totalorder %s11, 0
    %p94 = por %p92, %p93
    %p95 = scmp.ne.s32.totalorder %s87, %s89
    %p96 = scmp.eq.s32.totalorder %s16, 1
    %p97 = por %p95, %p96
    %p98 = scmp.ne.s32.totalorder %s89, %s90
    %p99 = scmp.eq.s32.totalorder %s16, 0
    %p100 = por %p98, %p99
    %p101 = scmp.ne.s32.totalorder %s89, %s90
    %p102 = scmp.eq.s32.totalorder %s17, 1
    %p103 = por %p101, %p102
    %p105 = scmp.ne.s32.totalorder %s90, %s104
    %p106 = scmp.eq.s32.totalorder %s17, 0
    %p107 = por %p105, %p106
    %s109 = sadd.s32 %s108, 1
    %p112 = scmp.eq.s32.totalorder %s11, 1
    %p113 = scmp.ne.s32.totalorder %s108, %s110
    %p114 = scmp.eq.s32.totalorder %s11, 0
    %p115 = por %p113, %p114
    %p116 = scmp.ne.s32.totalorder %s108, %s110
    %p117 = scmp.eq.s32.totalorder %s16, 1
    %p118 = por %p116, %p117
    %p119 = scmp.ne.s32.totalorder %s110, %s111
    %p120 = scmp.eq.s32.totalorder %s16, 0
    %p121 = por %p119, %p120
    %p122 = scmp.ne.s32.totalorder %s110, %s111
    %p123 = scmp.eq.s32.totalorder %s17, 1
    %p124 = por %p122, %p123
    %p126 = scmp.ne.s32.totalorder %s111, %s125
    %p127 = scmp.eq.s32.totalorder %s17, 0
    %p128 = por %p126, %p127
    %s129 = ssub.s32 %s11, %s18
    %p130 = scmp.eq.s32.totalorder %s129, 0
    %s132 = sadd.s32 %s131, 1
    %s133 = scalar_select %p130, %s131, %s132
    %p136 = pneg %p130
    %p137 = scmp.eq.s32.totalorder %s11, 1
    %p138 = por %p136, %p137
    %p139 = scmp.ne.s32.totalorder %s131, %s134
    %p140 = scmp.eq.s32.totalorder %s11, 0
    %p141 = por %p139, %p140
    %p142 = scmp.ne.s32.totalorder %s131, %s134
    %p143 = scmp.eq.s32.totalorder %s16, 1
    %p144 = por %p142, %p143
    %p145 = scmp.ne.s32.totalorder %s134, %s135
    %p146 = scmp.eq.s32.totalorder %s16, 0
    %p147 = por %p145, %p146
    %p148 = scmp.ne.s32.totalorder %s134, %s135
    %p149 = scmp.eq.s32.totalorder %s17, 1
    %p150 = por %p148, %p149
    %p152 = scmp.ne.s32.totalorder %s135, %s151
    %p153 = scmp.eq.s32.totalorder %s17, 0
    %p154 = por %p152, %p153
    %p155 = scmp.le.s32.totalorder 1, %s11
    %p156 = scmp.lt.s32.totalorder %s11, 3
    %p157 = pnand %p155, %p156
    %p158 = pneg %p157
    // Predicated region
    $region9: #{resnet1d_forward.8} parent=5 // pred_check
      _
    $region10: #{resnet1d_forward.8} parent=5 // pred_check_branch
      %160 = sbr.rel (%p157) target = $region12
    $region11: #{resnet1d_forward.8} parent=5 // pred_region
      %s161 = ssub.s32 %s11, 1
      // Predicated region
      $region13: #{resnet1d_forward.8} parent=11 // pred_check
        %p162 = pneg %p58
      $region14: #{resnet1d_forward.8} parent=11 // pred_check_branch
        %164 = sbr.rel (%p162) target = $region16
      $region15: #{resnet1d_forward.8} parent=11 // pred_region
        _
      $region16: #{resnet1d_forward.8} parent=11 // pred_fallthru
        _
      // Predicated region
      $region17: #{resnet1d_forward.8} parent=11 // pred_check
        %p165 = pneg %p79
      $region18: #{resnet1d_forward.8} parent=11 // pred_check_branch
        %167 = sbr.rel (%p165) target = $region20
      $region19: #{resnet1d_forward.8} parent=11 // pred_region
        _
      $region20: #{resnet1d_forward.8} parent=11 // pred_fallthru
        _
      // Predicated region
      $region21: #{resnet1d_forward.8} parent=11 // pred_check
        %p168 = pneg %p100
      $region22: #{resnet1d_forward.8} parent=11 // pred_check_branch
        %170 = sbr.rel (%p168) target = $region24
      $region23: #{resnet1d_forward.8} parent=11 // pred_region
        _
      $region24: #{resnet1d_forward.8} parent=11 // pred_fallthru
        _
      // Predicated region
      $region25: #{resnet1d_forward.8} parent=11 // pred_check
        %p171 = pneg %p121
      $region26: #{resnet1d_forward.8} parent=11 // pred_check_branch
        %173 = sbr.rel (%p171) target = $region28
      $region27: #{resnet1d_forward.8} parent=11 // pred_region
        _
      $region28: #{resnet1d_forward.8} parent=11 // pred_fallthru
        _
    $region12: #{resnet1d_forward.8} parent=5 // pred_fallthru
      _
    %p174 = scmp.lt.s32.totalorder %s11, 2
    // Predicated region
    $region29: #{resnet1d_forward.8} parent=5 // pred_check
      %p175 = pneg %p174
    $region30: #{resnet1d_forward.8} parent=5 // pred_check_branch
      %177 = sbr.rel (%p175) target = $region32
    $region31: #{resnet1d_forward.8} parent=5 // pred_region
      // Predicated region
      $region33: #{resnet1d_forward.8} parent=31 // pred_check
        %p178 = pneg %p31
      $region34: #{resnet1d_forward.8} parent=31 // pred_check_branch
        %180 = sbr.rel (%p178) target = $region36
      $region35: #{resnet1d_forward.8} parent=31 // pred_region
        %p181 = scmp.lt.s32.totalorder %s11, 1
        %s182 = scalar_select %p181, %s11, 1
        %s183 = smul.addr %s182, 8
        %s184 = scalar_lea.vmem %s0, %s183
      $region36: #{resnet1d_forward.8} parent=31 // pred_fallthru
        _
    $region32: #{resnet1d_forward.8} parent=5 // pred_fallthru
      _
    %p185 = scmp.le.s32.totalorder 1, %s11
    %p186 = scmp.lt.s32.totalorder %s11, 3
    %p187 = pnand %p185, %p186
    %p188 = pneg %p187
    // Predicated region
    $region37: #{resnet1d_forward.8} parent=5 // pred_check
      _
    $region38: #{resnet1d_forward.8} parent=5 // pred_check_branch
      %190 = sbr.rel (%p187) target = $region40
    $region39: #{resnet1d_forward.8} parent=5 // pred_region
      %s191 = ssub.s32 %s11, 1
      %p192 = scmp.lt.s32.totalorder %s16, 1
      %s193 = scalar_select %p192, %s16, 1
      %s194 = smul.addr %s193, 8
      %s195 = scalar_lea.vmem %s0, %s194
      %p196 = pneg %p37
      %p197 = pneg %p34
      %p198 = pneg %p58
      %p199 = pneg %p55
      %p200 = pneg %p79
      %p201 = pneg %p76
      %p202 = pneg %p100
      %p203 = pneg %p97
      %p204 = pneg %p121
      %p205 = pneg %p118
      %p206 = pneg %p147
      %p207 = pneg %p144
      %p208 = scmp.lt.s32.totalorder %s16, 1
      %s209 = scalar_select %p208, %s16, 1
      %s210 = smul.addr %s209, 8
      %s211 = scalar_lea.vmem %s5, %s210
      %p212 = scmp.lt.s32.totalorder %s16, 1
      %s213 = scalar_select %p212, %s16, 1
      %s214 = smul.addr %s213, 8
      %s215 = scalar_lea.vmem %s0, %s214
      %p216 = scmp.lt.s32.totalorder %s16, 1
      %s217 = scalar_select %p216, %s16, 1
      %s218 = smul.addr %s217, 8
      %s219 = scalar_lea.vmem %s5, %s218
      %v220 = vld [vmem:[%s215] sm:$0xff]
      %v221 = vld [vmem:[%s1] sm:$0xff]
      %v222 = vld [vmem:[%s2] sm:$0xff]
      %224 = vrot.lane.b32.xlu0 %v220, 1
      %v225 = vpop.permute.xlu0 %224
      %vm227 = vcmask 7168
      %v228 = vsel %vm227, 0.0, %v225
      %vm229 = vcmask 138240
      %v230 = vsel %vm229, %v228, 0.0
      %232 = vrot.lane.b32.xlu0 %v230, 127
      %v233 = vpop.permute.xlu0 %232
      %235 = vrot.lane.b32.xlu0 %v230, 126
      %v236 = vpop.permute.xlu0 %235
      %239 = vset.pattern.permute.xlu0 0
      %240 = vperm.xlu0 %239, %v222
      %v241 = vpop.permute.xlu0 %240
      %vm243 = vcmask 195584
      %v245 = vsel %vm243, %v221, 0
      %247 = vmatprep.subr.mxu0 0.0
      %248 = vmatpush1.msra.mxu0 %v230
      %249 = vmatprep.subr.mxu0 0.0
      %250 = vmatpush1.msra.mxu0 %v233
      %251 = vmatprep.subr.mxu0 0.0
      %252 = vmatpush1.msra.mxu0 %v236
      %253 = vmatprep.subr.mxu0 0.0
      %254 = vmatpush1.msra.mxu0 0.0
      %255 = vmatprep.subr.mxu0 0.0
      %256 = vmatpush1.msra.mxu0 0.0
      %257 = vmatprep.subr.mxu0 0.0
      %258 = vmatpush1.msra.mxu0 0.0
      %259 = vmatprep.subr.mxu0 0.0
      %260 = vmatpush1.msra.mxu0 0.0
      %261 = vmatprep.subr.mxu0 0.0
      %262 = vmatpush1.msra.mxu0 0.0
      %263 = vmatprep.subr.mxu0 0.0
      %264 = vmatpush1.msra.mxu0 0.0
      %265 = vmatprep.subr.mxu0 0.0
      %266 = vmatpush1.msra.mxu0 0.0
      %267 = vmatprep.subr.mxu0 0.0
      %268 = vmatpush1.msra.mxu0 0.0
      %269 = vmatprep.subr.mxu0 0.0
      %270 = vmatpush1.msra.mxu0 0.0
      %271 = vmatprep.subr.mxu0 0.0
      %272 = vmatpush1.msra.mxu0 0.0
      %273 = vmatprep.subr.mxu0 0.0
      %274 = vmatpush1.msra.mxu0 0.0
      %275 = vmatprep.subr.mxu0 0.0
      %276 = vmatpush1.msra.mxu0 0.0
      %277 = vmatprep.subr.mxu0 0.0
      %278 = vmatpush1.msra.mxu0 0.0
      %279 = vmatprep.subr.mxu0 0.0
      %280 = vmatpush1.msra.mxu0 0.0
      %281 = vmatprep.subr.mxu0 0.0
      %282 = vmatpush1.msra.mxu0 0.0
      %283 = vmatprep.subr.mxu0 0.0
      %284 = vmatpush1.msra.mxu0 0.0
      %285 = vmatprep.subr.mxu0 0.0
      %286 = vmatpush1.msra.mxu0 0.0
      %287 = vmatprep.subr.mxu0 0.0
      %288 = vmatpush1.msra.mxu0 0.0
      %289 = vmatprep.subr.mxu0 0.0
      %290 = vmatpush1.msra.mxu0 0.0
      %291 = vmatprep.subr.mxu0 0.0
      %292 = vmatpush1.msra.mxu0 0.0
      %293 = vmatprep.subr.mxu0 0.0
      %294 = vmatpush1.msra.mxu0 0.0
      %295 = vmatprep.subr.mxu0 0.0
      %296 = vmatpush1.msra.mxu0 0.0
      %297 = vmatprep.subr.mxu0 0.0
      %298 = vmatpush1.msra.mxu0 0.0
      %299 = vmatprep.subr.mxu0 0.0
      %300 = vmatpush1.msra.mxu0 0.0
      %301 = vmatprep.subr.mxu0 0.0
      %302 = vmatpush1.msra.mxu0 0.0
      %303 = vmatprep.subr.mxu0 0.0
      %304 = vmatpush1.msra.mxu0 0.0
      %305 = vmatprep.subr.mxu0 0.0
      %306 = vmatpush1.msra.mxu0 0.0
      %307 = vmatprep.subr.mxu0 0.0
      %308 = vmatpush1.msra.mxu0 0.0
      %309 = vmatprep.subr.mxu0 0.0
      %310 = vmatpush1.msra.mxu0 0.0
      %311 = vmatprep.mubr.f32.mxu0 0.0
      %312 = vmatmul.mubr.f32.gmra.mrb[0].mxu0 %v245
      %v313 = vpop.f32.mrb[0].mxu0
      %v314 = vadd.f32 %v241, %v313
      %v315 = vpop.f32.mrb[0].mxu0
      %316 = vdwg.mxu0
      %v317 = vmax.f32 %v314, 0.0
      %v318 = vld [vmem:[%s3] sm:$0xff]
      %v319 = vld [vmem:[%s4] sm:$0xff]
      %321 = vrot.lane.b32.xlu0 %v317, 1
      %v322 = vpop.permute.xlu0 %321
      %v324 = vsel %vm227, 0.0, %v322
      %v325 = vsel %vm229, %v324, 0.0
      %327 = vrot.lane.b32.xlu0 %v325, 127
      %v328 = vpop.permute.xlu0 %327
      %330 = vrot.lane.b32.xlu0 %v325, 126
      %v331 = vpop.permute.xlu0 %330
      %334 = vset.pattern.permute.xlu0 0
      %335 = vperm.xlu0 %334, %v319
      %v336 = vpop.permute.xlu0 %335
      %v339 = vsel %vm243, %v318, 0
      %341 = vmatprep.subr.mxu0 0.0
      %342 = vmatpush1.msra.mxu0 %v325
      %343 = vmatprep.subr.mxu0 0.0
      %344 = vmatpush1.msra.mxu0 %v328
      %345 = vmatprep.subr.mxu0 0.0
      %346 = vmatpush1.msra.mxu0 %v331
      %347 = vmatprep.subr.mxu0 0.0
      %348 = vmatpush1.msra.mxu0 0.0
      %349 = vmatprep.subr.mxu0 0.0
      %350 = vmatpush1.msra.mxu0 0.0
      %351 = vmatprep.subr.mxu0 0.0
      %352 = vmatpush1.msra.mxu0 0.0
      %353 = vmatprep.subr.mxu0 0.0
      %354 = vmatpush1.msra.mxu0 0.0
      %355 = vmatprep.subr.mxu0 0.0
      %356 = vmatpush1.msra.mxu0 0.0
      %357 = vmatprep.subr.mxu0 0.0
      %358 = vmatpush1.msra.mxu0 0.0
      %359 = vmatprep.subr.mxu0 0.0
      %360 = vmatpush1.msra.mxu0 0.0
      %361 = vmatprep.subr.mxu0 0.0
      %362 = vmatpush1.msra.mxu0 0.0
      %363 = vmatprep.subr.mxu0 0.0
      %364 = vmatpush1.msra.mxu0 0.0
      %365 = vmatprep.subr.mxu0 0.0
      %366 = vmatpush1.msra.mxu0 0.0
      %367 = vmatprep.subr.mxu0 0.0
      %368 = vmatpush1.msra.mxu0 0.0
      %369 = vmatprep.subr.mxu0 0.0
      %370 = vmatpush1.msra.mxu0 0.0
      %371 = vmatprep.subr.mxu0 0.0
      %372 = vmatpush1.msra.mxu0 0.0
      %373 = vmatprep.subr.mxu0 0.0
      %374 = vmatpush1.msra.mxu0 0.0
      %375 = vmatprep.subr.mxu0 0.0
      %376 = vmatpush1.msra.mxu0 0.0
      %377 = vmatprep.subr.mxu0 0.0
      %378 = vmatpush1.msra.mxu0 0.0
      %379 = vmatprep.subr.mxu0 0.0
      %380 = vmatpush1.msra.mxu0 0.0
      %381 = vmatprep.subr.mxu0 0.0
      %382 = vmatpush1.msra.mxu0 0.0
      %383 = vmatprep.subr.mxu0 0.0
      %384 = vmatpush1.msra.mxu0 0.0
      %385 = vmatprep.subr.mxu0 0.0
      %386 = vmatpush1.msra.mxu0 0.0
      %387 = vmatprep.subr.mxu0 0.0
      %388 = vmatpush1.msra.mxu0 0.0
      %389 = vmatprep.subr.mxu0 0.0
      %390 = vmatpush1.msra.mxu0 0.0
      %391 = vmatprep.subr.mxu0 0.0
      %392 = vmatpush1.msra.mxu0 0.0
      %393 = vmatprep.subr.mxu0 0.0
      %394 = vmatpush1.msra.mxu0 0.0
      %395 = vmatprep.subr.mxu0 0.0
      %396 = vmatpush1.msra.mxu0 0.0
      %397 = vmatprep.subr.mxu0 0.0
      %398 = vmatpush1.msra.mxu0 0.0
      %399 = vmatprep.subr.mxu0 0.0
      %400 = vmatpush1.msra.mxu0 0.0
      %401 = vmatprep.subr.mxu0 0.0
      %402 = vmatpush1.msra.mxu0 0.0
      %403 = vmatprep.subr.mxu0 0.0
      %404 = vmatpush1.msra.mxu0 0.0
      %405 = vmatprep.mubr.f32.mxu0 0.0
      %406 = vmatmul.mubr.f32.gmra.mrb[0].mxu0 %v339
      %v407 = vpop.f32.mrb[0].mxu0
      %v408 = vadd.f32 %v336, %v407
      %v409 = vpop.f32.mrb[0].mxu0
      %410 = vdwg.mxu0
      %v411 = vadd.f32 %v408, %v220
      %vm412 = vcmask 130048
      %413 = vst.msk [vmem:[%s219] sm:$0xff] %vm412, %v411
      %p414 = scmp.lt.s32.totalorder %s16, 1
      %s415 = scalar_select %p414, %s16, 1
      %s416 = smul.addr %s415, 8
      %s417 = scalar_lea.vmem %s5, %s416
      // Predicated region
      $region41: #{resnet1d_forward.8} parent=39 // pred_check
        %p418 = pneg %p144
      $region42: #{resnet1d_forward.8} parent=39 // pred_check_branch
        %420 = sbr.rel (%p418) target = $region44
      $region43: #{resnet1d_forward.8} parent=39 // pred_region
        _
      $region44: #{resnet1d_forward.8} parent=39 // pred_fallthru
        _
    $region40: #{resnet1d_forward.8} parent=5 // pred_fallthru
      _
    %p421 = scmp.le.s32.totalorder 2, %s11
    // Predicated region
    $region45: #{resnet1d_forward.8} parent=5 // pred_check
      %p422 = pneg %p421
    $region46: #{resnet1d_forward.8} parent=5 // pred_check_branch
      %424 = sbr.rel (%p422) target = $region48
    $region47: #{resnet1d_forward.8} parent=5 // pred_region
      %s425 = ssub.s32 %s11, 2
      // Predicated region
      $region49: #{resnet1d_forward.8} parent=47 // pred_check
        %p426 = pneg %p150
      $region50: #{resnet1d_forward.8} parent=47 // pred_check_branch
        %428 = sbr.rel (%p426) target = $region52
      $region51: #{resnet1d_forward.8} parent=47 // pred_region
        %p429 = scmp.lt.s32.totalorder %s17, 1
        %s430 = scalar_select %p429, %s17, 1
        %s431 = smul.addr %s430, 8
        %s432 = scalar_lea.vmem %s5, %s431
      $region52: #{resnet1d_forward.8} parent=47 // pred_fallthru
        _
    $region48: #{resnet1d_forward.8} parent=5 // pred_fallthru
      _
  $region6: #{resnet1d_forward.8} parent=0 // loop_footer
    %s15 = sadd.s32 1, %s11
  $region7: #{resnet1d_forward.8} parent=0 // loop_footer_branch
    %10 = sbr.rel target = $region3
  $region8: #{resnet1d_forward.8} parent=0 // loop_exit
    _

// kernel: resnet1d_forward.10
$region0: #{resnet1d_forward.10}
  #allocation0 [shape = 'u32[]', space=smem, size = 0x4, offset = 0x4, fixed_abs, tag = 'smem constant byte address 0x4 - core index']
  #allocation1 [shape = 'u32[144,128]{1,0:T(1,128)}', space=vmem, size = 0x12000, scoped, tag = 'internal scratch']
  %s0 = inlined_call_operand.vmem [shape: f32[2,8,8], index: 0, kind: input, shape index: {}]
  %s1 = inlined_call_operand.vmem [shape: f32[8,1], index: 1, kind: input, shape index: {}]
  %s2 = inlined_call_operand.vmem [shape: f32[8,1], index: 2, kind: input, shape index: {}]
  %s3 = inlined_call_operand.vmem [shape: f32[8,24], index: 3, kind: input, shape index: {}]
  %s4 = inlined_call_operand.vmem [shape: f32[8,1], index: 4, kind: input, shape index: {}]
  %s5 = inlined_call_operand.vmem [shape: f32[8,24], index: 5, kind: input, shape index: {}]
  %s6 = inlined_call_operand.vmem [shape: f32[8,1], index: 6, kind: input, shape index: {}]
  %s7 = inlined_call_operand.vmem [shape: f32[2,8,8], index: 7, kind: output, shape index: {}]
  %s8 = sld [smem:[#allocation0]]
  $region61: #{resnet1d_forward.10} parent=0
    _
  %s10 = ssub.s32 1, %s8
  %s11 = scalar_select 0, %s10, %s8
  loop: start=0, step=1, limit=4
  $region2: #{resnet1d_forward.10} parent=0 // loop_pre_header
    _
  $region3: #{resnet1d_forward.10} parent=0 // loop_header
    %s13 = sphi 0, %s17
    %p14 = scmp.ge.s32.totalorder %s13, 4
    %s23 = sphi 0, %s25
    %s26 = sphi 0, %s23
    %s27 = sphi 0, %s26
    %s43 = sphi 0, %s27
    %s47 = sphi 0, %s47
    %s49 = sphi 0, %s47
    %s50 = sphi 0, %s49
    %s64 = sphi 0, %s50
    %s68 = sphi 0, %s68
    %s70 = sphi 0, %s68
    %s71 = sphi 0, %s70
    %s85 = sphi 0, %s71
    %s89 = sphi 0, %s89
    %s91 = sphi 0, %s89
    %s92 = sphi 0, %s91
    %s106 = sphi 0, %s92
    %s110 = sphi 0, %s110
    %s112 = sphi 0, %s110
    %s113 = sphi 0, %s112
    %s127 = sphi 0, %s113
    %s131 = sphi 0, %s131
    %s133 = sphi 0, %s131
    %s134 = sphi 0, %s133
    %s148 = sphi 0, %s134
    %s152 = sphi 0, %s152
    %s154 = sphi 0, %s152
    %s155 = sphi 0, %s154
    %s169 = sphi 0, %s155
    %s175 = sphi 0, %s177
    %s178 = sphi 0, %s175
    %s179 = sphi 0, %s178
    %s195 = sphi 0, %s179
  $region4: #{resnet1d_forward.10} parent=0 // loop_header_branch
    %16 = sbr.rel (%p14) target = $region8
  $region5: #{resnet1d_forward.10} parent=0 // loop_body
    %s18 = ssub.s32 %s13, 1
    %s19 = ssub.s32 %s13, 2
    %s20 = sadd.s32 %s13, 1
    %s21 = ssub.s32 %s13, %s20
    %p22 = scmp.eq.s32.totalorder %s21, 0
    %s24 = sadd.s32 %s23, 1
    %s25 = scalar_select %p22, %s23, %s24
    %p28 = pneg %p22
    %p29 = scmp.eq.s32.totalorder %s13, 1
    %p30 = por %p28, %p29
    %p31 = scmp.ne.s32.totalorder %s23, %s26
    %p32 = scmp.eq.s32.totalorder %s13, 0
    %p33 = por %p31, %p32
    %p34 = scmp.ne.s32.totalorder %s23, %s26
    %p35 = scmp.eq.s32.totalorder %s18, 1
    %p36 = por %p34, %p35
    %p37 = scmp.ne.s32.totalorder %s26, %s27
    %p38 = scmp.eq.s32.totalorder %s18, 0
    %p39 = por %p37, %p38
    %p40 = scmp.ne.s32.totalorder %s26, %s27
    %p41 = scmp.eq.s32.totalorder %s19, 1
    %p42 = por %p40, %p41
    %p44 = scmp.ne.s32.totalorder %s27, %s43
    %p45 = scmp.eq.s32.totalorder %s19, 0
    %p46 = por %p44, %p45
    %s48 = sadd.s32 %s47, 1
    %p51 = scmp.eq.s32.totalorder %s13, 1
    %p52 = scmp.ne.s32.totalorder %s47, %s49
    %p53 = scmp.eq.s32.totalorder %s13, 0
    %p54 = por %p52, %p53
    %p55 = scmp.ne.s32.totalorder %s47, %s49
    %p56 = scmp.eq.s32.totalorder %s18, 1
    %p57 = por %p55, %p56
    %p58 = scmp.ne.s32.totalorder %s49, %s50
    %p59 = scmp.eq.s32.totalorder %s18, 0
    %p60 = por %p58, %p59
    %p61 = scmp.ne.s32.totalorder %s49, %s50
    %p62 = scmp.eq.s32.totalorder %s19, 1
    %p63 = por %p61, %p62
    %p65 = scmp.ne.s32.totalorder %s50, %s64
    %p66 = scmp.eq.s32.totalorder %s19, 0
    %p67 = por %p65, %p66
    %s69 = sadd.s32 %s68, 1
    %p72 = scmp.eq.s32.totalorder %s13, 1
    %p73 = scmp.ne.s32.totalorder %s68, %s70
    %p74 = scmp.eq.s32.totalorder %s13, 0
    %p75 = por %p73, %p74
    %p76 = scmp.ne.s32.totalorder %s68, %s70
    %p77 = scmp.eq.s32.totalorder %s18, 1
    %p78 = por %p76, %p77
    %p79 = scmp.ne.s32.totalorder %s70, %s71
    %p80 = scmp.eq.s32.totalorder %s18, 0
    %p81 = por %p79, %p80
    %p82 = scmp.ne.s32.totalorder %s70, %s71
    %p83 = scmp.eq.s32.totalorder %s19, 1
    %p84 = por %p82, %p83
    %p86 = scmp.ne.s32.totalorder %s71, %s85
    %p87 = scmp.eq.s32.totalorder %s19, 0
    %p88 = por %p86, %p87
    %s90 = sadd.s32 %s89, 1
    %p93 = scmp.eq.s32.totalorder %s13, 1
    %p94 = scmp.ne.s32.totalorder %s89, %s91
    %p95 = scmp.eq.s32.totalorder %s13, 0
    %p96 = por %p94, %p95
    %p97 = scmp.ne.s32.totalorder %s89, %s91
    %p98 = scmp.eq.s32.totalorder %s18, 1
    %p99 = por %p97, %p98
    %p100 = scmp.ne.s32.totalorder %s91, %s92
    %p101 = scmp.eq.s32.totalorder %s18, 0
    %p102 = por %p100, %p101
    %p103 = scmp.ne.s32.totalorder %s91, %s92
    %p104 = scmp.eq.s32.totalorder %s19, 1
    %p105 = por %p103, %p104
    %p107 = scmp.ne.s32.totalorder %s92, %s106
    %p108 = scmp.eq.s32.totalorder %s19, 0
    %p109 = por %p107, %p108
    %s111 = sadd.s32 %s110, 1
    %p114 = scmp.eq.s32.totalorder %s13, 1
    %p115 = scmp.ne.s32.totalorder %s110, %s112
    %p116 = scmp.eq.s32.totalorder %s13, 0
    %p117 = por %p115, %p116
    %p118 = scmp.ne.s32.totalorder %s110, %s112
    %p119 = scmp.eq.s32.totalorder %s18, 1
    %p120 = por %p118, %p119
    %p121 = scmp.ne.s32.totalorder %s112, %s113
    %p122 = scmp.eq.s32.totalorder %s18, 0
    %p123 = por %p121, %p122
    %p124 = scmp.ne.s32.totalorder %s112, %s113
    %p125 = scmp.eq.s32.totalorder %s19, 1
    %p126 = por %p124, %p125
    %p128 = scmp.ne.s32.totalorder %s113, %s127
    %p129 = scmp.eq.s32.totalorder %s19, 0
    %p130 = por %p128, %p129
    %s132 = sadd.s32 %s131, 1
    %p135 = scmp.eq.s32.totalorder %s13, 1
    %p136 = scmp.ne.s32.totalorder %s131, %s133
    %p137 = scmp.eq.s32.totalorder %s13, 0
    %p138 = por %p136, %p137
    %p139 = scmp.ne.s32.totalorder %s131, %s133
    %p140 = scmp.eq.s32.totalorder %s18, 1
    %p141 = por %p139, %p140
    %p142 = scmp.ne.s32.totalorder %s133, %s134
    %p143 = scmp.eq.s32.totalorder %s18, 0
    %p144 = por %p142, %p143
    %p145 = scmp.ne.s32.totalorder %s133, %s134
    %p146 = scmp.eq.s32.totalorder %s19, 1
    %p147 = por %p145, %p146
    %p149 = scmp.ne.s32.totalorder %s134, %s148
    %p150 = scmp.eq.s32.totalorder %s19, 0
    %p151 = por %p149, %p150
    %s153 = sadd.s32 %s152, 1
    %p156 = scmp.eq.s32.totalorder %s13, 1
    %p157 = scmp.ne.s32.totalorder %s152, %s154
    %p158 = scmp.eq.s32.totalorder %s13, 0
    %p159 = por %p157, %p158
    %p160 = scmp.ne.s32.totalorder %s152, %s154
    %p161 = scmp.eq.s32.totalorder %s18, 1
    %p162 = por %p160, %p161
    %p163 = scmp.ne.s32.totalorder %s154, %s155
    %p164 = scmp.eq.s32.totalorder %s18, 0
    %p165 = por %p163, %p164
    %p166 = scmp.ne.s32.totalorder %s154, %s155
    %p167 = scmp.eq.s32.totalorder %s19, 1
    %p168 = por %p166, %p167
    %p170 = scmp.ne.s32.totalorder %s155, %s169
    %p171 = scmp.eq.s32.totalorder %s19, 0
    %p172 = por %p170, %p171
    %s173 = ssub.s32 %s13, %s20
    %p174 = scmp.eq.s32.totalorder %s173, 0
    %s176 = sadd.s32 %s175, 1
    %s177 = scalar_select %p174, %s175, %s176
    %p180 = pneg %p174
    %p181 = scmp.eq.s32.totalorder %s13, 1
    %p182 = por %p180, %p181
    %p183 = scmp.ne.s32.totalorder %s175, %s178
    %p184 = scmp.eq.s32.totalorder %s13, 0
    %p185 = por %p183, %p184
    %p186 = scmp.ne.s32.totalorder %s175, %s178
    %p187 = scmp.eq.s32.totalorder %s18, 1
    %p188 = por %p186, %p187
    %p189 = scmp.ne.s32.totalorder %s178, %s179
    %p190 = scmp.eq.s32.totalorder %s18, 0
    %p191 = por %p189, %p190
    %p192 = scmp.ne.s32.totalorder %s178, %s179
    %p193 = scmp.eq.s32.totalorder %s19, 1
    %p194 = por %p192, %p193
    %p196 = scmp.ne.s32.totalorder %s179, %s195
    %p197 = scmp.eq.s32.totalorder %s19, 0
    %p198 = por %p196, %p197
    %p199 = scmp.le.s32.totalorder 1, %s13
    %p200 = scmp.lt.s32.totalorder %s13, 3
    %p201 = pnand %p199, %p200
    %p202 = pneg %p201
    // Predicated region
    $region9: #{resnet1d_forward.10} parent=5 // pred_check
      _
    $region10: #{resnet1d_forward.10} parent=5 // pred_check_branch
      %204 = sbr.rel (%p201) target = $region12
    $region11: #{resnet1d_forward.10} parent=5 // pred_region
      %s205 = ssub.s32 %s13, 1
      // Predicated region
      $region13: #{resnet1d_forward.10} parent=11 // pred_check
        %p206 = pneg %p60
      $region14: #{resnet1d_forward.10} parent=11 // pred_check_branch
        %208 = sbr.rel (%p206) target = $region16
      $region15: #{resnet1d_forward.10} parent=11 // pred_region
        _
      $region16: #{resnet1d_forward.10} parent=11 // pred_fallthru
        _
      // Predicated region
      $region17: #{resnet1d_forward.10} parent=11 // pred_check
        %p209 = pneg %p81
      $region18: #{resnet1d_forward.10} parent=11 // pred_check_branch
        %211 = sbr.rel (%p209) target = $region20
      $region19: #{resnet1d_forward.10} parent=11 // pred_region
        _
      $region20: #{resnet1d_forward.10} parent=11 // pred_fallthru
        _
      // Predicated region
      $region21: #{resnet1d_forward.10} parent=11 // pred_check
        %p212 = pneg %p102
      $region22: #{resnet1d_forward.10} parent=11 // pred_check_branch
        %214 = sbr.rel (%p212) target = $region24
      $region23: #{resnet1d_forward.10} parent=11 // pred_region
        _
      $region24: #{resnet1d_forward.10} parent=11 // pred_fallthru
        _
      // Predicated region
      $region25: #{resnet1d_forward.10} parent=11 // pred_check
        %p215 = pneg %p123
      $region26: #{resnet1d_forward.10} parent=11 // pred_check_branch
        %217 = sbr.rel (%p215) target = $region28
      $region27: #{resnet1d_forward.10} parent=11 // pred_region
        _
      $region28: #{resnet1d_forward.10} parent=11 // pred_fallthru
        _
      // Predicated region
      $region29: #{resnet1d_forward.10} parent=11 // pred_check
        %p218 = pneg %p144
      $region30: #{resnet1d_forward.10} parent=11 // pred_check_branch
        %220 = sbr.rel (%p218) target = $region32
      $region31: #{resnet1d_forward.10} parent=11 // pred_region
        _
      $region32: #{resnet1d_forward.10} parent=11 // pred_fallthru
        _
      // Predicated region
      $region33: #{resnet1d_forward.10} parent=11 // pred_check
        %p221 = pneg %p165
      $region34: #{resnet1d_forward.10} parent=11 // pred_check_branch
        %223 = sbr.rel (%p221) target = $region36
      $region35: #{resnet1d_forward.10} parent=11 // pred_region
        _
      $region36: #{resnet1d_forward.10} parent=11 // pred_fallthru
        _
    $region12: #{resnet1d_forward.10} parent=5 // pred_fallthru
      _
    %p224 = scmp.lt.s32.totalorder %s13, 2
    // Predicated region
    $region37: #{resnet1d_forward.10} parent=5 // pred_check
      %p225 = pneg %p224
    $region38: #{resnet1d_forward.10} parent=5 // pred_check_branch
      %227 = sbr.rel (%p225) target = $region40
    $region39: #{resnet1d_forward.10} parent=5 // pred_region
      // Predicated region
      $region41: #{resnet1d_forward.10} parent=39 // pred_check
        %p228 = pneg %p33
      $region42: #{resnet1d_forward.10} parent=39 // pred_check_branch
        %230 = sbr.rel (%p228) target = $region44
      $region43: #{resnet1d_forward.10} parent=39 // pred_region
        %p231 = scmp.lt.s32.totalorder %s13, 1
        %s232 = scalar_select %p231, %s13, 1
        %s233 = smul.addr %s232, 8
        %s234 = scalar_lea.vmem %s0, %s233
      $region44: #{resnet1d_forward.10} parent=39 // pred_fallthru
        _
    $region40: #{resnet1d_forward.10} parent=5 // pred_fallthru
      _
    %p235 = scmp.le.s32.totalorder 1, %s13
    %p236 = scmp.lt.s32.totalorder %s13, 3
    %p237 = pnand %p235, %p236
    %p238 = pneg %p237
    // Predicated region
    $region45: #{resnet1d_forward.10} parent=5 // pred_check
      _
    $region46: #{resnet1d_forward.10} parent=5 // pred_check_branch
      %240 = sbr.rel (%p237) target = $region48
    $region47: #{resnet1d_forward.10} parent=5 // pred_region
      %s241 = ssub.s32 %s13, 1
      %p242 = scmp.lt.s32.totalorder %s18, 1
      %s243 = scalar_select %p242, %s18, 1
      %s244 = smul.addr %s243, 8
      %s245 = scalar_lea.vmem %s0, %s244
      %p246 = pneg %p39
      %p247 = pneg %p36
      %p248 = pneg %p60
      %p249 = pneg %p57
      %p250 = pneg %p81
      %p251 = pneg %p78
      %p252 = pneg %p102
      %p253 = pneg %p99
      %p254 = pneg %p123
      %p255 = pneg %p120
      %p256 = pneg %p144
      %p257 = pneg %p141
      %p258 = pneg %p165
      %p259 = pneg %p162
      %p260 = pneg %p191
      %p261 = pneg %p188
      %p262 = scmp.lt.s32.totalorder %s18, 1
      %s263 = scalar_select %p262, %s18, 1
      %s264 = smul.addr %s263, 8
      %s265 = scalar_lea.vmem %s7, %s264
      %p266 = scmp.lt.s32.totalorder %s18, 1
      %s267 = scalar_select %p266, %s18, 1
      %s268 = smul.addr %s267, 8
      %s269 = scalar_lea.vmem %s0, %s268
      %p270 = scmp.lt.s32.totalorder %s18, 1
      %s271 = scalar_select %p270, %s18, 1
      %s272 = smul.addr %s271, 8
      %s273 = scalar_lea.vmem %s7, %s272
      %v274 = vld [vmem:[%s269] sm:$0xff]
      %v275 = vld [vmem:[%s1] sm:$0xff]
      %277 = vset.pattern.permute.xlu0 0
      %278 = vperm.xlu0 %277, %v275
      %v279 = vpop.permute.xlu0 %278
      %v281 = vmul.f32 %v274, %v279
      %v282 = vld [vmem:[%s2] sm:$0xff]
      %284 = vset.pattern.permute.xlu0 0
      %285 = vperm.xlu0 %284, %v282
      %v286 = vpop.permute.xlu0 %285
      %v288 = vadd.f32 %v281, %v286
      %v289 = vmax.f32 %v288, 0.0
      %v290 = vld [vmem:[%s3] sm:$0xff]
      %v291 = vld [vmem:[%s4] sm:$0xff]
      %293 = vrot.lane.b32.xlu0 %v289, 1
      %v294 = vpop.permute.xlu0 %293
      %vm296 = vcmask 7168
      %v297 = vsel %vm296, 0.0, %v294
      %vm298 = vcmask 72704
      %v299 = vsel %vm298, %v297, 0.0
      %301 = vrot.lane.b32.xlu0 %v299, 127
      %v302 = vpop.permute.xlu0 %301
      %304 = vrot.lane.b32.xlu0 %v299, 126
      %v305 = vpop.permute.xlu0 %304
      %308 = vset.pattern.permute.xlu0 0
      %309 = vperm.xlu0 %308, %v291
      %v310 = vpop.permute.xlu0 %309
      %vm312 = vcmask 195584
      %v314 = vsel %vm312, %v290, 0
      %316 = vmatprep.subr.mxu0 0.0
      %317 = vmatpush1.msra.mxu0 %v299
      %318 = vmatprep.subr.mxu0 0.0
      %319 = vmatpush1.msra.mxu0 %v302
      %320 = vmatprep.subr.mxu0 0.0
      %321 = vmatpush1.msra.mxu0 %v305
      %322 = vmatprep.subr.mxu0 0.0
      %323 = vmatpush1.msra.mxu0 0.0
      %324 = vmatprep.subr.mxu0 0.0
      %325 = vmatpush1.msra.mxu0 0.0
      %326 = vmatprep.subr.mxu0 0.0
      %327 = vmatpush1.msra.mxu0 0.0
      %328 = vmatprep.subr.mxu0 0.0
      %329 = vmatpush1.msra.mxu0 0.0
      %330 = vmatprep.subr.mxu0 0.0
      %331 = vmatpush1.msra.mxu0 0.0
      %332 = vmatprep.subr.mxu0 0.0
      %333 = vmatpush1.msra.mxu0 0.0
      %334 = vmatprep.subr.mxu0 0.0
      %335 = vmatpush1.msra.mxu0 0.0
      %336 = vmatprep.subr.mxu0 0.0
      %337 = vmatpush1.msra.mxu0 0.0
      %338 = vmatprep.subr.mxu0 0.0
      %339 = vmatpush1.msra.mxu0 0.0
      %340 = vmatprep.subr.mxu0 0.0
      %341 = vmatpush1.msra.mxu0 0.0
      %342 = vmatprep.subr.mxu0 0.0
      %343 = vmatpush1.msra.mxu0 0.0
      %344 = vmatprep.subr.mxu0 0.0
      %345 = vmatpush1.msra.mxu0 0.0
      %346 = vmatprep.subr.mxu0 0.0
      %347 = vmatpush1.msra.mxu0 0.0
      %348 = vmatprep.subr.mxu0 0.0
      %349 = vmatpush1.msra.mxu0 0.0
      %350 = vmatprep.subr.mxu0 0.0
      %351 = vmatpush1.msra.mxu0 0.0
      %352 = vmatprep.subr.mxu0 0.0
      %353 = vmatpush1.msra.mxu0 0.0
      %354 = vmatprep.subr.mxu0 0.0
      %355 = vmatpush1.msra.mxu0 0.0
      %356 = vmatprep.subr.mxu0 0.0
      %357 = vmatpush1.msra.mxu0 0.0
      %358 = vmatprep.subr.mxu0 0.0
      %359 = vmatpush1.msra.mxu0 0.0
      %360 = vmatprep.subr.mxu0 0.0
      %361 = vmatpush1.msra.mxu0 0.0
      %362 = vmatprep.subr.mxu0 0.0
      %363 = vmatpush1.msra.mxu0 0.0
      %364 = vmatprep.subr.mxu0 0.0
      %365 = vmatpush1.msra.mxu0 0.0
      %366 = vmatprep.subr.mxu0 0.0
      %367 = vmatpush1.msra.mxu0 0.0
      %368 = vmatprep.subr.mxu0 0.0
      %369 = vmatpush1.msra.mxu0 0.0
      %370 = vmatprep.subr.mxu0 0.0
      %371 = vmatpush1.msra.mxu0 0.0
      %372 = vmatprep.subr.mxu0 0.0
      %373 = vmatpush1.msra.mxu0 0.0
      %374 = vmatprep.subr.mxu0 0.0
      %375 = vmatpush1.msra.mxu0 0.0
      %376 = vmatprep.subr.mxu0 0.0
      %377 = vmatpush1.msra.mxu0 0.0
      %378 = vmatprep.subr.mxu0 0.0
      %379 = vmatpush1.msra.mxu0 0.0
      %380 = vmatprep.mubr.f32.mxu0 0.0
      %381 = vmatmul.mubr.f32.gmra.mrb[0].mxu0 %v314
      %v382 = vpop.f32.mrb[0].mxu0
      %v383 = vadd.f32 %v310, %v382
      %v384 = vpop.f32.mrb[0].mxu0
      %385 = vdwg.mxu0
      %v386 = vmax.f32 %v383, 0.0
      %v387 = vld [vmem:[%s5] sm:$0xff]
      %v388 = vld [vmem:[%s6] sm:$0xff]
      %390 = vrot.lane.b32.xlu0 %v386, 1
      %v391 = vpop.permute.xlu0 %390
      %v393 = vsel %vm296, 0.0, %v391
      %v394 = vsel %vm298, %v393, 0.0
      %396 = vrot.lane.b32.xlu0 %v394, 127
      %v397 = vpop.permute.xlu0 %396
      %399 = vrot.lane.b32.xlu0 %v394, 126
      %v400 = vpop.permute.xlu0 %399
      %403 = vset.pattern.permute.xlu0 0
      %404 = vperm.xlu0 %403, %v388
      %v405 = vpop.permute.xlu0 %404
      %v408 = vsel %vm312, %v387, 0
      %410 = vmatprep.subr.mxu0 0.0
      %411 = vmatpush1.msra.mxu0 %v394
      %412 = vmatprep.subr.mxu0 0.0
      %413 = vmatpush1.msra.mxu0 %v397
      %414 = vmatprep.subr.mxu0 0.0
      %415 = vmatpush1.msra.mxu0 %v400
      %416 = vmatprep.subr.mxu0 0.0
      %417 = vmatpush1.msra.mxu0 0.0
      %418 = vmatprep.subr.mxu0 0.0
      %419 = vmatpush1.msra.mxu0 0.0
      %420 = vmatprep.subr.mxu0 0.0
      %421 = vmatpush1.msra.mxu0 0.0
      %422 = vmatprep.subr.mxu0 0.0
      %423 = vmatpush1.msra.mxu0 0.0
      %424 = vmatprep.subr.mxu0 0.0
      %425 = vmatpush1.msra.mxu0 0.0
      %426 = vmatprep.subr.mxu0 0.0
      %427 = vmatpush1.msra.mxu0 0.0
      %428 = vmatprep.subr.mxu0 0.0
      %429 = vmatpush1.msra.mxu0 0.0
      %430 = vmatprep.subr.mxu0 0.0
      %431 = vmatpush1.msra.mxu0 0.0
      %432 = vmatprep.subr.mxu0 0.0
      %433 = vmatpush1.msra.mxu0 0.0
      %434 = vmatprep.subr.mxu0 0.0
      %435 = vmatpush1.msra.mxu0 0.0
      %436 = vmatprep.subr.mxu0 0.0
      %437 = vmatpush1.msra.mxu0 0.0
      %438 = vmatprep.subr.mxu0 0.0
      %439 = vmatpush1.msra.mxu0 0.0
      %440 = vmatprep.subr.mxu0 0.0
      %441 = vmatpush1.msra.mxu0 0.0
      %442 = vmatprep.subr.mxu0 0.0
      %443 = vmatpush1.msra.mxu0 0.0
      %444 = vmatprep.subr.mxu0 0.0
      %445 = vmatpush1.msra.mxu0 0.0
      %446 = vmatprep.subr.mxu0 0.0
      %447 = vmatpush1.msra.mxu0 0.0
      %448 = vmatprep.subr.mxu0 0.0
      %449 = vmatpush1.msra.mxu0 0.0
      %450 = vmatprep.subr.mxu0 0.0
      %451 = vmatpush1.msra.mxu0 0.0
      %452 = vmatprep.subr.mxu0 0.0
      %453 = vmatpush1.msra.mxu0 0.0
      %454 = vmatprep.subr.mxu0 0.0
      %455 = vmatpush1.msra.mxu0 0.0
      %456 = vmatprep.subr.mxu0 0.0
      %457 = vmatpush1.msra.mxu0 0.0
      %458 = vmatprep.subr.mxu0 0.0
      %459 = vmatpush1.msra.mxu0 0.0
      %460 = vmatprep.subr.mxu0 0.0
      %461 = vmatpush1.msra.mxu0 0.0
      %462 = vmatprep.subr.mxu0 0.0
      %463 = vmatpush1.msra.mxu0 0.0
      %464 = vmatprep.subr.mxu0 0.0
      %465 = vmatpush1.msra.mxu0 0.0
      %466 = vmatprep.subr.mxu0 0.0
      %467 = vmatpush1.msra.mxu0 0.0
      %468 = vmatprep.subr.mxu0 0.0
      %469 = vmatpush1.msra.mxu0 0.0
      %470 = vmatprep.subr.mxu0 0.0
      %471 = vmatpush1.msra.mxu0 0.0
      %472 = vmatprep.subr.mxu0 0.0
      %473 = vmatpush1.msra.mxu0 0.0
      %474 = vmatprep.mubr.f32.mxu0 0.0
      %475 = vmatmul.mubr.f32.gmra.mrb[0].mxu0 %v408
      %v476 = vpop.f32.mrb[0].mxu0
      %v477 = vadd.f32 %v405, %v476
      %v478 = vpop.f32.mrb[0].mxu0
      %479 = vdwg.mxu0
      %v480 = vadd.f32 %v477, %v274
      %vm481 = vcmask 64512
      %482 = vst.msk [vmem:[%s273] sm:$0xff] %vm481, %v480
      %p483 = scmp.lt.s32.totalorder %s18, 1
      %s484 = scalar_select %p483, %s18, 1
      %s485 = smul.addr %s484, 8
      %s486 = scalar_lea.vmem %s7, %s485
      // Predicated region
      $region49: #{resnet1d_forward.10} parent=47 // pred_check
        %p487 = pneg %p188
      $region50: #{resnet1d_forward.10} parent=47 // pred_check_branch
        %489 = sbr.rel (%p487) target = $region52
      $region51: #{resnet1d_forward.10} parent=47 // pred_region
        _
      $region52: #{resnet1d_forward.10} parent=47 // pred_fallthru
        _
    $region48: #{resnet1d_forward.10} parent=5 // pred_fallthru
      _
    %p490 = scmp.le.s32.totalorder 2, %s13
    // Predicated region
    $region53: #{resnet1d_forward.10} parent=5 // pred_check
      %p491 = pneg %p490
    $region54: #{resnet1d_forward.10} parent=5 // pred_check_branch
      %493 = sbr.rel (%p491) target = $region56
    $region55: #{resnet1d_forward.10} parent=5 // pred_region
      %s494 = ssub.s32 %s13, 2
      // Predicated region
      $region57: #{resnet1d_forward.10} parent=55 // pred_check
        %p495 = pneg %p194
      $region58: #{resnet1d_forward.10} parent=55 // pred_check_branch
        %497 = sbr.rel (%p495) target = $region60
      $region59: #{resnet1d_forward.10} parent=55 // pred_region
        %p498 = scmp.lt.s32.totalorder %s19, 1
        %s499 = scalar_select %p498, %s19, 1
        %s500 = smul.addr %s499, 8
        %s501 = scalar_lea.vmem %s7, %s500
      $region60: #{resnet1d_forward.10} parent=55 // pred_fallthru
        _
    $region56: #{resnet1d_forward.10} parent=5 // pred_fallthru
      _
  $region6: #{resnet1d_forward.10} parent=0 // loop_footer
    %s17 = sadd.s32 1, %s13
  $region7: #{resnet1d_forward.10} parent=0 // loop_footer_branch
    %12 = sbr.rel target = $region3
  $region8: #{resnet1d_forward.10} parent=0 // loop_exit
    _

// kernel: resnet1d_forward.9
$region0: #{resnet1d_forward.9}
  #allocation0 [shape = 'u32[]', space=smem, size = 0x4, offset = 0x4, fixed_abs, tag = 'smem constant byte address 0x4 - core index']
  #allocation1 [shape = 'u32[144,128]{1,0:T(1,128)}', space=vmem, size = 0x12000, scoped, tag = 'internal scratch']
  %s0 = inlined_call_operand.vmem [shape: f32[2,8,16], index: 0, kind: input, shape index: {}]
  %s1 = inlined_call_operand.vmem [shape: f32[8,1], index: 1, kind: input, shape index: {}]
  %s2 = inlined_call_operand.vmem [shape: f32[8,1], index: 2, kind: input, shape index: {}]
  %s3 = inlined_call_operand.vmem [shape: f32[8,24], index: 3, kind: input, shape index: {}]
  %s4 = inlined_call_operand.vmem [shape: f32[8,1], index: 4, kind: input, shape index: {}]
  %s5 = inlined_call_operand.vmem [shape: f32[8,24], index: 5, kind: input, shape index: {}]
  %s6 = inlined_call_operand.vmem [shape: f32[8,1], index: 6, kind: input, shape index: {}]
  %s7 = inlined_call_operand.vmem [shape: f32[15,8], index: 7, kind: input, shape index: {}]
  %s8 = inlined_call_operand.vmem [shape: f32[2,17,8], index: 8, kind: input, shape index: {}]
  %s9 = inlined_call_operand.vmem [shape: f32[2,8,8], index: 9, kind: output, shape index: {}]
  %s10 = sld [smem:[#allocation0]]
  $region69: #{resnet1d_forward.9} parent=0
    _
  %s12 = ssub.s32 1, %s10
  %s13 = scalar_select 0, %s12, %s10
  loop: start=0, step=1, limit=4
  $region2: #{resnet1d_forward.9} parent=0 // loop_pre_header
    _
  $region3: #{resnet1d_forward.9} parent=0 // loop_header
    %s15 = sphi 0, %s19
    %p16 = scmp.ge.s32.totalorder %s15, 4
    %s25 = sphi 0, %s27
    %s28 = sphi 0, %s25
    %s29 = sphi 0, %s28
    %s45 = sphi 0, %s29
    %s49 = sphi 0, %s49
    %s51 = sphi 0, %s49
    %s52 = sphi 0, %s51
    %s66 = sphi 0, %s52
    %s70 = sphi 0, %s70
    %s72 = sphi 0, %s70
    %s73 = sphi 0, %s72
    %s87 = sphi 0, %s73
    %s91 = sphi 0, %s91
    %s93 = sphi 0, %s91
    %s94 = sphi 0, %s93
    %s108 = sphi 0, %s94
    %s112 = sphi 0, %s112
    %s114 = sphi 0, %s112
    %s115 = sphi 0, %s114
    %s129 = sphi 0, %s115
    %s133 = sphi 0, %s133
    %s135 = sphi 0, %s133
    %s136 = sphi 0, %s135
    %s150 = sphi 0, %s136
    %s154 = sphi 0, %s154
    %s156 = sphi 0, %s154
    %s157 = sphi 0, %s156
    %s171 = sphi 0, %s157
    %s175 = sphi 0, %s175
    %s177 = sphi 0, %s175
    %s178 = sphi 0, %s177
    %s192 = sphi 0, %s178
    %s196 = sphi 0, %s196
    %s198 = sphi 0, %s196
    %s199 = sphi 0, %s198
    %s213 = sphi 0, %s199
    %s219 = sphi 0, %s221
    %s222 = sphi 0, %s219
    %s223 = sphi 0, %s222
    %s239 = sphi 0, %s223
  $region4: #{resnet1d_forward.9} parent=0 // loop_header_branch
    %18 = sbr.rel (%p16) target = $region8
  $region5: #{resnet1d_forward.9} parent=0 // loop_body
    %s20 = ssub.s32 %s15, 1
    %s21 = ssub.s32 %s15, 2
    %s22 = sadd.s32 %s15, 1
    %s23 = ssub.s32 %s15, %s22
    %p24 = scmp.eq.s32.totalorder %s23, 0
    %s26 = sadd.s32 %s25, 1
    %s27 = scalar_select %p24, %s25, %s26
    %p30 = pneg %p24
    %p31 = scmp.eq.s32.totalorder %s15, 1
    %p32 = por %p30, %p31
    %p33 = scmp.ne.s32.totalorder %s25, %s28
    %p34 = scmp.eq.s32.totalorder %s15, 0
    %p35 = por %p33, %p34
    %p36 = scmp.ne.s32.totalorder %s25, %s28
    %p37 = scmp.eq.s32.totalorder %s20, 1
    %p38 = por %p36, %p37
    %p39 = scmp.ne.s32.totalorder %s28, %s29
    %p40 = scmp.eq.s32.totalorder %s20, 0
    %p41 = por %p39, %p40
    %p42 = scmp.ne.s32.totalorder %s28, %s29
    %p43 = scmp.eq.s32.totalorder %s21, 1
    %p44 = por %p42, %p43
    %p46 = scmp.ne.s32.totalorder %s29, %s45
    %p47 = scmp.eq.s32.totalorder %s21, 0
    %p48 = por %p46, %p47
    %s50 = sadd.s32 %s49, 1
    %p53 = scmp.eq.s32.totalorder %s15, 1
    %p54 = scmp.ne.s32.totalorder %s49, %s51
    %p55 = scmp.eq.s32.totalorder %s15, 0
    %p56 = por %p54, %p55
    %p57 = scmp.ne.s32.totalorder %s49, %s51
    %p58 = scmp.eq.s32.totalorder %s20, 1
    %p59 = por %p57, %p58
    %p60 = scmp.ne.s32.totalorder %s51, %s52
    %p61 = scmp.eq.s32.totalorder %s20, 0
    %p62 = por %p60, %p61
    %p63 = scmp.ne.s32.totalorder %s51, %s52
    %p64 = scmp.eq.s32.totalorder %s21, 1
    %p65 = por %p63, %p64
    %p67 = scmp.ne.s32.totalorder %s52, %s66
    %p68 = scmp.eq.s32.totalorder %s21, 0
    %p69 = por %p67, %p68
    %s71 = sadd.s32 %s70, 1
    %p74 = scmp.eq.s32.totalorder %s15, 1
    %p75 = scmp.ne.s32.totalorder %s70, %s72
    %p76 = scmp.eq.s32.totalorder %s15, 0
    %p77 = por %p75, %p76
    %p78 = scmp.ne.s32.totalorder %s70, %s72
    %p79 = scmp.eq.s32.totalorder %s20, 1
    %p80 = por %p78, %p79
    %p81 = scmp.ne.s32.totalorder %s72, %s73
    %p82 = scmp.eq.s32.totalorder %s20, 0
    %p83 = por %p81, %p82
    %p84 = scmp.ne.s32.totalorder %s72, %s73
    %p85 = scmp.eq.s32.totalorder %s21, 1
    %p86 = por %p84, %p85
    %p88 = scmp.ne.s32.totalorder %s73, %s87
    %p89 = scmp.eq.s32.totalorder %s21, 0
    %p90 = por %p88, %p89
    %s92 = sadd.s32 %s91, 1
    %p95 = scmp.eq.s32.totalorder %s15, 1
    %p96 = scmp.ne.s32.totalorder %s91, %s93
    %p97 = scmp.eq.s32.totalorder %s15, 0
    %p98 = por %p96, %p97
    %p99 = scmp.ne.s32.totalorder %s91, %s93
    %p100 = scmp.eq.s32.totalorder %s20, 1
    %p101 = por %p99, %p100
    %p102 = scmp.ne.s32.totalorder %s93, %s94
    %p103 = scmp.eq.s32.totalorder %s20, 0
    %p104 = por %p102, %p103
    %p105 = scmp.ne.s32.totalorder %s93, %s94
    %p106 = scmp.eq.s32.totalorder %s21, 1
    %p107 = por %p105, %p106
    %p109 = scmp.ne.s32.totalorder %s94, %s108
    %p110 = scmp.eq.s32.totalorder %s21, 0
    %p111 = por %p109, %p110
    %s113 = sadd.s32 %s112, 1
    %p116 = scmp.eq.s32.totalorder %s15, 1
    %p117 = scmp.ne.s32.totalorder %s112, %s114
    %p118 = scmp.eq.s32.totalorder %s15, 0
    %p119 = por %p117, %p118
    %p120 = scmp.ne.s32.totalorder %s112, %s114
    %p121 = scmp.eq.s32.totalorder %s20, 1
    %p122 = por %p120, %p121
    %p123 = scmp.ne.s32.totalorder %s114, %s115
    %p124 = scmp.eq.s32.totalorder %s20, 0
    %p125 = por %p123, %p124
    %p126 = scmp.ne.s32.totalorder %s114, %s115
    %p127 = scmp.eq.s32.totalorder %s21, 1
    %p128 = por %p126, %p127
    %p130 = scmp.ne.s32.totalorder %s115, %s129
    %p131 = scmp.eq.s32.totalorder %s21, 0
    %p132 = por %p130, %p131
    %s134 = sadd.s32 %s133, 1
    %p137 = scmp.eq.s32.totalorder %s15, 1
    %p138 = scmp.ne.s32.totalorder %s133, %s135
    %p139 = scmp.eq.s32.totalorder %s15, 0
    %p140 = por %p138, %p139
    %p141 = scmp.ne.s32.totalorder %s133, %s135
    %p142 = scmp.eq.s32.totalorder %s20, 1
    %p143 = por %p141, %p142
    %p144 = scmp.ne.s32.totalorder %s135, %s136
    %p145 = scmp.eq.s32.totalorder %s20, 0
    %p146 = por %p144, %p145
    %p147 = scmp.ne.s32.totalorder %s135, %s136
    %p148 = scmp.eq.s32.totalorder %s21, 1
    %p149 = por %p147, %p148
    %p151 = scmp.ne.s32.totalorder %s136, %s150
    %p152 = scmp.eq.s32.totalorder %s21, 0
    %p153 = por %p151, %p152
    %s155 = sadd.s32 %s154, 1
    %p158 = scmp.eq.s32.totalorder %s15, 1
    %p159 = scmp.ne.s32.totalorder %s154, %s156
    %p160 = scmp.eq.s32.totalorder %s15, 0
    %p161 = por %p159, %p160
    %p162 = scmp.ne.s32.totalorder %s154, %s156
    %p163 = scmp.eq.s32.totalorder %s20, 1
    %p164 = por %p162, %p163
    %p165 = scmp.ne.s32.totalorder %s156, %s157
    %p166 = scmp.eq.s32.totalorder %s20, 0
    %p167 = por %p165, %p166
    %p168 = scmp.ne.s32.totalorder %s156, %s157
    %p169 = scmp.eq.s32.totalorder %s21, 1
    %p170 = por %p168, %p169
    %p172 = scmp.ne.s32.totalorder %s157, %s171
    %p173 = scmp.eq.s32.totalorder %s21, 0
    %p174 = por %p172, %p173
    %s176 = sadd.s32 %s175, 1
    %p179 = scmp.eq.s32.totalorder %s15, 1
    %p180 = scmp.ne.s32.totalorder %s175, %s177
    %p181 = scmp.eq.s32.totalorder %s15, 0
    %p182 = por %p180, %p181
    %p183 = scmp.ne.s32.totalorder %s175, %s177
    %p184 = scmp.eq.s32.totalorder %s20, 1
    %p185 = por %p183, %p184
    %p186 = scmp.ne.s32.totalorder %s177, %s178
    %p187 = scmp.eq.s32.totalorder %s20, 0
    %p188 = por %p186, %p187
    %p189 = scmp.ne.s32.totalorder %s177, %s178
    %p190 = scmp.eq.s32.totalorder %s21, 1
    %p191 = por %p189, %p190
    %p193 = scmp.ne.s32.totalorder %s178, %s192
    %p194 = scmp.eq.s32.totalorder %s21, 0
    %p195 = por %p193, %p194
    %s197 = sadd.s32 %s196, 1
    %p200 = scmp.eq.s32.totalorder %s15, 1
    %p201 = scmp.ne.s32.totalorder %s196, %s198
    %p202 = scmp.eq.s32.totalorder %s15, 0
    %p203 = por %p201, %p202
    %p204 = scmp.ne.s32.totalorder %s196, %s198
    %p205 = scmp.eq.s32.totalorder %s20, 1
    %p206 = por %p204, %p205
    %p207 = scmp.ne.s32.totalorder %s198, %s199
    %p208 = scmp.eq.s32.totalorder %s20, 0
    %p209 = por %p207, %p208
    %p210 = scmp.ne.s32.totalorder %s198, %s199
    %p211 = scmp.eq.s32.totalorder %s21, 1
    %p212 = por %p210, %p211
    %p214 = scmp.ne.s32.totalorder %s199, %s213
    %p215 = scmp.eq.s32.totalorder %s21, 0
    %p216 = por %p214, %p215
    %s217 = ssub.s32 %s15, %s22
    %p218 = scmp.eq.s32.totalorder %s217, 0
    %s220 = sadd.s32 %s219, 1
    %s221 = scalar_select %p218, %s219, %s220
    %p224 = pneg %p218
    %p225 = scmp.eq.s32.totalorder %s15, 1
    %p226 = por %p224, %p225
    %p227 = scmp.ne.s32.totalorder %s219, %s222
    %p228 = scmp.eq.s32.totalorder %s15, 0
    %p229 = por %p227, %p228
    %p230 = scmp.ne.s32.totalorder %s219, %s222
    %p231 = scmp.eq.s32.totalorder %s20, 1
    %p232 = por %p230, %p231
    %p233 = scmp.ne.s32.totalorder %s222, %s223
    %p234 = scmp.eq.s32.totalorder %s20, 0
    %p235 = por %p233, %p234
    %p236 = scmp.ne.s32.totalorder %s222, %s223
    %p237 = scmp.eq.s32.totalorder %s21, 1
    %p238 = por %p236, %p237
    %p240 = scmp.ne.s32.totalorder %s223, %s239
    %p241 = scmp.eq.s32.totalorder %s21, 0
    %p242 = por %p240, %p241
    %p243 = scmp.le.s32.totalorder 1, %s15
    %p244 = scmp.lt.s32.totalorder %s15, 3
    %p245 = pnand %p243, %p244
    %p246 = pneg %p245
    // Predicated region
    $region9: #{resnet1d_forward.9} parent=5 // pred_check
      _
    $region10: #{resnet1d_forward.9} parent=5 // pred_check_branch
      %248 = sbr.rel (%p245) target = $region12
    $region11: #{resnet1d_forward.9} parent=5 // pred_region
      %s249 = ssub.s32 %s15, 1
      // Predicated region
      $region13: #{resnet1d_forward.9} parent=11 // pred_check
        %p250 = pneg %p62
      $region14: #{resnet1d_forward.9} parent=11 // pred_check_branch
        %252 = sbr.rel (%p250) target = $region16
      $region15: #{resnet1d_forward.9} parent=11 // pred_region
        _
      $region16: #{resnet1d_forward.9} parent=11 // pred_fallthru
        _
      // Predicated region
      $region17: #{resnet1d_forward.9} parent=11 // pred_check
        %p253 = pneg %p83
      $region18: #{resnet1d_forward.9} parent=11 // pred_check_branch
        %255 = sbr.rel (%p253) target = $region20
      $region19: #{resnet1d_forward.9} parent=11 // pred_region
        _
      $region20: #{resnet1d_forward.9} parent=11 // pred_fallthru
        _
      // Predicated region
      $region21: #{resnet1d_forward.9} parent=11 // pred_check
        %p256 = pneg %p104
      $region22: #{resnet1d_forward.9} parent=11 // pred_check_branch
        %258 = sbr.rel (%p256) target = $region24
      $region23: #{resnet1d_forward.9} parent=11 // pred_region
        _
      $region24: #{resnet1d_forward.9} parent=11 // pred_fallthru
        _
      // Predicated region
      $region25: #{resnet1d_forward.9} parent=11 // pred_check
        %p259 = pneg %p125
      $region26: #{resnet1d_forward.9} parent=11 // pred_check_branch
        %261 = sbr.rel (%p259) target = $region28
      $region27: #{resnet1d_forward.9} parent=11 // pred_region
        _
      $region28: #{resnet1d_forward.9} parent=11 // pred_fallthru
        _
      // Predicated region
      $region29: #{resnet1d_forward.9} parent=11 // pred_check
        %p262 = pneg %p146
      $region30: #{resnet1d_forward.9} parent=11 // pred_check_branch
        %264 = sbr.rel (%p262) target = $region32
      $region31: #{resnet1d_forward.9} parent=11 // pred_region
        _
      $region32: #{resnet1d_forward.9} parent=11 // pred_fallthru
        _
      // Predicated region
      $region33: #{resnet1d_forward.9} parent=11 // pred_check
        %p265 = pneg %p167
      $region34: #{resnet1d_forward.9} parent=11 // pred_check_branch
        %267 = sbr.rel (%p265) target = $region36
      $region35: #{resnet1d_forward.9} parent=11 // pred_region
        _
      $region36: #{resnet1d_forward.9} parent=11 // pred_fallthru
        _
      // Predicated region
      $region37: #{resnet1d_forward.9} parent=11 // pred_check
        %p268 = pneg %p188
      $region38: #{resnet1d_forward.9} parent=11 // pred_check_branch
        %270 = sbr.rel (%p268) target = $region40
      $region39: #{resnet1d_forward.9} parent=11 // pred_region
        _
      $region40: #{resnet1d_forward.9} parent=11 // pred_fallthru
        _
      // Predicated region
      $region41: #{resnet1d_forward.9} parent=11 // pred_check
        %p271 = pneg %p209
      $region42: #{resnet1d_forward.9} parent=11 // pred_check_branch
        %273 = sbr.rel (%p271) target = $region44
      $region43: #{resnet1d_forward.9} parent=11 // pred_region
        _
      $region44: #{resnet1d_forward.9} parent=11 // pred_fallthru
        _
    $region12: #{resnet1d_forward.9} parent=5 // pred_fallthru
      _
    %p274 = scmp.lt.s32.totalorder %s15, 2
    // Predicated region
    $region45: #{resnet1d_forward.9} parent=5 // pred_check
      %p275 = pneg %p274
    $region46: #{resnet1d_forward.9} parent=5 // pred_check_branch
      %277 = sbr.rel (%p275) target = $region48
    $region47: #{resnet1d_forward.9} parent=5 // pred_region
      // Predicated region
      $region49: #{resnet1d_forward.9} parent=47 // pred_check
        %p278 = pneg %p35
      $region50: #{resnet1d_forward.9} parent=47 // pred_check_branch
        %280 = sbr.rel (%p278) target = $region52
      $region51: #{resnet1d_forward.9} parent=47 // pred_region
        %p281 = scmp.lt.s32.totalorder %s15, 1
        %s282 = scalar_select %p281, %s15, 1
        %s283 = smul.addr %s282, 8
        %s284 = scalar_lea.vmem %s0, %s283
      $region52: #{resnet1d_forward.9} parent=47 // pred_fallthru
        _
    $region48: #{resnet1d_forward.9} parent=5 // pred_fallthru
      _
    %p285 = scmp.le.s32.totalorder 1, %s15
    %p286 = scmp.lt.s32.totalorder %s15, 3
    %p287 = pnand %p285, %p286
    %p288 = pneg %p287
    // Predicated region
    $region53: #{resnet1d_forward.9} parent=5 // pred_check
      _
    $region54: #{resnet1d_forward.9} parent=5 // pred_check_branch
      %290 = sbr.rel (%p287) target = $region56
    $region55: #{resnet1d_forward.9} parent=5 // pred_region
      %s291 = ssub.s32 %s15, 1
      %p292 = scmp.lt.s32.totalorder %s20, 1
      %s293 = scalar_select %p292, %s20, 1
      %s294 = smul.addr %s293, 8
      %s295 = scalar_lea.vmem %s0, %s294
      %p296 = pneg %p41
      %p297 = pneg %p38
      %p298 = pneg %p62
      %p299 = pneg %p59
      %p300 = pneg %p83
      %p301 = pneg %p80
      %p302 = pneg %p104
      %p303 = pneg %p101
      %p304 = pneg %p125
      %p305 = pneg %p122
      %p306 = pneg %p146
      %p307 = pneg %p143
      %p308 = pneg %p167
      %p309 = pneg %p164
      %p310 = pneg %p188
      %p311 = pneg %p185
      %p312 = pneg %p209
      %p313 = pneg %p206
      %p314 = pneg %p235
      %p315 = pneg %p232
      %p316 = scmp.lt.s32.totalorder %s20, 1
      %s317 = scalar_select %p316, %s20, 1
      %s318 = smul.addr %s317, 8
      %s319 = scalar_lea.vmem %s9, %s318
      %p320 = scmp.lt.s32.totalorder %s20, 1
      %s321 = scalar_select %p320, %s20, 1
      %s322 = smul.addr %s321, 8
      %s323 = scalar_lea.vmem %s0, %s322
      %p324 = scmp.lt.s32.totalorder %s20, 1
      %s325 = scalar_select %p324, %s20, 1
      %s326 = smul.addr %s325, 8
      %s327 = scalar_lea.vmem %s9, %s326
      %v328 = vld [vmem:[%s323] sm:$0xff]
      %v329 = vld [vmem:[%s1] sm:$0xff]
      %331 = vset.pattern.permute.xlu0 0
      %332 = vperm.xlu0 %331, %v329
      %v333 = vpop.permute.xlu0 %332
      %v335 = vmul.f32 %v328, %v333
      %v336 = vld [vmem:[%s2] sm:$0xff]
      %338 = vset.pattern.permute.xlu0 0
      %339 = vperm.xlu0 %338, %v336
      %v340 = vpop.permute.xlu0 %339
      %v342 = vadd.f32 %v335, %v340
      %v343 = vmax.f32 %v342, 0.0
      %v344 = vld [vmem:[%s3] sm:$0xff]
      %v345 = vld [vmem:[%s4] sm:$0xff]
      %vm346 = vcmask 130048
      %v347 = vsel %vm346, %v343, 0.0
      %349 = vrot.lane.b32.xlu0 %v347, 127
      %v350 = vpop.permute.xlu0 %349
      %352 = vrot.lane.b32.xlu0 %v347, 126
      %v353 = vpop.permute.xlu0 %352
      %356 = vset.pattern.permute.xlu0 0
      %357 = vperm.xlu0 %356, %v345
      %v358 = vpop.permute.xlu0 %357
      %vm360 = vcmask 195584
      %v362 = vsel %vm360, %v344, 0
      %364 = vmatprep.subr.mxu0 0.0
      %365 = vmatpush1.msra.mxu0 %v347
      %366 = vmatprep.subr.mxu0 0.0
      %367 = vmatpush1.msra.mxu0 %v350
      %368 = vmatprep.subr.mxu0 0.0
      %369 = vmatpush1.msra.mxu0 %v353
      %370 = vmatprep.subr.mxu0 0.0
      %371 = vmatpush1.msra.mxu0 0.0
      %372 = vmatprep.subr.mxu0 0.0
      %373 = vmatpush1.msra.mxu0 0.0
      %374 = vmatprep.subr.mxu0 0.0
      %375 = vmatpush1.msra.mxu0 0.0
      %376 = vmatprep.subr.mxu0 0.0
      %377 = vmatpush1.msra.mxu0 0.0
      %378 = vmatprep.subr.mxu0 0.0
      %379 = vmatpush1.msra.mxu0 0.0
      %380 = vmatprep.subr.mxu0 0.0
      %381 = vmatpush1.msra.mxu0 0.0
      %382 = vmatprep.subr.mxu0 0.0
      %383 = vmatpush1.msra.mxu0 0.0
      %384 = vmatprep.subr.mxu0 0.0
      %385 = vmatpush1.msra.mxu0 0.0
      %386 = vmatprep.subr.mxu0 0.0
      %387 = vmatpush1.msra.mxu0 0.0
      %388 = vmatprep.subr.mxu0 0.0
      %389 = vmatpush1.msra.mxu0 0.0
      %390 = vmatprep.subr.mxu0 0.0
      %391 = vmatpush1.msra.mxu0 0.0
      %392 = vmatprep.subr.mxu0 0.0
      %393 = vmatpush1.msra.mxu0 0.0
      %394 = vmatprep.subr.mxu0 0.0
      %395 = vmatpush1.msra.mxu0 0.0
      %396 = vmatprep.subr.mxu0 0.0
      %397 = vmatpush1.msra.mxu0 0.0
      %398 = vmatprep.subr.mxu0 0.0
      %399 = vmatpush1.msra.mxu0 0.0
      %400 = vmatprep.subr.mxu0 0.0
      %401 = vmatpush1.msra.mxu0 0.0
      %402 = vmatprep.subr.mxu0 0.0
      %403 = vmatpush1.msra.mxu0 0.0
      %404 = vmatprep.subr.mxu0 0.0
      %405 = vmatpush1.msra.mxu0 0.0
      %406 = vmatprep.subr.mxu0 0.0
      %407 = vmatpush1.msra.mxu0 0.0
      %408 = vmatprep.subr.mxu0 0.0
      %409 = vmatpush1.msra.mxu0 0.0
      %410 = vmatprep.subr.mxu0 0.0
      %411 = vmatpush1.msra.mxu0 0.0
      %412 = vmatprep.subr.mxu0 0.0
      %413 = vmatpush1.msra.mxu0 0.0
      %414 = vmatprep.subr.mxu0 0.0
      %415 = vmatpush1.msra.mxu0 0.0
      %416 = vmatprep.subr.mxu0 0.0
      %417 = vmatpush1.msra.mxu0 0.0
      %418 = vmatprep.subr.mxu0 0.0
      %419 = vmatpush1.msra.mxu0 0.0
      %420 = vmatprep.subr.mxu0 0.0
      %421 = vmatpush1.msra.mxu0 0.0
      %422 = vmatprep.subr.mxu0 0.0
      %423 = vmatpush1.msra.mxu0 0.0
      %424 = vmatprep.subr.mxu0 0.0
      %425 = vmatpush1.msra.mxu0 0.0
      %426 = vmatprep.subr.mxu0 0.0
      %427 = vmatpush1.msra.mxu0 0.0
      %428 = vmatprep.mubr.f32.mxu0 0.0
      %429 = vmatmul.mubr.f32.gmra.mrb[0].mxu0 %v362
      %v430 = vpop.f32.mrb[0].mxu0
      %v431 = vadd.f32 %v358, %v430
      %v432 = vpop.f32.mrb[0].mxu0
      %433 = vdwg.mxu0
      %v434 = vld [vmem:[%s7] sm:$0xff]
      %v435 = vld [vmem:[%s7 + $0x8] sm:$0x7f]
      %vm436 = vcmask 121856
      %v438 = vsel %vm436, %v431, 0
      %vm440 = vcmask 1046528
      %v442 = vsel %vm440, %v435, 0
      %444 = vmatprep.subr.mxu0 0.0
      %445 = vmatpush1.msra.mxu0 %v434
      %446 = vmatprep.subr.mxu0 0.0
      %447 = vmatpush1.msra.mxu0 %v442
      %448 = vmatprep.subr.mxu0 0.0
      %449 = vmatpush1.msra.mxu0 0.0
      %450 = vmatprep.subr.mxu0 0.0
      %451 = vmatpush1.msra.mxu0 0.0
      %452 = vmatprep.subr.mxu0 0.0
      %453 = vmatpush1.msra.mxu0 0.0
      %454 = vmatprep.subr.mxu0 0.0
      %455 = vmatpush1.msra.mxu0 0.0
      %456 = vmatprep.subr.mxu0 0.0
      %457 = vmatpush1.msra.mxu0 0.0
      %458 = vmatprep.subr.mxu0 0.0
      %459 = vmatpush1.msra.mxu0 0.0
      %460 = vmatprep.subr.mxu0 0.0
      %461 = vmatpush1.msra.mxu0 0.0
      %462 = vmatprep.subr.mxu0 0.0
      %463 = vmatpush1.msra.mxu0 0.0
      %464 = vmatprep.subr.mxu0 0.0
      %465 = vmatpush1.msra.mxu0 0.0
      %466 = vmatprep.subr.mxu0 0.0
      %467 = vmatpush1.msra.mxu0 0.0
      %468 = vmatprep.subr.mxu0 0.0
      %469 = vmatpush1.msra.mxu0 0.0
      %470 = vmatprep.subr.mxu0 0.0
      %471 = vmatpush1.msra.mxu0 0.0
      %472 = vmatprep.subr.mxu0 0.0
      %473 = vmatpush1.msra.mxu0 0.0
      %474 = vmatprep.subr.mxu0 0.0
      %475 = vmatpush1.msra.mxu0 0.0
      %476 = vmatprep.subr.mxu0 0.0
      %477 = vmatpush1.msra.mxu0 0.0
      %478 = vmatprep.subr.mxu0 0.0
      %479 = vmatpush1.msra.mxu0 0.0
      %480 = vmatprep.subr.mxu0 0.0
      %481 = vmatpush1.msra.mxu0 0.0
      %482 = vmatprep.subr.mxu0 0.0
      %483 = vmatpush1.msra.mxu0 0.0
      %484 = vmatprep.subr.mxu0 0.0
      %485 = vmatpush1.msra.mxu0 0.0
      %486 = vmatprep.subr.mxu0 0.0
      %487 = vmatpush1.msra.mxu0 0.0
      %488 = vmatprep.subr.mxu0 0.0
      %489 = vmatpush1.msra.mxu0 0.0
      %490 = vmatprep.subr.mxu0 0.0
      %491 = vmatpush1.msra.mxu0 0.0
      %492 = vmatprep.subr.mxu0 0.0
      %493 = vmatpush1.msra.mxu0 0.0
      %494 = vmatprep.subr.mxu0 0.0
      %495 = vmatpush1.msra.mxu0 0.0
      %496 = vmatprep.subr.mxu0 0.0
      %497 = vmatpush1.msra.mxu0 0.0
      %498 = vmatprep.subr.mxu0 0.0
      %499 = vmatpush1.msra.mxu0 0.0
      %500 = vmatprep.subr.mxu0 0.0
      %501 = vmatpush1.msra.mxu0 0.0
      %502 = vmatprep.subr.mxu0 0.0
      %503 = vmatpush1.msra.mxu0 0.0
      %504 = vmatprep.subr.mxu0 0.0
      %505 = vmatpush1.msra.mxu0 0.0
      %506 = vmatprep.subr.mxu0 0.0
      %507 = vmatpush1.msra.mxu0 0.0
      %508 = vmatprep.mubr.f32.mxu0 0.0
      %509 = vmatmul.mubr.f32.gmra.mrb[0].mxu0 %v438
      %v510 = vpop.f32.mrb[0].mxu0
      %v511 = vadd.f32 0.0, %v510
      %v512 = vpop.f32.mrb[0].mxu0
      %513 = vdwg.mxu0
      %v514 = vmax.f32 %v511, 0.0
      %v515 = vld [vmem:[%s5] sm:$0xff]
      %v516 = vld [vmem:[%s6] sm:$0xff]
      %518 = vrot.lane.b32.xlu0 %v514, 1
      %v519 = vpop.permute.xlu0 %518
      %vm521 = vcmask 7168
      %v522 = vsel %vm521, 0.0, %v519
      %vm523 = vcmask 72704
      %v524 = vsel %vm523, %v522, 0.0
      %526 = vrot.lane.b32.xlu0 %v524, 127
      %v527 = vpop.permute.xlu0 %526
      %529 = vrot.lane.b32.xlu0 %v524, 126
      %v530 = vpop.permute.xlu0 %529
      %533 = vset.pattern.permute.xlu0 0
      %534 = vperm.xlu0 %533, %v516
      %v535 = vpop.permute.xlu0 %534
      %v538 = vsel %vm360, %v515, 0
      %540 = vmatprep.subr.mxu0 0.0
      %541 = vmatpush1.msra.mxu0 %v524
      %542 = vmatprep.subr.mxu0 0.0
      %543 = vmatpush1.msra.mxu0 %v527
      %544 = vmatprep.subr.mxu0 0.0
      %545 = vmatpush1.msra.mxu0 %v530
      %546 = vmatprep.subr.mxu0 0.0
      %547 = vmatpush1.msra.mxu0 0.0
      %548 = vmatprep.subr.mxu0 0.0
      %549 = vmatpush1.msra.mxu0 0.0
      %550 = vmatprep.subr.mxu0 0.0
      %551 = vmatpush1.msra.mxu0 0.0
      %552 = vmatprep.subr.mxu0 0.0
      %553 = vmatpush1.msra.mxu0 0.0
      %554 = vmatprep.subr.mxu0 0.0
      %555 = vmatpush1.msra.mxu0 0.0
      %556 = vmatprep.subr.mxu0 0.0
      %557 = vmatpush1.msra.mxu0 0.0
      %558 = vmatprep.subr.mxu0 0.0
      %559 = vmatpush1.msra.mxu0 0.0
      %560 = vmatprep.subr.mxu0 0.0
      %561 = vmatpush1.msra.mxu0 0.0
      %562 = vmatprep.subr.mxu0 0.0
      %563 = vmatpush1.msra.mxu0 0.0
      %564 = vmatprep.subr.mxu0 0.0
      %565 = vmatpush1.msra.mxu0 0.0
      %566 = vmatprep.subr.mxu0 0.0
      %567 = vmatpush1.msra.mxu0 0.0
      %568 = vmatprep.subr.mxu0 0.0
      %569 = vmatpush1.msra.mxu0 0.0
      %570 = vmatprep.subr.mxu0 0.0
      %571 = vmatpush1.msra.mxu0 0.0
      %572 = vmatprep.subr.mxu0 0.0
      %573 = vmatpush1.msra.mxu0 0.0
      %574 = vmatprep.subr.mxu0 0.0
      %575 = vmatpush1.msra.mxu0 0.0
      %576 = vmatprep.subr.mxu0 0.0
      %577 = vmatpush1.msra.mxu0 0.0
      %578 = vmatprep.subr.mxu0 0.0
      %579 = vmatpush1.msra.mxu0 0.0
      %580 = vmatprep.subr.mxu0 0.0
      %581 = vmatpush1.msra.mxu0 0.0
      %582 = vmatprep.subr.mxu0 0.0
      %583 = vmatpush1.msra.mxu0 0.0
      %584 = vmatprep.subr.mxu0 0.0
      %585 = vmatpush1.msra.mxu0 0.0
      %586 = vmatprep.subr.mxu0 0.0
      %587 = vmatpush1.msra.mxu0 0.0
      %588 = vmatprep.subr.mxu0 0.0
      %589 = vmatpush1.msra.mxu0 0.0
      %590 = vmatprep.subr.mxu0 0.0
      %591 = vmatpush1.msra.mxu0 0.0
      %592 = vmatprep.subr.mxu0 0.0
      %593 = vmatpush1.msra.mxu0 0.0
      %594 = vmatprep.subr.mxu0 0.0
      %595 = vmatpush1.msra.mxu0 0.0
      %596 = vmatprep.subr.mxu0 0.0
      %597 = vmatpush1.msra.mxu0 0.0
      %598 = vmatprep.subr.mxu0 0.0
      %599 = vmatpush1.msra.mxu0 0.0
      %600 = vmatprep.subr.mxu0 0.0
      %601 = vmatpush1.msra.mxu0 0.0
      %602 = vmatprep.subr.mxu0 0.0
      %603 = vmatpush1.msra.mxu0 0.0
      %604 = vmatprep.mubr.f32.mxu0 0.0
      %605 = vmatmul.mubr.f32.gmra.mrb[0].mxu0 %v538
      %v606 = vpop.f32.mrb[0].mxu0
      %v607 = vadd.f32 %v535, %v606
      %v608 = vpop.f32.mrb[0].mxu0
      %609 = vdwg.mxu0
      %v610 = vsel %vm346, %v328, 0.0
      %v611 = vld [vmem:[%s8] sm:$0xff]
      %v612 = vld [vmem:[%s8 + $0x8] sm:$0xff]
      %v613 = vld [vmem:[%s8 + $0x10] sm:$0x1]
      %vm614 = vcmask 138240
      %v616 = vsel %vm614, %v610, 0
      %vm618 = vcmask 1040384
      %v620 = vsel %vm618, %v613, 0
      %622 = vmatprep.subr.mxu0 0.0
      %623 = vmatpush1.msra.mxu0 %v611
      %624 = vmatprep.subr.mxu0 0.0
      %625 = vmatpush1.msra.mxu0 %v612
      %626 = vmatprep.subr.mxu0 0.0
      %627 = vmatpush1.msra.mxu0 %v620
      %628 = vmatprep.subr.mxu0 0.0
      %629 = vmatpush1.msra.mxu0 0.0
      %630 = vmatprep.subr.mxu0 0.0
      %631 = vmatpush1.msra.mxu0 0.0
      %632 = vmatprep.subr.mxu0 0.0
      %633 = vmatpush1.msra.mxu0 0.0
      %634 = vmatprep.subr.mxu0 0.0
      %635 = vmatpush1.msra.mxu0 0.0
      %636 = vmatprep.subr.mxu0 0.0
      %637 = vmatpush1.msra.mxu0 0.0
      %638 = vmatprep.subr.mxu0 0.0
      %639 = vmatpush1.msra.mxu0 0.0
      %640 = vmatprep.subr.mxu0 0.0
      %641 = vmatpush1.msra.mxu0 0.0
      %642 = vmatprep.subr.mxu0 0.0
      %643 = vmatpush1.msra.mxu0 0.0
      %644 = vmatprep.subr.mxu0 0.0
      %645 = vmatpush1.msra.mxu0 0.0
      %646 = vmatprep.subr.mxu0 0.0
      %647 = vmatpush1.msra.mxu0 0.0
      %648 = vmatprep.subr.mxu0 0.0
      %649 = vmatpush1.msra.mxu0 0.0
      %650 = vmatprep.subr.mxu0 0.0
      %651 = vmatpush1.msra.mxu0 0.0
      %652 = vmatprep.subr.mxu0 0.0
      %653 = vmatpush1.msra.mxu0 0.0
      %654 = vmatprep.subr.mxu0 0.0
      %655 = vmatpush1.msra.mxu0 0.0
      %656 = vmatprep.subr.mxu0 0.0
      %657 = vmatpush1.msra.mxu0 0.0
      %658 = vmatprep.subr.mxu0 0.0
      %659 = vmatpush1.msra.mxu0 0.0
      %660 = vmatprep.subr.mxu0 0.0
      %661 = vmatpush1.msra.mxu0 0.0
      %662 = vmatprep.subr.mxu0 0.0
      %663 = vmatpush1.msra.mxu0 0.0
      %664 = vmatprep.subr.mxu0 0.0
      %665 = vmatpush1.msra.mxu0 0.0
      %666 = vmatprep.subr.mxu0 0.0
      %667 = vmatpush1.msra.mxu0 0.0
      %668 = vmatprep.subr.mxu0 0.0
      %669 = vmatpush1.msra.mxu0 0.0
      %670 = vmatprep.subr.mxu0 0.0
      %671 = vmatpush1.msra.mxu0 0.0
      %672 = vmatprep.subr.mxu0 0.0
      %673 = vmatpush1.msra.mxu0 0.0
      %674 = vmatprep.subr.mxu0 0.0
      %675 = vmatpush1.msra.mxu0 0.0
      %676 = vmatprep.subr.mxu0 0.0
      %677 = vmatpush1.msra.mxu0 0.0
      %678 = vmatprep.subr.mxu0 0.0
      %679 = vmatpush1.msra.mxu0 0.0
      %680 = vmatprep.subr.mxu0 0.0
      %681 = vmatpush1.msra.mxu0 0.0
      %682 = vmatprep.subr.mxu0 0.0
      %683 = vmatpush1.msra.mxu0 0.0
      %684 = vmatprep.subr.mxu0 0.0
      %685 = vmatpush1.msra.mxu0 0.0
      %686 = vmatprep.mubr.f32.mxu0 0.0
      %687 = vmatmul.mubr.f32.gmra.mrb[0].mxu0 %v616
      %v688 = vpop.f32.mrb[0].mxu0
      %v689 = vadd.f32 0.0, %v688
      %v690 = vpop.f32.mrb[0].mxu0
      %691 = vdwg.mxu0
      %s692 = scalar_lea.vmem %s8, 24
      %v693 = vld [vmem:[%s692] sm:$0xff]
      %v694 = vld [vmem:[%s692 + $0x8] sm:$0xff]
      %v695 = vld [vmem:[%s692 + $0x10] sm:$0x1]
      %v697 = vsel %vm618, %v695, 0
      %699 = vmatprep.subr.mxu0 0.0
      %700 = vmatpush1.msra.mxu0 %v693
      %701 = vmatprep.subr.mxu0 0.0
      %702 = vmatpush1.msra.mxu0 %v694
      %703 = vmatprep.subr.mxu0 0.0
      %704 = vmatpush1.msra.mxu0 %v697
      %705 = vmatprep.subr.mxu0 0.0
      %706 = vmatpush1.msra.mxu0 0.0
      %707 = vmatprep.subr.mxu0 0.0
      %708 = vmatpush1.msra.mxu0 0.0
      %709 = vmatprep.subr.mxu0 0.0
      %710 = vmatpush1.msra.mxu0 0.0
      %711 = vmatprep.subr.mxu0 0.0
      %712 = vmatpush1.msra.mxu0 0.0
      %713 = vmatprep.subr.mxu0 0.0
      %714 = vmatpush1.msra.mxu0 0.0
      %715 = vmatprep.subr.mxu0 0.0
      %716 = vmatpush1.msra.mxu0 0.0
      %717 = vmatprep.subr.mxu0 0.0
      %718 = vmatpush1.msra.mxu0 0.0
      %719 = vmatprep.subr.mxu0 0.0
      %720 = vmatpush1.msra.mxu0 0.0
      %721 = vmatprep.subr.mxu0 0.0
      %722 = vmatpush1.msra.mxu0 0.0
      %723 = vmatprep.subr.mxu0 0.0
      %724 = vmatpush1.msra.mxu0 0.0
      %725 = vmatprep.subr.mxu0 0.0
      %726 = vmatpush1.msra.mxu0 0.0
      %727 = vmatprep.subr.mxu0 0.0
      %728 = vmatpush1.msra.mxu0 0.0
      %729 = vmatprep.subr.mxu0 0.0
      %730 = vmatpush1.msra.mxu0 0.0
      %731 = vmatprep.subr.mxu0 0.0
      %732 = vmatpush1.msra.mxu0 0.0
      %733 = vmatprep.subr.mxu0 0.0
      %734 = vmatpush1.msra.mxu0 0.0
      %735 = vmatprep.subr.mxu0 0.0
      %736 = vmatpush1.msra.mxu0 0.0
      %737 = vmatprep.subr.mxu0 0.0
      %738 = vmatpush1.msra.mxu0 0.0
      %739 = vmatprep.subr.mxu0 0.0
      %740 = vmatpush1.msra.mxu0 0.0
      %741 = vmatprep.subr.mxu0 0.0
      %742 = vmatpush1.msra.mxu0 0.0
      %743 = vmatprep.subr.mxu0 0.0
      %744 = vmatpush1.msra.mxu0 0.0
      %745 = vmatprep.subr.mxu0 0.0
      %746 = vmatpush1.msra.mxu0 0.0
      %747 = vmatprep.subr.mxu0 0.0
      %748 = vmatpush1.msra.mxu0 0.0
      %749 = vmatprep.subr.mxu0 0.0
      %750 = vmatpush1.msra.mxu0 0.0
      %751 = vmatprep.subr.mxu0 0.0
      %752 = vmatpush1.msra.mxu0 0.0
      %753 = vmatprep.subr.mxu0 0.0
      %754 = vmatpush1.msra.mxu0 0.0
      %755 = vmatprep.subr.mxu0 0.0
      %756 = vmatpush1.msra.mxu0 0.0
      %757 = vmatprep.subr.mxu0 0.0
      %758 = vmatpush1.msra.mxu0 0.0
      %759 = vmatprep.subr.mxu0 0.0
      %760 = vmatpush1.msra.mxu0 0.0
      %761 = vmatprep.subr.mxu0 0.0
      %762 = vmatpush1.msra.mxu0 0.0
      %763 = vmatprep.mubr.f32.mxu0 0.0
      %764 = vmatmul.mubr.f32.gmra.mrb[0].mxu0 %v616
      %v765 = vpop.f32.mrb[0].mxu0
      %v766 = vadd.f32 0.0, %v765
      %v767 = vpop.f32.mrb[0].mxu0
      %768 = vdwg.mxu0
      %v769 = vmax.f32 %v689, %v766
      %v770 = vadd.f32 %v607, %v769
      %vm771 = vcmask 64512
      %772 = vst.msk [vmem:[%s327] sm:$0xff] %vm771, %v770
      %p773 = scmp.lt.s32.totalorder %s20, 1
      %s774 = scalar_select %p773, %s20, 1
      %s775 = smul.addr %s774, 8
      %s776 = scalar_lea.vmem %s9, %s775
      // Predicated region
      $region57: #{resnet1d_forward.9} parent=55 // pred_check
        %p777 = pneg %p232
      $region58: #{resnet1d_forward.9} parent=55 // pred_check_branch
        %779 = sbr.rel (%p777) target = $region60
      $region59: #{resnet1d_forward.9} parent=55 // pred_region
        _
      $region60: #{resnet1d_forward.9} parent=55 // pred_fallthru
        _
    $region56: #{resnet1d_forward.9} parent=5 // pred_fallthru
      _
    %p780 = scmp.le.s32.totalorder 2, %s15
    // Predicated region
    $region61: #{resnet1d_forward.9} parent=5 // pred_check
      %p781 = pneg %p780
    $region62: #{resnet1d_forward.9} parent=5 // pred_check_branch
      %783 = sbr.rel (%p781) target = $region64
    $region63: #{resnet1d_forward.9} parent=5 // pred_region
      %s784 = ssub.s32 %s15, 2
      // Predicated region
      $region65: #{resnet1d_forward.9} parent=63 // pred_check
        %p785 = pneg %p238
      $region66: #{resnet1d_forward.9} parent=63 // pred_check_branch
        %787 = sbr.rel (%p785) target = $region68
      $region67: #{resnet1d_forward.9} parent=63 // pred_region
        %p788 = scmp.lt.s32.totalorder %s21, 1
        %s789 = scalar_select %p788, %s21, 1
        %s790 = smul.addr %s789, 8
        %s791 = scalar_lea.vmem %s9, %s790
      $region68: #{resnet1d_forward.9} parent=63 // pred_fallthru
        _
    $region64: #{resnet1d_forward.9} parent=5 // pred_fallthru
      _
  $region6: #{resnet1d_forward.9} parent=0 // loop_footer
    %s19 = sadd.s32 1, %s15
  $region7: #{resnet1d_forward.9} parent=0 // loop_footer_branch
    %14 = sbr.rel target = $region3
  $region8: #{resnet1d_forward.9} parent=0 // loop_exit
    _

// kernel: resnet1d_forward.13
$region0: #{resnet1d_forward.13}
  #allocation0 [shape = 'u32[]', space=smem, size = 0x4, offset = 0x4, fixed_abs, tag = 'smem constant byte address 0x4 - core index']
  #allocation1 [shape = 'u32[144,128]{1,0:T(1,128)}', space=vmem, size = 0x12000, scoped, tag = 'internal scratch']
  %s0 = inlined_call_operand.vmem [shape: f32[2,16,4], index: 0, kind: input, shape index: {}]
  %s1 = inlined_call_operand.vmem [shape: f32[16,1], index: 1, kind: input, shape index: {}]
  %s2 = inlined_call_operand.vmem [shape: f32[16,1], index: 2, kind: input, shape index: {}]
  %s3 = inlined_call_operand.vmem [shape: f32[5,16], index: 3, kind: input, shape index: {}]
  %s4 = inlined_call_operand.vmem [shape: f32[5,1], index: 4, kind: input, shape index: {}]
  %s5 = inlined_call_operand.vmem [shape: f32[2,5,1], index: 5, kind: output, shape index: {0}]
  %s6 = inlined_call_operand.vmem [shape: f32[2,16,1], index: 6, kind: output, shape index: {1}]
  %7 = xla_tuple %s5, %s6
  %s8 = sld [smem:[#allocation0]]
  $region61: #{resnet1d_forward.13} parent=0
    _
  %s10 = ssub.s32 1, %s8
  %s11 = scalar_select 0, %s10, %s8
  loop: start=0, step=1, limit=4
  $region2: #{resnet1d_forward.13} parent=0 // loop_pre_header
    _
  $region3: #{resnet1d_forward.13} parent=0 // loop_header
    %s13 = sphi 0, %s17
    %p14 = scmp.ge.s32.totalorder %s13, 4
    %s23 = sphi 0, %s25
    %s26 = sphi 0, %s23
    %s27 = sphi 0, %s26
    %s43 = sphi 0, %s27
    %s47 = sphi 0, %s47
    %s49 = sphi 0, %s47
    %s50 = sphi 0, %s49
    %s64 = sphi 0, %s50
    %s68 = sphi 0, %s68
    %s70 = sphi 0, %s68
    %s71 = sphi 0, %s70
    %s85 = sphi 0, %s71
    %s89 = sphi 0, %s89
    %s91 = sphi 0, %s89
    %s92 = sphi 0, %s91
    %s106 = sphi 0, %s92
    %s110 = sphi 0, %s110
    %s112 = sphi 0, %s110
    %s113 = sphi 0, %s112
    %s127 = sphi 0, %s113
    %s133 = sphi 0, %s135
    %s136 = sphi 0, %s133
    %s137 = sphi 0, %s136
    %s153 = sphi 0, %s137
    %s159 = sphi 0, %s161
    %s162 = sphi 0, %s159
    %s163 = sphi 0, %s162
    %s179 = sphi 0, %s163
  $region4: #{resnet1d_forward.13} parent=0 // loop_header_branch
    %16 = sbr.rel (%p14) target = $region8
  $region5: #{resnet1d_forward.13} parent=0 // loop_body
    %s18 = ssub.s32 %s13, 1
    %s19 = ssub.s32 %s13, 2
    %s20 = sadd.s32 %s13, 1
    %s21 = ssub.s32 %s13, %s20
    %p22 = scmp.eq.s32.totalorder %s21, 0
    %s24 = sadd.s32 %s23, 1
    %s25 = scalar_select %p22, %s23, %s24
    %p28 = pneg %p22
    %p29 = scmp.eq.s32.totalorder %s13, 1
    %p30 = por %p28, %p29
    %p31 = scmp.ne.s32.totalorder %s23, %s26
    %p32 = scmp.eq.s32.totalorder %s13, 0
    %p33 = por %p31, %p32
    %p34 = scmp.ne.s32.totalorder %s23, %s26
    %p35 = scmp.eq.s32.totalorder %s18, 1
    %p36 = por %p34, %p35
    %p37 = scmp.ne.s32.totalorder %s26, %s27
    %p38 = scmp.eq.s32.totalorder %s18, 0
    %p39 = por %p37, %p38
    %p40 = scmp.ne.s32.totalorder %s26, %s27
    %p41 = scmp.eq.s32.totalorder %s19, 1
    %p42 = por %p40, %p41
    %p44 = scmp.ne.s32.totalorder %s27, %s43
    %p45 = scmp.eq.s32.totalorder %s19, 0
    %p46 = por %p44, %p45
    %s48 = sadd.s32 %s47, 1
    %p51 = scmp.eq.s32.totalorder %s13, 1
    %p52 = scmp.ne.s32.totalorder %s47, %s49
    %p53 = scmp.eq.s32.totalorder %s13, 0
    %p54 = por %p52, %p53
    %p55 = scmp.ne.s32.totalorder %s47, %s49
    %p56 = scmp.eq.s32.totalorder %s18, 1
    %p57 = por %p55, %p56
    %p58 = scmp.ne.s32.totalorder %s49, %s50
    %p59 = scmp.eq.s32.totalorder %s18, 0
    %p60 = por %p58, %p59
    %p61 = scmp.ne.s32.totalorder %s49, %s50
    %p62 = scmp.eq.s32.totalorder %s19, 1
    %p63 = por %p61, %p62
    %p65 = scmp.ne.s32.totalorder %s50, %s64
    %p66 = scmp.eq.s32.totalorder %s19, 0
    %p67 = por %p65, %p66
    %s69 = sadd.s32 %s68, 1
    %p72 = scmp.eq.s32.totalorder %s13, 1
    %p73 = scmp.ne.s32.totalorder %s68, %s70
    %p74 = scmp.eq.s32.totalorder %s13, 0
    %p75 = por %p73, %p74
    %p76 = scmp.ne.s32.totalorder %s68, %s70
    %p77 = scmp.eq.s32.totalorder %s18, 1
    %p78 = por %p76, %p77
    %p79 = scmp.ne.s32.totalorder %s70, %s71
    %p80 = scmp.eq.s32.totalorder %s18, 0
    %p81 = por %p79, %p80
    %p82 = scmp.ne.s32.totalorder %s70, %s71
    %p83 = scmp.eq.s32.totalorder %s19, 1
    %p84 = por %p82, %p83
    %p86 = scmp.ne.s32.totalorder %s71, %s85
    %p87 = scmp.eq.s32.totalorder %s19, 0
    %p88 = por %p86, %p87
    %s90 = sadd.s32 %s89, 1
    %p93 = scmp.eq.s32.totalorder %s13, 1
    %p94 = scmp.ne.s32.totalorder %s89, %s91
    %p95 = scmp.eq.s32.totalorder %s13, 0
    %p96 = por %p94, %p95
    %p97 = scmp.ne.s32.totalorder %s89, %s91
    %p98 = scmp.eq.s32.totalorder %s18, 1
    %p99 = por %p97, %p98
    %p100 = scmp.ne.s32.totalorder %s91, %s92
    %p101 = scmp.eq.s32.totalorder %s18, 0
    %p102 = por %p100, %p101
    %p103 = scmp.ne.s32.totalorder %s91, %s92
    %p104 = scmp.eq.s32.totalorder %s19, 1
    %p105 = por %p103, %p104
    %p107 = scmp.ne.s32.totalorder %s92, %s106
    %p108 = scmp.eq.s32.totalorder %s19, 0
    %p109 = por %p107, %p108
    %s111 = sadd.s32 %s110, 1
    %p114 = scmp.eq.s32.totalorder %s13, 1
    %p115 = scmp.ne.s32.totalorder %s110, %s112
    %p116 = scmp.eq.s32.totalorder %s13, 0
    %p117 = por %p115, %p116
    %p118 = scmp.ne.s32.totalorder %s110, %s112
    %p119 = scmp.eq.s32.totalorder %s18, 1
    %p120 = por %p118, %p119
    %p121 = scmp.ne.s32.totalorder %s112, %s113
    %p122 = scmp.eq.s32.totalorder %s18, 0
    %p123 = por %p121, %p122
    %p124 = scmp.ne.s32.totalorder %s112, %s113
    %p125 = scmp.eq.s32.totalorder %s19, 1
    %p126 = por %p124, %p125
    %p128 = scmp.ne.s32.totalorder %s113, %s127
    %p129 = scmp.eq.s32.totalorder %s19, 0
    %p130 = por %p128, %p129
    %s131 = ssub.s32 %s13, %s20
    %p132 = scmp.eq.s32.totalorder %s131, 0
    %s134 = sadd.s32 %s133, 1
    %s135 = scalar_select %p132, %s133, %s134
    %p138 = pneg %p132
    %p139 = scmp.eq.s32.totalorder %s13, 1
    %p140 = por %p138, %p139
    %p141 = scmp.ne.s32.totalorder %s133, %s136
    %p142 = scmp.eq.s32.totalorder %s13, 0
    %p143 = por %p141, %p142
    %p144 = scmp.ne.s32.totalorder %s133, %s136
    %p145 = scmp.eq.s32.totalorder %s18, 1
    %p146 = por %p144, %p145
    %p147 = scmp.ne.s32.totalorder %s136, %s137
    %p148 = scmp.eq.s32.totalorder %s18, 0
    %p149 = por %p147, %p148
    %p150 = scmp.ne.s32.totalorder %s136, %s137
    %p151 = scmp.eq.s32.totalorder %s19, 1
    %p152 = por %p150, %p151
    %p154 = scmp.ne.s32.totalorder %s137, %s153
    %p155 = scmp.eq.s32.totalorder %s19, 0
    %p156 = por %p154, %p155
    %s157 = ssub.s32 %s13, %s20
    %p158 = scmp.eq.s32.totalorder %s157, 0
    %s160 = sadd.s32 %s159, 1
    %s161 = scalar_select %p158, %s159, %s160
    %p164 = pneg %p158
    %p165 = scmp.eq.s32.totalorder %s13, 1
    %p166 = por %p164, %p165
    %p167 = scmp.ne.s32.totalorder %s159, %s162
    %p168 = scmp.eq.s32.totalorder %s13, 0
    %p169 = por %p167, %p168
    %p170 = scmp.ne.s32.totalorder %s159, %s162
    %p171 = scmp.eq.s32.totalorder %s18, 1
    %p172 = por %p170, %p171
    %p173 = scmp.ne.s32.totalorder %s162, %s163
    %p174 = scmp.eq.s32.totalorder %s18, 0
    %p175 = por %p173, %p174
    %p176 = scmp.ne.s32.totalorder %s162, %s163
    %p177 = scmp.eq.s32.totalorder %s19, 1
    %p178 = por %p176, %p177
    %p180 = scmp.ne.s32.totalorder %s163, %s179
    %p181 = scmp.eq.s32.totalorder %s19, 0
    %p182 = por %p180, %p181
    %p183 = scmp.le.s32.totalorder 1, %s13
    %p184 = scmp.lt.s32.totalorder %s13, 3
    %p185 = pnand %p183, %p184
    %p186 = pneg %p185
    // Predicated region
    $region9: #{resnet1d_forward.13} parent=5 // pred_check
      _
    $region10: #{resnet1d_forward.13} parent=5 // pred_check_branch
      %188 = sbr.rel (%p185) target = $region12
    $region11: #{resnet1d_forward.13} parent=5 // pred_region
      %s189 = ssub.s32 %s13, 1
      // Predicated region
      $region13: #{resnet1d_forward.13} parent=11 // pred_check
        %p190 = pneg %p60
      $region14: #{resnet1d_forward.13} parent=11 // pred_check_branch
        %192 = sbr.rel (%p190) target = $region16
      $region15: #{resnet1d_forward.13} parent=11 // pred_region
        _
      $region16: #{resnet1d_forward.13} parent=11 // pred_fallthru
        _
      // Predicated region
      $region17: #{resnet1d_forward.13} parent=11 // pred_check
        %p193 = pneg %p81
      $region18: #{resnet1d_forward.13} parent=11 // pred_check_branch
        %195 = sbr.rel (%p193) target = $region20
      $region19: #{resnet1d_forward.13} parent=11 // pred_region
        _
      $region20: #{resnet1d_forward.13} parent=11 // pred_fallthru
        _
      // Predicated region
      $region21: #{resnet1d_forward.13} parent=11 // pred_check
        %p196 = pneg %p102
      $region22: #{resnet1d_forward.13} parent=11 // pred_check_branch
        %198 = sbr.rel (%p196) target = $region24
      $region23: #{resnet1d_forward.13} parent=11 // pred_region
        _
      $region24: #{resnet1d_forward.13} parent=11 // pred_fallthru
        _
      // Predicated region
      $region25: #{resnet1d_forward.13} parent=11 // pred_check
        %p199 = pneg %p123
      $region26: #{resnet1d_forward.13} parent=11 // pred_check_branch
        %201 = sbr.rel (%p199) target = $region28
      $region27: #{resnet1d_forward.13} parent=11 // pred_region
        _
      $region28: #{resnet1d_forward.13} parent=11 // pred_fallthru
        _
    $region12: #{resnet1d_forward.13} parent=5 // pred_fallthru
      _
    %p202 = scmp.lt.s32.totalorder %s13, 2
    // Predicated region
    $region29: #{resnet1d_forward.13} parent=5 // pred_check
      %p203 = pneg %p202
    $region30: #{resnet1d_forward.13} parent=5 // pred_check_branch
      %205 = sbr.rel (%p203) target = $region32
    $region31: #{resnet1d_forward.13} parent=5 // pred_region
      // Predicated region
      $region33: #{resnet1d_forward.13} parent=31 // pred_check
        %p206 = pneg %p33
      $region34: #{resnet1d_forward.13} parent=31 // pred_check_branch
        %208 = sbr.rel (%p206) target = $region36
      $region35: #{resnet1d_forward.13} parent=31 // pred_region
        %p209 = scmp.lt.s32.totalorder %s13, 1
        %s210 = scalar_select %p209, %s13, 1
        %s211 = smul.addr %s210, 2
        %s212 = smul.addr %s211, 8
        %s213 = scalar_lea.vmem %s0, %s212
      $region36: #{resnet1d_forward.13} parent=31 // pred_fallthru
        _
    $region32: #{resnet1d_forward.13} parent=5 // pred_fallthru
      _
    %p214 = scmp.le.s32.totalorder 1, %s13
    %p215 = scmp.lt.s32.totalorder %s13, 3
    %p216 = pnand %p214, %p215
    %p217 = pneg %p216
    // Predicated region
    $region37: #{resnet1d_forward.13} parent=5 // pred_check
      _
    $region38: #{resnet1d_forward.13} parent=5 // pred_check_branch
      %219 = sbr.rel (%p216) target = $region40
    $region39: #{resnet1d_forward.13} parent=5 // pred_region
      %s220 = ssub.s32 %s13, 1
      %p221 = scmp.lt.s32.totalorder %s18, 1
      %s222 = scalar_select %p221, %s18, 1
      %s223 = smul.addr %s222, 2
      %s224 = smul.addr %s223, 8
      %s225 = scalar_lea.vmem %s0, %s224
      %p226 = pneg %p39
      %p227 = pneg %p36
      %p228 = pneg %p60
      %p229 = pneg %p57
      %p230 = pneg %p81
      %p231 = pneg %p78
      %p232 = pneg %p102
      %p233 = pneg %p99
      %p234 = pneg %p123
      %p235 = pneg %p120
      %p236 = pneg %p149
      %p237 = pneg %p146
      %p238 = scmp.lt.s32.totalorder %s18, 1
      %s239 = scalar_select %p238, %s18, 1
      %s240 = smul.addr %s239, 8
      %s241 = scalar_lea.vmem %s5, %s240
      %p242 = pneg %p175
      %p243 = pneg %p172
      %p244 = scmp.lt.s32.totalorder %s18, 1
      %s245 = scalar_select %p244, %s18, 1
      %s246 = smul.addr %s245, 2
      %s247 = smul.addr %s246, 8
      %s248 = scalar_lea.vmem %s6, %s247
      %p249 = scmp.lt.s32.totalorder %s18, 1
      %s250 = scalar_select %p249, %s18, 1
      %s251 = smul.addr %s250, 2
      %s252 = smul.addr %s251, 8
      %s253 = scalar_lea.vmem %s0, %s252
      %p254 = scmp.lt.s32.totalorder %s18, 1
      %s255 = scalar_select %p254, %s18, 1
      %s256 = smul.addr %s255, 8
      %s257 = scalar_lea.vmem %s5, %s256
      %p258 = scmp.lt.s32.totalorder %s18, 1
      %s259 = scalar_select %p258, %s18, 1
      %s260 = smul.addr %s259, 2
      %s261 = smul.addr %s260, 8
      %s262 = scalar_lea.vmem %s6, %s261
      %v263 = vld [vmem:[%s253] sm:$0xff]
      %v264 = vld [vmem:[%s253 + $0x8] sm:$0xff]
      %v265 = vld [vmem:[%s1] sm:$0xff]
      %v266 = vld [vmem:[%s1 + $0x8] sm:$0xff]
      %268 = vset.pattern.permute.xlu0 0
      %269 = vperm.xlu0 %268, %v265
      %v270 = vpop.permute.xlu0 %269
      %273 = vset.pattern.permute.xlu0 0
      %274 = vperm.xlu0 %273, %v266
      %v275 = vpop.permute.xlu0 %274
      %v277 = vmul.f32 %v263, %v270
      %v278 = vmul.f32 %v264, %v275
      %v279 = vld [vmem:[%s2] sm:$0xff]
      %v280 = vld [vmem:[%s2 + $0x8] sm:$0xff]
      %282 = vset.pattern.permute.xlu0 0
      %283 = vperm.xlu0 %282, %v279
      %v284 = vpop.permute.xlu0 %283
      %287 = vset.pattern.permute.xlu0 0
      %288 = vperm.xlu0 %287, %v280
      %v289 = vpop.permute.xlu0 %288
      %v291 = vadd.f32 %v277, %v284
      %v292 = vadd.f32 %v278, %v289
      %v293 = vmax.f32 %v291, 0.0
      %v294 = vmax.f32 %v292, 0.0
      %vm295 = vcmask 31744
      %v296 = vsel %vm295, %v293, 0.0
      %297 = vadd.xlane.f32.xlu0 %v296
      %v298 = vpop.xlane.xlu0 %297
      %v299 = vsel %vm295, %v294, 0.0
      %300 = vadd.xlane.f32.xlu0 %v299
      %v301 = vpop.xlane.xlu0 %300
      %v302 = vmul.f32 %v298, 0.25
      %v303 = vmul.f32 %v301, 0.25
      %v304 = vld [vmem:[%s3] sm:$0x1f]
      %v305 = vld [vmem:[%s4] sm:$0x1f]
      %vm306 = vcmask 130048
      %v308 = vsel %vm306, %v304, 0
      %310 = vmatprep.subr.mxu0 0.0
      %311 = vmatpush1.msra.mxu0 %v302
      %312 = vmatprep.subr.mxu0 0.0
      %313 = vmatpush1.msra.mxu0 %v303
      %314 = vmatprep.subr.mxu0 0.0
      %315 = vmatpush1.msra.mxu0 0.0
      %316 = vmatprep.subr.mxu0 0.0
      %317 = vmatpush1.msra.mxu0 0.0
      %318 = vmatprep.subr.mxu0 0.0
      %319 = vmatpush1.msra.mxu0 0.0
      %320 = vmatprep.subr.mxu0 0.0
      %321 = vmatpush1.msra.mxu0 0.0
      %322 = vmatprep.subr.mxu0 0.0
      %323 = vmatpush1.msra.mxu0 0.0
      %324 = vmatprep.subr.mxu0 0.0
      %325 = vmatpush1.msra.mxu0 0.0
      %326 = vmatprep.subr.mxu0 0.0
      %327 = vmatpush1.msra.mxu0 0.0
      %328 = vmatprep.subr.mxu0 0.0
      %329 = vmatpush1.msra.mxu0 0.0
      %330 = vmatprep.subr.mxu0 0.0
      %331 = vmatpush1.msra.mxu0 0.0
      %332 = vmatprep.subr.mxu0 0.0
      %333 = vmatpush1.msra.mxu0 0.0
      %334 = vmatprep.subr.mxu0 0.0
      %335 = vmatpush1.msra.mxu0 0.0
      %336 = vmatprep.subr.mxu0 0.0
      %337 = vmatpush1.msra.mxu0 0.0
      %338 = vmatprep.subr.mxu0 0.0
      %339 = vmatpush1.msra.mxu0 0.0
      %340 = vmatprep.subr.mxu0 0.0
      %341 = vmatpush1.msra.mxu0 0.0
      %342 = vmatprep.subr.mxu0 0.0
      %343 = vmatpush1.msra.mxu0 0.0
      %344 = vmatprep.subr.mxu0 0.0
      %345 = vmatpush1.msra.mxu0 0.0
      %346 = vmatprep.subr.mxu0 0.0
      %347 = vmatpush1.msra.mxu0 0.0
      %348 = vmatprep.subr.mxu0 0.0
      %349 = vmatpush1.msra.mxu0 0.0
      %350 = vmatprep.subr.mxu0 0.0
      %351 = vmatpush1.msra.mxu0 0.0
      %352 = vmatprep.subr.mxu0 0.0
      %353 = vmatpush1.msra.mxu0 0.0
      %354 = vmatprep.subr.mxu0 0.0
      %355 = vmatpush1.msra.mxu0 0.0
      %356 = vmatprep.subr.mxu0 0.0
      %357 = vmatpush1.msra.mxu0 0.0
      %358 = vmatprep.subr.mxu0 0.0
      %359 = vmatpush1.msra.mxu0 0.0
      %360 = vmatprep.subr.mxu0 0.0
      %361 = vmatpush1.msra.mxu0 0.0
      %362 = vmatprep.subr.mxu0 0.0
      %363 = vmatpush1.msra.mxu0 0.0
      %364 = vmatprep.subr.mxu0 0.0
      %365 = vmatpush1.msra.mxu0 0.0
      %366 = vmatprep.subr.mxu0 0.0
      %367 = vmatpush1.msra.mxu0 0.0
      %368 = vmatprep.subr.mxu0 0.0
      %369 = vmatpush1.msra.mxu0 0.0
      %370 = vmatprep.subr.mxu0 0.0
      %371 = vmatpush1.msra.mxu0 0.0
      %372 = vmatprep.subr.mxu0 0.0
      %373 = vmatpush1.msra.mxu0 0.0
      %374 = vmatprep.mubr.f32.mxu0 0.0
      %375 = vmatmul.mubr.f32.gmra.mrb[0].mxu0 %v308
      %v376 = vpop.f32.mrb[0].mxu0
      %v377 = vadd.f32 %v305, %v376
      %v378 = vpop.f32.mrb[0].mxu0
      %379 = vdwg.mxu0
      %vm380 = vcmask 7168
      %381 = vst.msk [vmem:[%s262] sm:$0xff] %vm380, %v302
      %382 = vst.msk [vmem:[%s262 + $0x8] sm:$0xff] %vm380, %v303
      %vm383 = vcmask 4096
      %384 = vst.msk [vmem:[%s257] sm:$0x1f] %vm383, %v377
      %p385 = scmp.lt.s32.totalorder %s18, 1
      %s386 = scalar_select %p385, %s18, 1
      %s387 = smul.addr %s386, 8
      %s388 = scalar_lea.vmem %s5, %s387
      %p389 = scmp.lt.s32.totalorder %s18, 1
      %s390 = scalar_select %p389, %s18, 1
      %s391 = smul.addr %s390, 2
      %s392 = smul.addr %s391, 8
      %s393 = scalar_lea.vmem %s6, %s392
      // Predicated region
      $region41: #{resnet1d_forward.13} parent=39 // pred_check
        %p394 = pneg %p146
      $region42: #{resnet1d_forward.13} parent=39 // pred_check_branch
        %396 = sbr.rel (%p394) target = $region44
      $region43: #{resnet1d_forward.13} parent=39 // pred_region
        _
      $region44: #{resnet1d_forward.13} parent=39 // pred_fallthru
        _
      // Predicated region
      $region45: #{resnet1d_forward.13} parent=39 // pred_check
        %p397 = pneg %p172
      $region46: #{resnet1d_forward.13} parent=39 // pred_check_branch
        %399 = sbr.rel (%p397) target = $region48
      $region47: #{resnet1d_forward.13} parent=39 // pred_region
        _
      $region48: #{resnet1d_forward.13} parent=39 // pred_fallthru
        _
    $region40: #{resnet1d_forward.13} parent=5 // pred_fallthru
      _
    %p400 = scmp.le.s32.totalorder 2, %s13
    // Predicated region
    $region49: #{resnet1d_forward.13} parent=5 // pred_check
      %p401 = pneg %p400
    $region50: #{resnet1d_forward.13} parent=5 // pred_check_branch
      %403 = sbr.rel (%p401) target = $region52
    $region51: #{resnet1d_forward.13} parent=5 // pred_region
      %s404 = ssub.s32 %s13, 2
      // Predicated region
      $region53: #{resnet1d_forward.13} parent=51 // pred_check
        %p405 = pneg %p152
      $region54: #{resnet1d_forward.13} parent=51 // pred_check_branch
        %407 = sbr.rel (%p405) target = $region56
      $region55: #{resnet1d_forward.13} parent=51 // pred_region
        %p408 = scmp.lt.s32.totalorder %s19, 1
        %s409 = scalar_select %p408, %s19, 1
        %s410 = smul.addr %s409, 8
        %s411 = scalar_lea.vmem %s5, %s410
      $region56: #{resnet1d_forward.13} parent=51 // pred_fallthru
        _
      // Predicated region
      $region57: #{resnet1d_forward.13} parent=51 // pred_check
        %p412 = pneg %p178
      $region58: #{resnet1d_forward.13} parent=51 // pred_check_branch
        %414 = sbr.rel (%p412) target = $region60
      $region59: #{resnet1d_forward.13} parent=51 // pred_region
        %p415 = scmp.lt.s32.totalorder %s19, 1
        %s416 = scalar_select %p415, %s19, 1
        %s417 = smul.addr %s416, 2
        %s418 = smul.addr %s417, 8
        %s419 = scalar_lea.vmem %s6, %s418
      $region60: #{resnet1d_forward.13} parent=51 // pred_fallthru
        _
    $region52: #{resnet1d_forward.13} parent=5 // pred_fallthru
      _
  $region6: #{resnet1d_forward.13} parent=0 // loop_footer
    %s17 = sadd.s32 1, %s13
  $region7: #{resnet1d_forward.13} parent=0 // loop_footer_branch
    %12 = sbr.rel target = $region3
  $region8: #{resnet1d_forward.13} parent=0 // loop_exit
    _

// kernel: resnet1d_forward.11
$region0: #{resnet1d_forward.11}
  #allocation0 [shape = 'u32[]', space=smem, size = 0x4, offset = 0x4, fixed_abs, tag = 'smem constant byte address 0x4 - core index']
  #allocation1 [shape = 'u32[144,128]{1,0:T(1,128)}', space=vmem, size = 0x12000, scoped, tag = 'internal scratch']
  %s0 = inlined_call_operand.vmem [shape: f32[2,8,8], index: 0, kind: input, shape index: {}]
  %s1 = inlined_call_operand.vmem [shape: f32[8,1], index: 1, kind: input, shape index: {}]
  %s2 = inlined_call_operand.vmem [shape: f32[8,1], index: 2, kind: input, shape index: {}]
  %s3 = inlined_call_operand.vmem [shape: f32[8,24], index: 3, kind: input, shape index: {}]
  %s4 = inlined_call_operand.vmem [shape: f32[8,1], index: 4, kind: input, shape index: {}]
  %s5 = inlined_call_operand.vmem [shape: f32[8,24], index: 5, kind: input, shape index: {}]
  %s6 = inlined_call_operand.vmem [shape: f32[8,1], index: 6, kind: input, shape index: {}]
  %s7 = inlined_call_operand.vmem [shape: f32[7,4], index: 7, kind: input, shape index: {}]
  %s8 = inlined_call_operand.vmem [shape: f32[2,9,4], index: 8, kind: input, shape index: {}]
  %s9 = inlined_call_operand.vmem [shape: f32[2,8,4], index: 9, kind: output, shape index: {}]
  %s10 = sld [smem:[#allocation0]]
  $region69: #{resnet1d_forward.11} parent=0
    _
  %s12 = ssub.s32 1, %s10
  %s13 = scalar_select 0, %s12, %s10
  loop: start=0, step=1, limit=4
  $region2: #{resnet1d_forward.11} parent=0 // loop_pre_header
    _
  $region3: #{resnet1d_forward.11} parent=0 // loop_header
    %s15 = sphi 0, %s19
    %p16 = scmp.ge.s32.totalorder %s15, 4
    %s25 = sphi 0, %s27
    %s28 = sphi 0, %s25
    %s29 = sphi 0, %s28
    %s45 = sphi 0, %s29
    %s49 = sphi 0, %s49
    %s51 = sphi 0, %s49
    %s52 = sphi 0, %s51
    %s66 = sphi 0, %s52
    %s70 = sphi 0, %s70
    %s72 = sphi 0, %s70
    %s73 = sphi 0, %s72
    %s87 = sphi 0, %s73
    %s91 = sphi 0, %s91
    %s93 = sphi 0, %s91
    %s94 = sphi 0, %s93
    %s108 = sphi 0, %s94
    %s112 = sphi 0, %s112
    %s114 = sphi 0, %s112
    %s115 = sphi 0, %s114
    %s129 = sphi 0, %s115
    %s133 = sphi 0, %s133
    %s135 = sphi 0, %s133
    %s136 = sphi 0, %s135
    %s150 = sphi 0, %s136
    %s154 = sphi 0, %s154
    %s156 = sphi 0, %s154
    %s157 = sphi 0, %s156
    %s171 = sphi 0, %s157
    %s175 = sphi 0, %s175
    %s177 = sphi 0, %s175
    %s178 = sphi 0, %s177
    %s192 = sphi 0, %s178
    %s196 = sphi 0, %s196
    %s198 = sphi 0, %s196
    %s199 = sphi 0, %s198
    %s213 = sphi 0, %s199
    %s219 = sphi 0, %s221
    %s222 = sphi 0, %s219
    %s223 = sphi 0, %s222
    %s239 = sphi 0, %s223
  $region4: #{resnet1d_forward.11} parent=0 // loop_header_branch
    %18 = sbr.rel (%p16) target = $region8
  $region5: #{resnet1d_forward.11} parent=0 // loop_body
    %s20 = ssub.s32 %s15, 1
    %s21 = ssub.s32 %s15, 2
    %s22 = sadd.s32 %s15, 1
    %s23 = ssub.s32 %s15, %s22
    %p24 = scmp.eq.s32.totalorder %s23, 0
    %s26 = sadd.s32 %s25, 1
    %s27 = scalar_select %p24, %s25, %s26
    %p30 = pneg %p24
    %p31 = scmp.eq.s32.totalorder %s15, 1
    %p32 = por %p30, %p31
    %p33 = scmp.ne.s32.totalorder %s25, %s28
    %p34 = scmp.eq.s32.totalorder %s15, 0
    %p35 = por %p33, %p34
    %p36 = scmp.ne.s32.totalorder %s25, %s28
    %p37 = scmp.eq.s32.totalorder %s20, 1
    %p38 = por %p36, %p37
    %p39 = scmp.ne.s32.totalorder %s28, %s29
    %p40 = scmp.eq.s32.totalorder %s20, 0
    %p41 = por %p39, %p40
    %p42 = scmp.ne.s32.totalorder %s28, %s29
    %p43 = scmp.eq.s32.totalorder %s21, 1
    %p44 = por %p42, %p43
    %p46 = scmp.ne.s32.totalorder %s29, %s45
    %p47 = scmp.eq.s32.totalorder %s21, 0
    %p48 = por %p46, %p47
    %s50 = sadd.s32 %s49, 1
    %p53 = scmp.eq.s32.totalorder %s15, 1
    %p54 = scmp.ne.s32.totalorder %s49, %s51
    %p55 = scmp.eq.s32.totalorder %s15, 0
    %p56 = por %p54, %p55
    %p57 = scmp.ne.s32.totalorder %s49, %s51
    %p58 = scmp.eq.s32.totalorder %s20, 1
    %p59 = por %p57, %p58
    %p60 = scmp.ne.s32.totalorder %s51, %s52
    %p61 = scmp.eq.s32.totalorder %s20, 0
    %p62 = por %p60, %p61
    %p63 = scmp.ne.s32.totalorder %s51, %s52
    %p64 = scmp.eq.s32.totalorder %s21, 1
    %p65 = por %p63, %p64
    %p67 = scmp.ne.s32.totalorder %s52, %s66
    %p68 = scmp.eq.s32.totalorder %s21, 0
    %p69 = por %p67, %p68
    %s71 = sadd.s32 %s70, 1
    %p74 = scmp.eq.s32.totalorder %s15, 1
    %p75 = scmp.ne.s32.totalorder %s70, %s72
    %p76 = scmp.eq.s32.totalorder %s15, 0
    %p77 = por %p75, %p76
    %p78 = scmp.ne.s32.totalorder %s70, %s72
    %p79 = scmp.eq.s32.totalorder %s20, 1
    %p80 = por %p78, %p79
    %p81 = scmp.ne.s32.totalorder %s72, %s73
    %p82 = scmp.eq.s32.totalorder %s20, 0
    %p83 = por %p81, %p82
    %p84 = scmp.ne.s32.totalorder %s72, %s73
    %p85 = scmp.eq.s32.totalorder %s21, 1
    %p86 = por %p84, %p85
    %p88 = scmp.ne.s32.totalorder %s73, %s87
    %p89 = scmp.eq.s32.totalorder %s21, 0
    %p90 = por %p88, %p89
    %s92 = sadd.s32 %s91, 1
    %p95 = scmp.eq.s32.totalorder %s15, 1
    %p96 = scmp.ne.s32.totalorder %s91, %s93
    %p97 = scmp.eq.s32.totalorder %s15, 0
    %p98 = por %p96, %p97
    %p99 = scmp.ne.s32.totalorder %s91, %s93
    %p100 = scmp.eq.s32.totalorder %s20, 1
    %p101 = por %p99, %p100
    %p102 = scmp.ne.s32.totalorder %s93, %s94
    %p103 = scmp.eq.s32.totalorder %s20, 0
    %p104 = por %p102, %p103
    %p105 = scmp.ne.s32.totalorder %s93, %s94
    %p106 = scmp.eq.s32.totalorder %s21, 1
    %p107 = por %p105, %p106
    %p109 = scmp.ne.s32.totalorder %s94, %s108
    %p110 = scmp.eq.s32.totalorder %s21, 0
    %p111 = por %p109, %p110
    %s113 = sadd.s32 %s112, 1
    %p116 = scmp.eq.s32.totalorder %s15, 1
    %p117 = scmp.ne.s32.totalorder %s112, %s114
    %p118 = scmp.eq.s32.totalorder %s15, 0
    %p119 = por %p117, %p118
    %p120 = scmp.ne.s32.totalorder %s112, %s114
    %p121 = scmp.eq.s32.totalorder %s20, 1
    %p122 = por %p120, %p121
    %p123 = scmp.ne.s32.totalorder %s114, %s115
    %p124 = scmp.eq.s32.totalorder %s20, 0
    %p125 = por %p123, %p124
    %p126 = scmp.ne.s32.totalorder %s114, %s115
    %p127 = scmp.eq.s32.totalorder %s21, 1
    %p128 = por %p126, %p127
    %p130 = scmp.ne.s32.totalorder %s115, %s129
    %p131 = scmp.eq.s32.totalorder %s21, 0
    %p132 = por %p130, %p131
    %s134 = sadd.s32 %s133, 1
    %p137 = scmp.eq.s32.totalorder %s15, 1
    %p138 = scmp.ne.s32.totalorder %s133, %s135
    %p139 = scmp.eq.s32.totalorder %s15, 0
    %p140 = por %p138, %p139
    %p141 = scmp.ne.s32.totalorder %s133, %s135
    %p142 = scmp.eq.s32.totalorder %s20, 1
    %p143 = por %p141, %p142
    %p144 = scmp.ne.s32.totalorder %s135, %s136
    %p145 = scmp.eq.s32.totalorder %s20, 0
    %p146 = por %p144, %p145
    %p147 = scmp.ne.s32.totalorder %s135, %s136
    %p148 = scmp.eq.s32.totalorder %s21, 1
    %p149 = por %p147, %p148
    %p151 = scmp.ne.s32.totalorder %s136, %s150
    %p152 = scmp.eq.s32.totalorder %s21, 0
    %p153 = por %p151, %p152
    %s155 = sadd.s32 %s154, 1
    %p158 = scmp.eq.s32.totalorder %s15, 1
    %p159 = scmp.ne.s32.totalorder %s154, %s156
    %p160 = scmp.eq.s32.totalorder %s15, 0
    %p161 = por %p159, %p160
    %p162 = scmp.ne.s32.totalorder %s154, %s156
    %p163 = scmp.eq.s32.totalorder %s20, 1
    %p164 = por %p162, %p163
    %p165 = scmp.ne.s32.totalorder %s156, %s157
    %p166 = scmp.eq.s32.totalorder %s20, 0
    %p167 = por %p165, %p166
    %p168 = scmp.ne.s32.totalorder %s156, %s157
    %p169 = scmp.eq.s32.totalorder %s21, 1
    %p170 = por %p168, %p169
    %p172 = scmp.ne.s32.totalorder %s157, %s171
    %p173 = scmp.eq.s32.totalorder %s21, 0
    %p174 = por %p172, %p173
    %s176 = sadd.s32 %s175, 1
    %p179 = scmp.eq.s32.totalorder %s15, 1
    %p180 = scmp.ne.s32.totalorder %s175, %s177
    %p181 = scmp.eq.s32.totalorder %s15, 0
    %p182 = por %p180, %p181
    %p183 = scmp.ne.s32.totalorder %s175, %s177
    %p184 = scmp.eq.s32.totalorder %s20, 1
    %p185 = por %p183, %p184
    %p186 = scmp.ne.s32.totalorder %s177, %s178
    %p187 = scmp.eq.s32.totalorder %s20, 0
    %p188 = por %p186, %p187
    %p189 = scmp.ne.s32.totalorder %s177, %s178
    %p190 = scmp.eq.s32.totalorder %s21, 1
    %p191 = por %p189, %p190
    %p193 = scmp.ne.s32.totalorder %s178, %s192
    %p194 = scmp.eq.s32.totalorder %s21, 0
    %p195 = por %p193, %p194
    %s197 = sadd.s32 %s196, 1
    %p200 = scmp.eq.s32.totalorder %s15, 1
    %p201 = scmp.ne.s32.totalorder %s196, %s198
    %p202 = scmp.eq.s32.totalorder %s15, 0
    %p203 = por %p201, %p202
    %p204 = scmp.ne.s32.totalorder %s196, %s198
    %p205 = scmp.eq.s32.totalorder %s20, 1
    %p206 = por %p204, %p205
    %p207 = scmp.ne.s32.totalorder %s198, %s199
    %p208 = scmp.eq.s32.totalorder %s20, 0
    %p209 = por %p207, %p208
    %p210 = scmp.ne.s32.totalorder %s198, %s199
    %p211 = scmp.eq.s32.totalorder %s21, 1
    %p212 = por %p210, %p211
    %p214 = scmp.ne.s32.totalorder %s199, %s213
    %p215 = scmp.eq.s32.totalorder %s21, 0
    %p216 = por %p214, %p215
    %s217 = ssub.s32 %s15, %s22
    %p218 = scmp.eq.s32.totalorder %s217, 0
    %s220 = sadd.s32 %s219, 1
    %s221 = scalar_select %p218, %s219, %s220
    %p224 = pneg %p218
    %p225 = scmp.eq.s32.totalorder %s15, 1
    %p226 = por %p224, %p225
    %p227 = scmp.ne.s32.totalorder %s219, %s222
    %p228 = scmp.eq.s32.totalorder %s15, 0
    %p229 = por %p227, %p228
    %p230 = scmp.ne.s32.totalorder %s219, %s222
    %p231 = scmp.eq.s32.totalorder %s20, 1
    %p232 = por %p230, %p231
    %p233 = scmp.ne.s32.totalorder %s222, %s223
    %p234 = scmp.eq.s32.totalorder %s20, 0
    %p235 = por %p233, %p234
    %p236 = scmp.ne.s32.totalorder %s222, %s223
    %p237 = scmp.eq.s32.totalorder %s21, 1
    %p238 = por %p236, %p237
    %p240 = scmp.ne.s32.totalorder %s223, %s239
    %p241 = scmp.eq.s32.totalorder %s21, 0
    %p242 = por %p240, %p241
    %p243 = scmp.le.s32.totalorder 1, %s15
    %p244 = scmp.lt.s32.totalorder %s15, 3
    %p245 = pnand %p243, %p244
    %p246 = pneg %p245
    // Predicated region
    $region9: #{resnet1d_forward.11} parent=5 // pred_check
      _
    $region10: #{resnet1d_forward.11} parent=5 // pred_check_branch
      %248 = sbr.rel (%p245) target = $region12
    $region11: #{resnet1d_forward.11} parent=5 // pred_region
      %s249 = ssub.s32 %s15, 1
      // Predicated region
      $region13: #{resnet1d_forward.11} parent=11 // pred_check
        %p250 = pneg %p62
      $region14: #{resnet1d_forward.11} parent=11 // pred_check_branch
        %252 = sbr.rel (%p250) target = $region16
      $region15: #{resnet1d_forward.11} parent=11 // pred_region
        _
      $region16: #{resnet1d_forward.11} parent=11 // pred_fallthru
        _
      // Predicated region
      $region17: #{resnet1d_forward.11} parent=11 // pred_check
        %p253 = pneg %p83
      $region18: #{resnet1d_forward.11} parent=11 // pred_check_branch
        %255 = sbr.rel (%p253) target = $region20
      $region19: #{resnet1d_forward.11} parent=11 // pred_region
        _
      $region20: #{resnet1d_forward.11} parent=11 // pred_fallthru
        _
      // Predicated region
      $region21: #{resnet1d_forward.11} parent=11 // pred_check
        %p256 = pneg %p104
      $region22: #{resnet1d_forward.11} parent=11 // pred_check_branch
        %258 = sbr.rel (%p256) target = $region24
      $region23: #{resnet1d_forward.11} parent=11 // pred_region
        _
      $region24: #{resnet1d_forward.11} parent=11 // pred_fallthru
        _
      // Predicated region
      $region25: #{resnet1d_forward.11} parent=11 // pred_check
        %p259 = pneg %p125
      $region26: #{resnet1d_forward.11} parent=11 // pred_check_branch
        %261 = sbr.rel (%p259) target = $region28
      $region27: #{resnet1d_forward.11} parent=11 // pred_region
        _
      $region28: #{resnet1d_forward.11} parent=11 // pred_fallthru
        _
      // Predicated region
      $region29: #{resnet1d_forward.11} parent=11 // pred_check
        %p262 = pneg %p146
      $region30: #{resnet1d_forward.11} parent=11 // pred_check_branch
        %264 = sbr.rel (%p262) target = $region32
      $region31: #{resnet1d_forward.11} parent=11 // pred_region
        _
      $region32: #{resnet1d_forward.11} parent=11 // pred_fallthru
        _
      // Predicated region
      $region33: #{resnet1d_forward.11} parent=11 // pred_check
        %p265 = pneg %p167
      $region34: #{resnet1d_forward.11} parent=11 // pred_check_branch
        %267 = sbr.rel (%p265) target = $region36
      $region35: #{resnet1d_forward.11} parent=11 // pred_region
        _
      $region36: #{resnet1d_forward.11} parent=11 // pred_fallthru
        _
      // Predicated region
      $region37: #{resnet1d_forward.11} parent=11 // pred_check
        %p268 = pneg %p188
      $region38: #{resnet1d_forward.11} parent=11 // pred_check_branch
        %270 = sbr.rel (%p268) target = $region40
      $region39: #{resnet1d_forward.11} parent=11 // pred_region
        _
      $region40: #{resnet1d_forward.11} parent=11 // pred_fallthru
        _
      // Predicated region
      $region41: #{resnet1d_forward.11} parent=11 // pred_check
        %p271 = pneg %p209
      $region42: #{resnet1d_forward.11} parent=11 // pred_check_branch
        %273 = sbr.rel (%p271) target = $region44
      $region43: #{resnet1d_forward.11} parent=11 // pred_region
        _
      $region44: #{resnet1d_forward.11} parent=11 // pred_fallthru
        _
    $region12: #{resnet1d_forward.11} parent=5 // pred_fallthru
      _
    %p274 = scmp.lt.s32.totalorder %s15, 2
    // Predicated region
    $region45: #{resnet1d_forward.11} parent=5 // pred_check
      %p275 = pneg %p274
    $region46: #{resnet1d_forward.11} parent=5 // pred_check_branch
      %277 = sbr.rel (%p275) target = $region48
    $region47: #{resnet1d_forward.11} parent=5 // pred_region
      // Predicated region
      $region49: #{resnet1d_forward.11} parent=47 // pred_check
        %p278 = pneg %p35
      $region50: #{resnet1d_forward.11} parent=47 // pred_check_branch
        %280 = sbr.rel (%p278) target = $region52
      $region51: #{resnet1d_forward.11} parent=47 // pred_region
        %p281 = scmp.lt.s32.totalorder %s15, 1
        %s282 = scalar_select %p281, %s15, 1
        %s283 = smul.addr %s282, 8
        %s284 = scalar_lea.vmem %s0, %s283
      $region52: #{resnet1d_forward.11} parent=47 // pred_fallthru
        _
    $region48: #{resnet1d_forward.11} parent=5 // pred_fallthru
      _
    %p285 = scmp.le.s32.totalorder 1, %s15
    %p286 = scmp.lt.s32.totalorder %s15, 3
    %p287 = pnand %p285, %p286
    %p288 = pneg %p287
    // Predicated region
    $region53: #{resnet1d_forward.11} parent=5 // pred_check
      _
    $region54: #{resnet1d_forward.11} parent=5 // pred_check_branch
      %290 = sbr.rel (%p287) target = $region56
    $region55: #{resnet1d_forward.11} parent=5 // pred_region
      %s291 = ssub.s32 %s15, 1
      %p292 = scmp.lt.s32.totalorder %s20, 1
      %s293 = scalar_select %p292, %s20, 1
      %s294 = smul.addr %s293, 8
      %s295 = scalar_lea.vmem %s0, %s294
      %p296 = pneg %p41
      %p297 = pneg %p38
      %p298 = pneg %p62
      %p299 = pneg %p59
      %p300 = pneg %p83
      %p301 = pneg %p80
      %p302 = pneg %p104
      %p303 = pneg %p101
      %p304 = pneg %p125
      %p305 = pneg %p122
      %p306 = pneg %p146
      %p307 = pneg %p143
      %p308 = pneg %p167
      %p309 = pneg %p164
      %p310 = pneg %p188
      %p311 = pneg %p185
      %p312 = pneg %p209
      %p313 = pneg %p206
      %p314 = pneg %p235
      %p315 = pneg %p232
      %p316 = scmp.lt.s32.totalorder %s20, 1
      %s317 = scalar_select %p316, %s20, 1
      %s318 = smul.addr %s317, 8
      %s319 = scalar_lea.vmem %s9, %s318
      %p320 = scmp.lt.s32.totalorder %s20, 1
      %s321 = scalar_select %p320, %s20, 1
      %s322 = smul.addr %s321, 8
      %s323 = scalar_lea.vmem %s0, %s322
      %p324 = scmp.lt.s32.totalorder %s20, 1
      %s325 = scalar_select %p324, %s20, 1
      %s326 = smul.addr %s325, 8
      %s327 = scalar_lea.vmem %s9, %s326
      %v328 = vld [vmem:[%s323] sm:$0xff]
      %v329 = vld [vmem:[%s1] sm:$0xff]
      %331 = vset.pattern.permute.xlu0 0
      %332 = vperm.xlu0 %331, %v329
      %v333 = vpop.permute.xlu0 %332
      %v335 = vmul.f32 %v328, %v333
      %v336 = vld [vmem:[%s2] sm:$0xff]
      %338 = vset.pattern.permute.xlu0 0
      %339 = vperm.xlu0 %338, %v336
      %v340 = vpop.permute.xlu0 %339
      %v342 = vadd.f32 %v335, %v340
      %v343 = vmax.f32 %v342, 0.0
      %v344 = vld [vmem:[%s3] sm:$0xff]
      %v345 = vld [vmem:[%s4] sm:$0xff]
      %vm346 = vcmask 64512
      %v347 = vsel %vm346, %v343, 0.0
      %349 = vrot.lane.b32.xlu0 %v347, 127
      %v350 = vpop.permute.xlu0 %349
      %352 = vrot.lane.b32.xlu0 %v347, 126
      %v353 = vpop.permute.xlu0 %352
      %356 = vset.pattern.permute.xlu0 0
      %357 = vperm.xlu0 %356, %v345
      %v358 = vpop.permute.xlu0 %357
      %vm360 = vcmask 195584
      %v362 = vsel %vm360, %v344, 0
      %364 = vmatprep.subr.mxu0 0.0
      %365 = vmatpush1.msra.mxu0 %v347
      %366 = vmatprep.subr.mxu0 0.0
      %367 = vmatpush1.msra.mxu0 %v350
      %368 = vmatprep.subr.mxu0 0.0
      %369 = vmatpush1.msra.mxu0 %v353
      %370 = vmatprep.subr.mxu0 0.0
      %371 = vmatpush1.msra.mxu0 0.0
      %372 = vmatprep.subr.mxu0 0.0
      %373 = vmatpush1.msra.mxu0 0.0
      %374 = vmatprep.subr.mxu0 0.0
      %375 = vmatpush1.msra.mxu0 0.0
      %376 = vmatprep.subr.mxu0 0.0
      %377 = vmatpush1.msra.mxu0 0.0
      %378 = vmatprep.subr.mxu0 0.0
      %379 = vmatpush1.msra.mxu0 0.0
      %380 = vmatprep.subr.mxu0 0.0
      %381 = vmatpush1.msra.mxu0 0.0
      %382 = vmatprep.subr.mxu0 0.0
      %383 = vmatpush1.msra.mxu0 0.0
      %384 = vmatprep.subr.mxu0 0.0
      %385 = vmatpush1.msra.mxu0 0.0
      %386 = vmatprep.subr.mxu0 0.0
      %387 = vmatpush1.msra.mxu0 0.0
      %388 = vmatprep.subr.mxu0 0.0
      %389 = vmatpush1.msra.mxu0 0.0
      %390 = vmatprep.subr.mxu0 0.0
      %391 = vmatpush1.msra.mxu0 0.0
      %392 = vmatprep.subr.mxu0 0.0
      %393 = vmatpush1.msra.mxu0 0.0
      %394 = vmatprep.subr.mxu0 0.0
      %395 = vmatpush1.msra.mxu0 0.0
      %396 = vmatprep.subr.mxu0 0.0
      %397 = vmatpush1.msra.mxu0 0.0
      %398 = vmatprep.subr.mxu0 0.0
      %399 = vmatpush1.msra.mxu0 0.0
      %400 = vmatprep.subr.mxu0 0.0
      %401 = vmatpush1.msra.mxu0 0.0
      %402 = vmatprep.subr.mxu0 0.0
      %403 = vmatpush1.msra.mxu0 0.0
      %404 = vmatprep.subr.mxu0 0.0
      %405 = vmatpush1.msra.mxu0 0.0
      %406 = vmatprep.subr.mxu0 0.0
      %407 = vmatpush1.msra.mxu0 0.0
      %408 = vmatprep.subr.mxu0 0.0
      %409 = vmatpush1.msra.mxu0 0.0
      %410 = vmatprep.subr.mxu0 0.0
      %411 = vmatpush1.msra.mxu0 0.0
      %412 = vmatprep.subr.mxu0 0.0
      %413 = vmatpush1.msra.mxu0 0.0
      %414 = vmatprep.subr.mxu0 0.0
      %415 = vmatpush1.msra.mxu0 0.0
      %416 = vmatprep.subr.mxu0 0.0
      %417 = vmatpush1.msra.mxu0 0.0
      %418 = vmatprep.subr.mxu0 0.0
      %419 = vmatpush1.msra.mxu0 0.0
      %420 = vmatprep.subr.mxu0 0.0
      %421 = vmatpush1.msra.mxu0 0.0
      %422 = vmatprep.subr.mxu0 0.0
      %423 = vmatpush1.msra.mxu0 0.0
      %424 = vmatprep.subr.mxu0 0.0
      %425 = vmatpush1.msra.mxu0 0.0
      %426 = vmatprep.subr.mxu0 0.0
      %427 = vmatpush1.msra.mxu0 0.0
      %428 = vmatprep.mubr.f32.mxu0 0.0
      %429 = vmatmul.mubr.f32.gmra.mrb[0].mxu0 %v362
      %v430 = vpop.f32.mrb[0].mxu0
      %v431 = vadd.f32 %v358, %v430
      %v432 = vpop.f32.mrb[0].mxu0
      %433 = vdwg.mxu0
      %v434 = vld [vmem:[%s7] sm:$0x7f]
      %vm435 = vcmask 56320
      %v437 = vsel %vm435, %v431, 0
      %vm439 = vcmask 1046528
      %v441 = vsel %vm439, %v434, 0
      %443 = vmatprep.subr.mxu0 0.0
      %444 = vmatpush1.msra.mxu0 %v441
      %445 = vmatprep.subr.mxu0 0.0
      %446 = vmatpush1.msra.mxu0 0.0
      %447 = vmatprep.subr.mxu0 0.0
      %448 = vmatpush1.msra.mxu0 0.0
      %449 = vmatprep.subr.mxu0 0.0
      %450 = vmatpush1.msra.mxu0 0.0
      %451 = vmatprep.subr.mxu0 0.0
      %452 = vmatpush1.msra.mxu0 0.0
      %453 = vmatprep.subr.mxu0 0.0
      %454 = vmatpush1.msra.mxu0 0.0
      %455 = vmatprep.subr.mxu0 0.0
      %456 = vmatpush1.msra.mxu0 0.0
      %457 = vmatprep.subr.mxu0 0.0
      %458 = vmatpush1.msra.mxu0 0.0
      %459 = vmatprep.subr.mxu0 0.0
      %460 = vmatpush1.msra.mxu0 0.0
      %461 = vmatprep.subr.mxu0 0.0
      %462 = vmatpush1.msra.mxu0 0.0
      %463 = vmatprep.subr.mxu0 0.0
      %464 = vmatpush1.msra.mxu0 0.0
      %465 = vmatprep.subr.mxu0 0.0
      %466 = vmatpush1.msra.mxu0 0.0
      %467 = vmatprep.subr.mxu0 0.0
      %468 = vmatpush1.msra.mxu0 0.0
      %469 = vmatprep.subr.mxu0 0.0
      %470 = vmatpush1.msra.mxu0 0.0
      %471 = vmatprep.subr.mxu0 0.0
      %472 = vmatpush1.msra.mxu0 0.0
      %473 = vmatprep.subr.mxu0 0.0
      %474 = vmatpush1.msra.mxu0 0.0
      %475 = vmatprep.subr.mxu0 0.0
      %476 = vmatpush1.msra.mxu0 0.0
      %477 = vmatprep.subr.mxu0 0.0
      %478 = vmatpush1.msra.mxu0 0.0
      %479 = vmatprep.subr.mxu0 0.0
      %480 = vmatpush1.msra.mxu0 0.0
      %481 = vmatprep.subr.mxu0 0.0
      %482 = vmatpush1.msra.mxu0 0.0
      %483 = vmatprep.subr.mxu0 0.0
      %484 = vmatpush1.msra.mxu0 0.0
      %485 = vmatprep.subr.mxu0 0.0
      %486 = vmatpush1.msra.mxu0 0.0
      %487 = vmatprep.subr.mxu0 0.0
      %488 = vmatpush1.msra.mxu0 0.0
      %489 = vmatprep.subr.mxu0 0.0
      %490 = vmatpush1.msra.mxu0 0.0
      %491 = vmatprep.subr.mxu0 0.0
      %492 = vmatpush1.msra.mxu0 0.0
      %493 = vmatprep.subr.mxu0 0.0
      %494 = vmatpush1.msra.mxu0 0.0
      %495 = vmatprep.subr.mxu0 0.0
      %496 = vmatpush1.msra.mxu0 0.0
      %497 = vmatprep.subr.mxu0 0.0
      %498 = vmatpush1.msra.mxu0 0.0
      %499 = vmatprep.subr.mxu0 0.0
      %500 = vmatpush1.msra.mxu0 0.0
      %501 = vmatprep.subr.mxu0 0.0
      %502 = vmatpush1.msra.mxu0 0.0
      %503 = vmatprep.subr.mxu0 0.0
      %504 = vmatpush1.msra.mxu0 0.0
      %505 = vmatprep.subr.mxu0 0.0
      %506 = vmatpush1.msra.mxu0 0.0
      %507 = vmatprep.mubr.f32.mxu0 0.0
      %508 = vmatmul.mubr.f32.gmra.mrb[0].mxu0 %v437
      %v509 = vpop.f32.mrb[0].mxu0
      %v510 = vadd.f32 0.0, %v509
      %v511 = vpop.f32.mrb[0].mxu0
      %512 = vdwg.mxu0
      %v513 = vmax.f32 %v510, 0.0
      %v514 = vld [vmem:[%s5] sm:$0xff]
      %v515 = vld [vmem:[%s6] sm:$0xff]
      %517 = vrot.lane.b32.xlu0 %v513, 1
      %v518 = vpop.permute.xlu0 %517
      %vm520 = vcmask 7168
      %v521 = vsel %vm520, 0.0, %v518
      %vm522 = vcmask 39936
      %v523 = vsel %vm522, %v521, 0.0
      %525 = vrot.lane.b32.xlu0 %v523, 127
      %v526 = vpop.permute.xlu0 %525
      %528 = vrot.lane.b32.xlu0 %v523, 126
      %v529 = vpop.permute.xlu0 %528
      %532 = vset.pattern.permute.xlu0 0
      %533 = vperm.xlu0 %532, %v515
      %v534 = vpop.permute.xlu0 %533
      %v537 = vsel %vm360, %v514, 0
      %539 = vmatprep.subr.mxu0 0.0
      %540 = vmatpush1.msra.mxu0 %v523
      %541 = vmatprep.subr.mxu0 0.0
      %542 = vmatpush1.msra.mxu0 %v526
      %543 = vmatprep.subr.mxu0 0.0
      %544 = vmatpush1.msra.mxu0 %v529
      %545 = vmatprep.subr.mxu0 0.0
      %546 = vmatpush1.msra.mxu0 0.0
      %547 = vmatprep.subr.mxu0 0.0
      %548 = vmatpush1.msra.mxu0 0.0
      %549 = vmatprep.subr.mxu0 0.0
      %550 = vmatpush1.msra.mxu0 0.0
      %551 = vmatprep.subr.mxu0 0.0
      %552 = vmatpush1.msra.mxu0 0.0
      %553 = vmatprep.subr.mxu0 0.0
      %554 = vmatpush1.msra.mxu0 0.0
      %555 = vmatprep.subr.mxu0 0.0
      %556 = vmatpush1.msra.mxu0 0.0
      %557 = vmatprep.subr.mxu0 0.0
      %558 = vmatpush1.msra.mxu0 0.0
      %559 = vmatprep.subr.mxu0 0.0
      %560 = vmatpush1.msra.mxu0 0.0
      %561 = vmatprep.subr.mxu0 0.0
      %562 = vmatpush1.msra.mxu0 0.0
      %563 = vmatprep.subr.mxu0 0.0
      %564 = vmatpush1.msra.mxu0 0.0
      %565 = vmatprep.subr.mxu0 0.0
      %566 = vmatpush1.msra.mxu0 0.0
      %567 = vmatprep.subr.mxu0 0.0
      %568 = vmatpush1.msra.mxu0 0.0
      %569 = vmatprep.subr.mxu0 0.0
      %570 = vmatpush1.msra.mxu0 0.0
      %571 = vmatprep.subr.mxu0 0.0
      %572 = vmatpush1.msra.mxu0 0.0
      %573 = vmatprep.subr.mxu0 0.0
      %574 = vmatpush1.msra.mxu0 0.0
      %575 = vmatprep.subr.mxu0 0.0
      %576 = vmatpush1.msra.mxu0 0.0
      %577 = vmatprep.subr.mxu0 0.0
      %578 = vmatpush1.msra.mxu0 0.0
      %579 = vmatprep.subr.mxu0 0.0
      %580 = vmatpush1.msra.mxu0 0.0
      %581 = vmatprep.subr.mxu0 0.0
      %582 = vmatpush1.msra.mxu0 0.0
      %583 = vmatprep.subr.mxu0 0.0
      %584 = vmatpush1.msra.mxu0 0.0
      %585 = vmatprep.subr.mxu0 0.0
      %586 = vmatpush1.msra.mxu0 0.0
      %587 = vmatprep.subr.mxu0 0.0
      %588 = vmatpush1.msra.mxu0 0.0
      %589 = vmatprep.subr.mxu0 0.0
      %590 = vmatpush1.msra.mxu0 0.0
      %591 = vmatprep.subr.mxu0 0.0
      %592 = vmatpush1.msra.mxu0 0.0
      %593 = vmatprep.subr.mxu0 0.0
      %594 = vmatpush1.msra.mxu0 0.0
      %595 = vmatprep.subr.mxu0 0.0
      %596 = vmatpush1.msra.mxu0 0.0
      %597 = vmatprep.subr.mxu0 0.0
      %598 = vmatpush1.msra.mxu0 0.0
      %599 = vmatprep.subr.mxu0 0.0
      %600 = vmatpush1.msra.mxu0 0.0
      %601 = vmatprep.subr.mxu0 0.0
      %602 = vmatpush1.msra.mxu0 0.0
      %603 = vmatprep.mubr.f32.mxu0 0.0
      %604 = vmatmul.mubr.f32.gmra.mrb[0].mxu0 %v537
      %v605 = vpop.f32.mrb[0].mxu0
      %v606 = vadd.f32 %v534, %v605
      %v607 = vpop.f32.mrb[0].mxu0
      %608 = vdwg.mxu0
      %v609 = vsel %vm346, %v328, 0.0
      %v610 = vld [vmem:[%s8] sm:$0xff]
      %v611 = vld [vmem:[%s8 + $0x8] sm:$0x1]
      %vm612 = vcmask 72704
      %v614 = vsel %vm612, %v609, 0
      %vm616 = vcmask 1040384
      %v618 = vsel %vm616, %v611, 0
      %620 = vmatprep.subr.mxu0 0.0
      %621 = vmatpush1.msra.mxu0 %v610
      %622 = vmatprep.subr.mxu0 0.0
      %623 = vmatpush1.msra.mxu0 %v618
      %624 = vmatprep.subr.mxu0 0.0
      %625 = vmatpush1.msra.mxu0 0.0
      %626 = vmatprep.subr.mxu0 0.0
      %627 = vmatpush1.msra.mxu0 0.0
      %628 = vmatprep.subr.mxu0 0.0
      %629 = vmatpush1.msra.mxu0 0.0
      %630 = vmatprep.subr.mxu0 0.0
      %631 = vmatpush1.msra.mxu0 0.0
      %632 = vmatprep.subr.mxu0 0.0
      %633 = vmatpush1.msra.mxu0 0.0
      %634 = vmatprep.subr.mxu0 0.0
      %635 = vmatpush1.msra.mxu0 0.0
      %636 = vmatprep.subr.mxu0 0.0
      %637 = vmatpush1.msra.mxu0 0.0
      %638 = vmatprep.subr.mxu0 0.0
      %639 = vmatpush1.msra.mxu0 0.0
      %640 = vmatprep.subr.mxu0 0.0
      %641 = vmatpush1.msra.mxu0 0.0
      %642 = vmatprep.subr.mxu0 0.0
      %643 = vmatpush1.msra.mxu0 0.0
      %644 = vmatprep.subr.mxu0 0.0
      %645 = vmatpush1.msra.mxu0 0.0
      %646 = vmatprep.subr.mxu0 0.0
      %647 = vmatpush1.msra.mxu0 0.0
      %648 = vmatprep.subr.mxu0 0.0
      %649 = vmatpush1.msra.mxu0 0.0
      %650 = vmatprep.subr.mxu0 0.0
      %651 = vmatpush1.msra.mxu0 0.0
      %652 = vmatprep.subr.mxu0 0.0
      %653 = vmatpush1.msra.mxu0 0.0
      %654 = vmatprep.subr.mxu0 0.0
      %655 = vmatpush1.msra.mxu0 0.0
      %656 = vmatprep.subr.mxu0 0.0
      %657 = vmatpush1.msra.mxu0 0.0
      %658 = vmatprep.subr.mxu0 0.0
      %659 = vmatpush1.msra.mxu0 0.0
      %660 = vmatprep.subr.mxu0 0.0
      %661 = vmatpush1.msra.mxu0 0.0
      %662 = vmatprep.subr.mxu0 0.0
      %663 = vmatpush1.msra.mxu0 0.0
      %664 = vmatprep.subr.mxu0 0.0
      %665 = vmatpush1.msra.mxu0 0.0
      %666 = vmatprep.subr.mxu0 0.0
      %667 = vmatpush1.msra.mxu0 0.0
      %668 = vmatprep.subr.mxu0 0.0
      %669 = vmatpush1.msra.mxu0 0.0
      %670 = vmatprep.subr.mxu0 0.0
      %671 = vmatpush1.msra.mxu0 0.0
      %672 = vmatprep.subr.mxu0 0.0
      %673 = vmatpush1.msra.mxu0 0.0
      %674 = vmatprep.subr.mxu0 0.0
      %675 = vmatpush1.msra.mxu0 0.0
      %676 = vmatprep.subr.mxu0 0.0
      %677 = vmatpush1.msra.mxu0 0.0
      %678 = vmatprep.subr.mxu0 0.0
      %679 = vmatpush1.msra.mxu0 0.0
      %680 = vmatprep.subr.mxu0 0.0
      %681 = vmatpush1.msra.mxu0 0.0
      %682 = vmatprep.subr.mxu0 0.0
      %683 = vmatpush1.msra.mxu0 0.0
      %684 = vmatprep.mubr.f32.mxu0 0.0
      %685 = vmatmul.mubr.f32.gmra.mrb[0].mxu0 %v614
      %v686 = vpop.f32.mrb[0].mxu0
      %v687 = vadd.f32 0.0, %v686
      %v688 = vpop.f32.mrb[0].mxu0
      %689 = vdwg.mxu0
      %s690 = scalar_lea.vmem %s8, 16
      %v691 = vld [vmem:[%s690] sm:$0xff]
      %v692 = vld [vmem:[%s690 + $0x8] sm:$0x1]
      %v694 = vsel %vm616, %v692, 0
      %696 = vmatprep.subr.mxu0 0.0
      %697 = vmatpush1.msra.mxu0 %v691
      %698 = vmatprep.subr.mxu0 0.0
      %699 = vmatpush1.msra.mxu0 %v694
      %700 = vmatprep.subr.mxu0 0.0
      %701 = vmatpush1.msra.mxu0 0.0
      %702 = vmatprep.subr.mxu0 0.0
      %703 = vmatpush1.msra.mxu0 0.0
      %704 = vmatprep.subr.mxu0 0.0
      %705 = vmatpush1.msra.mxu0 0.0
      %706 = vmatprep.subr.mxu0 0.0
      %707 = vmatpush1.msra.mxu0 0.0
      %708 = vmatprep.subr.mxu0 0.0
      %709 = vmatpush1.msra.mxu0 0.0
      %710 = vmatprep.subr.mxu0 0.0
      %711 = vmatpush1.msra.mxu0 0.0
      %712 = vmatprep.subr.mxu0 0.0
      %713 = vmatpush1.msra.mxu0 0.0
      %714 = vmatprep.subr.mxu0 0.0
      %715 = vmatpush1.msra.mxu0 0.0
      %716 = vmatprep.subr.mxu0 0.0
      %717 = vmatpush1.msra.mxu0 0.0
      %718 = vmatprep.subr.mxu0 0.0
      %719 = vmatpush1.msra.mxu0 0.0
      %720 = vmatprep.subr.mxu0 0.0
      %721 = vmatpush1.msra.mxu0 0.0
      %722 = vmatprep.subr.mxu0 0.0
      %723 = vmatpush1.msra.mxu0 0.0
      %724 = vmatprep.subr.mxu0 0.0
      %725 = vmatpush1.msra.mxu0 0.0
      %726 = vmatprep.subr.mxu0 0.0
      %727 = vmatpush1.msra.mxu0 0.0
      %728 = vmatprep.subr.mxu0 0.0
      %729 = vmatpush1.msra.mxu0 0.0
      %730 = vmatprep.subr.mxu0 0.0
      %731 = vmatpush1.msra.mxu0 0.0
      %732 = vmatprep.subr.mxu0 0.0
      %733 = vmatpush1.msra.mxu0 0.0
      %734 = vmatprep.subr.mxu0 0.0
      %735 = vmatpush1.msra.mxu0 0.0
      %736 = vmatprep.subr.mxu0 0.0
      %737 = vmatpush1.msra.mxu0 0.0
      %738 = vmatprep.subr.mxu0 0.0
      %739 = vmatpush1.msra.mxu0 0.0
      %740 = vmatprep.subr.mxu0 0.0
      %741 = vmatpush1.msra.mxu0 0.0
      %742 = vmatprep.subr.mxu0 0.0
      %743 = vmatpush1.msra.mxu0 0.0
      %744 = vmatprep.subr.mxu0 0.0
      %745 = vmatpush1.msra.mxu0 0.0
      %746 = vmatprep.subr.mxu0 0.0
      %747 = vmatpush1.msra.mxu0 0.0
      %748 = vmatprep.subr.mxu0 0.0
      %749 = vmatpush1.msra.mxu0 0.0
      %750 = vmatprep.subr.mxu0 0.0
      %751 = vmatpush1.msra.mxu0 0.0
      %752 = vmatprep.subr.mxu0 0.0
      %753 = vmatpush1.msra.mxu0 0.0
      %754 = vmatprep.subr.mxu0 0.0
      %755 = vmatpush1.msra.mxu0 0.0
      %756 = vmatprep.subr.mxu0 0.0
      %757 = vmatpush1.msra.mxu0 0.0
      %758 = vmatprep.subr.mxu0 0.0
      %759 = vmatpush1.msra.mxu0 0.0
      %760 = vmatprep.mubr.f32.mxu0 0.0
      %761 = vmatmul.mubr.f32.gmra.mrb[0].mxu0 %v614
      %v762 = vpop.f32.mrb[0].mxu0
      %v763 = vadd.f32 0.0, %v762
      %v764 = vpop.f32.mrb[0].mxu0
      %765 = vdwg.mxu0
      %v766 = vmax.f32 %v687, %v763
      %v767 = vadd.f32 %v606, %v766
      %vm768 = vcmask 31744
      %769 = vst.msk [vmem:[%s327] sm:$0xff] %vm768, %v767
      %p770 = scmp.lt.s32.totalorder %s20, 1
      %s771 = scalar_select %p770, %s20, 1
      %s772 = smul.addr %s771, 8
      %s773 = scalar_lea.vmem %s9, %s772
      // Predicated region
      $region57: #{resnet1d_forward.11} parent=55 // pred_check
        %p774 = pneg %p232
      $region58: #{resnet1d_forward.11} parent=55 // pred_check_branch
        %776 = sbr.rel (%p774) target = $region60
      $region59: #{resnet1d_forward.11} parent=55 // pred_region
        _
      $region60: #{resnet1d_forward.11} parent=55 // pred_fallthru
        _
    $region56: #{resnet1d_forward.11} parent=5 // pred_fallthru
      _
    %p777 = scmp.le.s32.totalorder 2, %s15
    // Predicated region
    $region61: #{resnet1d_forward.11} parent=5 // pred_check
      %p778 = pneg %p777
    $region62: #{resnet1d_forward.11} parent=5 // pred_check_branch
      %780 = sbr.rel (%p778) target = $region64
    $region63: #{resnet1d_forward.11} parent=5 // pred_region
      %s781 = ssub.s32 %s15, 2
      // Predicated region
      $region65: #{resnet1d_forward.11} parent=63 // pred_check
        %p782 = pneg %p238
      $region66: #{resnet1d_forward.11} parent=63 // pred_check_branch
        %784 = sbr.rel (%p782) target = $region68
      $region67: #{resnet1d_forward.11} parent=63 // pred_region
        %p785 = scmp.lt.s32.totalorder %s21, 1
        %s786 = scalar_select %p785, %s21, 1
        %s787 = smul.addr %s786, 8
        %s788 = scalar_lea.vmem %s9, %s787
      $region68: #{resnet1d_forward.11} parent=63 // pred_fallthru
        _
    $region64: #{resnet1d_forward.11} parent=5 // pred_fallthru
      _
  $region6: #{resnet1d_forward.11} parent=0 // loop_footer
    %s19 = sadd.s32 1, %s15
  $region7: #{resnet1d_forward.11} parent=0 // loop_footer_branch
    %14 = sbr.rel target = $region3
  $region8: #{resnet1d_forward.11} parent=0 // loop_exit
    _

// kernel: resnet1d_forward.12
$region0: #{resnet1d_forward.12}
  #allocation0 [shape = 'u32[]', space=smem, size = 0x4, offset = 0x4, fixed_abs, tag = 'smem constant byte address 0x4 - core index']
  #allocation1 [shape = 'u32[144,128]{1,0:T(1,128)}', space=vmem, size = 0x12000, scoped, tag = 'internal scratch']
  %s0 = inlined_call_operand.vmem [shape: f32[2,8,4], index: 0, kind: input, shape index: {}]
  %s1 = inlined_call_operand.vmem [shape: f32[8,1], index: 1, kind: input, shape index: {}]
  %s2 = inlined_call_operand.vmem [shape: f32[8,1], index: 2, kind: input, shape index: {}]
  %s3 = inlined_call_operand.vmem [shape: f32[16,24], index: 3, kind: input, shape index: {}]
  %s4 = inlined_call_operand.vmem [shape: f32[16,1], index: 4, kind: input, shape index: {}]
  %s5 = inlined_call_operand.vmem [shape: f32[16,48], index: 5, kind: input, shape index: {}]
  %s6 = inlined_call_operand.vmem [shape: f32[16,1], index: 6, kind: input, shape index: {}]
  %s7 = inlined_call_operand.vmem [shape: f32[2,16,4], index: 7, kind: output, shape index: {}]
  %s8 = sld [smem:[#allocation0]]
  $region61: #{resnet1d_forward.12} parent=0
    _
  %s10 = ssub.s32 1, %s8
  %s11 = scalar_select 0, %s10, %s8
  loop: start=0, step=1, limit=4
  $region2: #{resnet1d_forward.12} parent=0 // loop_pre_header
    _
  $region3: #{resnet1d_forward.12} parent=0 // loop_header
    %s13 = sphi 0, %s17
    %p14 = scmp.ge.s32.totalorder %s13, 4
    %s23 = sphi 0, %s25
    %s26 = sphi 0, %s23
    %s27 = sphi 0, %s26
    %s43 = sphi 0, %s27
    %s47 = sphi 0, %s47
    %s49 = sphi 0, %s47
    %s50 = sphi 0, %s49
    %s64 = sphi 0, %s50
    %s68 = sphi 0, %s68
    %s70 = sphi 0, %s68
    %s71 = sphi 0, %s70
    %s85 = sphi 0, %s71
    %s89 = sphi 0, %s89
    %s91 = sphi 0, %s89
    %s92 = sphi 0, %s91
    %s106 = sphi 0, %s92
    %s110 = sphi 0, %s110
    %s112 = sphi 0, %s110
    %s113 = sphi 0, %s112
    %s127 = sphi 0, %s113
    %s131 = sphi 0, %s131
    %s133 = sphi 0, %s131
    %s134 = sphi 0, %s133
    %s148 = sphi 0, %s134
    %s152 = sphi 0, %s152
    %s154 = sphi 0, %s152
    %s155 = sphi 0, %s154
    %s169 = sphi 0, %s155
    %s175 = sphi 0, %s177
    %s178 = sphi 0, %s175
    %s179 = sphi 0, %s178
    %s195 = sphi 0, %s179
  $region4: #{resnet1d_forward.12} parent=0 // loop_header_branch
    %16 = sbr.rel (%p14) target = $region8
  $region5: #{resnet1d_forward.12} parent=0 // loop_body
    %s18 = ssub.s32 %s13, 1
    %s19 = ssub.s32 %s13, 2
    %s20 = sadd.s32 %s13, 1
    %s21 = ssub.s32 %s13, %s20
    %p22 = scmp.eq.s32.totalorder %s21, 0
    %s24 = sadd.s32 %s23, 1
    %s25 = scalar_select %p22, %s23, %s24
    %p28 = pneg %p22
    %p29 = scmp.eq.s32.totalorder %s13, 1
    %p30 = por %p28, %p29
    %p31 = scmp.ne.s32.totalorder %s23, %s26
    %p32 = scmp.eq.s32.totalorder %s13, 0
    %p33 = por %p31, %p32
    %p34 = scmp.ne.s32.totalorder %s23, %s26
    %p35 = scmp.eq.s32.totalorder %s18, 1
    %p36 = por %p34, %p35
    %p37 = scmp.ne.s32.totalorder %s26, %s27
    %p38 = scmp.eq.s32.totalorder %s18, 0
    %p39 = por %p37, %p38
    %p40 = scmp.ne.s32.totalorder %s26, %s27
    %p41 = scmp.eq.s32.totalorder %s19, 1
    %p42 = por %p40, %p41
    %p44 = scmp.ne.s32.totalorder %s27, %s43
    %p45 = scmp.eq.s32.totalorder %s19, 0
    %p46 = por %p44, %p45
    %s48 = sadd.s32 %s47, 1
    %p51 = scmp.eq.s32.totalorder %s13, 1
    %p52 = scmp.ne.s32.totalorder %s47, %s49
    %p53 = scmp.eq.s32.totalorder %s13, 0
    %p54 = por %p52, %p53
    %p55 = scmp.ne.s32.totalorder %s47, %s49
    %p56 = scmp.eq.s32.totalorder %s18, 1
    %p57 = por %p55, %p56
    %p58 = scmp.ne.s32.totalorder %s49, %s50
    %p59 = scmp.eq.s32.totalorder %s18, 0
    %p60 = por %p58, %p59
    %p61 = scmp.ne.s32.totalorder %s49, %s50
    %p62 = scmp.eq.s32.totalorder %s19, 1
    %p63 = por %p61, %p62
    %p65 = scmp.ne.s32.totalorder %s50, %s64
    %p66 = scmp.eq.s32.totalorder %s19, 0
    %p67 = por %p65, %p66
    %s69 = sadd.s32 %s68, 1
    %p72 = scmp.eq.s32.totalorder %s13, 1
    %p73 = scmp.ne.s32.totalorder %s68, %s70
    %p74 = scmp.eq.s32.totalorder %s13, 0
    %p75 = por %p73, %p74
    %p76 = scmp.ne.s32.totalorder %s68, %s70
    %p77 = scmp.eq.s32.totalorder %s18, 1
    %p78 = por %p76, %p77
    %p79 = scmp.ne.s32.totalorder %s70, %s71
    %p80 = scmp.eq.s32.totalorder %s18, 0
    %p81 = por %p79, %p80
    %p82 = scmp.ne.s32.totalorder %s70, %s71
    %p83 = scmp.eq.s32.totalorder %s19, 1
    %p84 = por %p82, %p83
    %p86 = scmp.ne.s32.totalorder %s71, %s85
    %p87 = scmp.eq.s32.totalorder %s19, 0
    %p88 = por %p86, %p87
    %s90 = sadd.s32 %s89, 1
    %p93 = scmp.eq.s32.totalorder %s13, 1
    %p94 = scmp.ne.s32.totalorder %s89, %s91
    %p95 = scmp.eq.s32.totalorder %s13, 0
    %p96 = por %p94, %p95
    %p97 = scmp.ne.s32.totalorder %s89, %s91
    %p98 = scmp.eq.s32.totalorder %s18, 1
    %p99 = por %p97, %p98
    %p100 = scmp.ne.s32.totalorder %s91, %s92
    %p101 = scmp.eq.s32.totalorder %s18, 0
    %p102 = por %p100, %p101
    %p103 = scmp.ne.s32.totalorder %s91, %s92
    %p104 = scmp.eq.s32.totalorder %s19, 1
    %p105 = por %p103, %p104
    %p107 = scmp.ne.s32.totalorder %s92, %s106
    %p108 = scmp.eq.s32.totalorder %s19, 0
    %p109 = por %p107, %p108
    %s111 = sadd.s32 %s110, 1
    %p114 = scmp.eq.s32.totalorder %s13, 1
    %p115 = scmp.ne.s32.totalorder %s110, %s112
    %p116 = scmp.eq.s32.totalorder %s13, 0
    %p117 = por %p115, %p116
    %p118 = scmp.ne.s32.totalorder %s110, %s112
    %p119 = scmp.eq.s32.totalorder %s18, 1
    %p120 = por %p118, %p119
    %p121 = scmp.ne.s32.totalorder %s112, %s113
    %p122 = scmp.eq.s32.totalorder %s18, 0
    %p123 = por %p121, %p122
    %p124 = scmp.ne.s32.totalorder %s112, %s113
    %p125 = scmp.eq.s32.totalorder %s19, 1
    %p126 = por %p124, %p125
    %p128 = scmp.ne.s32.totalorder %s113, %s127
    %p129 = scmp.eq.s32.totalorder %s19, 0
    %p130 = por %p128, %p129
    %s132 = sadd.s32 %s131, 1
    %p135 = scmp.eq.s32.totalorder %s13, 1
    %p136 = scmp.ne.s32.totalorder %s131, %s133
    %p137 = scmp.eq.s32.totalorder %s13, 0
    %p138 = por %p136, %p137
    %p139 = scmp.ne.s32.totalorder %s131, %s133
    %p140 = scmp.eq.s32.totalorder %s18, 1
    %p141 = por %p139, %p140
    %p142 = scmp.ne.s32.totalorder %s133, %s134
    %p143 = scmp.eq.s32.totalorder %s18, 0
    %p144 = por %p142, %p143
    %p145 = scmp.ne.s32.totalorder %s133, %s134
    %p146 = scmp.eq.s32.totalorder %s19, 1
    %p147 = por %p145, %p146
    %p149 = scmp.ne.s32.totalorder %s134, %s148
    %p150 = scmp.eq.s32.totalorder %s19, 0
    %p151 = por %p149, %p150
    %s153 = sadd.s32 %s152, 1
    %p156 = scmp.eq.s32.totalorder %s13, 1
    %p157 = scmp.ne.s32.totalorder %s152, %s154
    %p158 = scmp.eq.s32.totalorder %s13, 0
    %p159 = por %p157, %p158
    %p160 = scmp.ne.s32.totalorder %s152, %s154
    %p161 = scmp.eq.s32.totalorder %s18, 1
    %p162 = por %p160, %p161
    %p163 = scmp.ne.s32.totalorder %s154, %s155
    %p164 = scmp.eq.s32.totalorder %s18, 0
    %p165 = por %p163, %p164
    %p166 = scmp.ne.s32.totalorder %s154, %s155
    %p167 = scmp.eq.s32.totalorder %s19, 1
    %p168 = por %p166, %p167
    %p170 = scmp.ne.s32.totalorder %s155, %s169
    %p171 = scmp.eq.s32.totalorder %s19, 0
    %p172 = por %p170, %p171
    %s173 = ssub.s32 %s13, %s20
    %p174 = scmp.eq.s32.totalorder %s173, 0
    %s176 = sadd.s32 %s175, 1
    %s177 = scalar_select %p174, %s175, %s176
    %p180 = pneg %p174
    %p181 = scmp.eq.s32.totalorder %s13, 1
    %p182 = por %p180, %p181
    %p183 = scmp.ne.s32.totalorder %s175, %s178
    %p184 = scmp.eq.s32.totalorder %s13, 0
    %p185 = por %p183, %p184
    %p186 = scmp.ne.s32.totalorder %s175, %s178
    %p187 = scmp.eq.s32.totalorder %s18, 1
    %p188 = por %p186, %p187
    %p189 = scmp.ne.s32.totalorder %s178, %s179
    %p190 = scmp.eq.s32.totalorder %s18, 0
    %p191 = por %p189, %p190
    %p192 = scmp.ne.s32.totalorder %s178, %s179
    %p193 = scmp.eq.s32.totalorder %s19, 1
    %p194 = por %p192, %p193
    %p196 = scmp.ne.s32.totalorder %s179, %s195
    %p197 = scmp.eq.s32.totalorder %s19, 0
    %p198 = por %p196, %p197
    %p199 = scmp.le.s32.totalorder 1, %s13
    %p200 = scmp.lt.s32.totalorder %s13, 3
    %p201 = pnand %p199, %p200
    %p202 = pneg %p201
    // Predicated region
    $region9: #{resnet1d_forward.12} parent=5 // pred_check
      _
    $region10: #{resnet1d_forward.12} parent=5 // pred_check_branch
      %204 = sbr.rel (%p201) target = $region12
    $region11: #{resnet1d_forward.12} parent=5 // pred_region
      %s205 = ssub.s32 %s13, 1
      // Predicated region
      $region13: #{resnet1d_forward.12} parent=11 // pred_check
        %p206 = pneg %p60
      $region14: #{resnet1d_forward.12} parent=11 // pred_check_branch
        %208 = sbr.rel (%p206) target = $region16
      $region15: #{resnet1d_forward.12} parent=11 // pred_region
        _
      $region16: #{resnet1d_forward.12} parent=11 // pred_fallthru
        _
      // Predicated region
      $region17: #{resnet1d_forward.12} parent=11 // pred_check
        %p209 = pneg %p81
      $region18: #{resnet1d_forward.12} parent=11 // pred_check_branch
        %211 = sbr.rel (%p209) target = $region20
      $region19: #{resnet1d_forward.12} parent=11 // pred_region
        _
      $region20: #{resnet1d_forward.12} parent=11 // pred_fallthru
        _
      // Predicated region
      $region21: #{resnet1d_forward.12} parent=11 // pred_check
        %p212 = pneg %p102
      $region22: #{resnet1d_forward.12} parent=11 // pred_check_branch
        %214 = sbr.rel (%p212) target = $region24
      $region23: #{resnet1d_forward.12} parent=11 // pred_region
        _
      $region24: #{resnet1d_forward.12} parent=11 // pred_fallthru
        _
      // Predicated region
      $region25: #{resnet1d_forward.12} parent=11 // pred_check
        %p215 = pneg %p123
      $region26: #{resnet1d_forward.12} parent=11 // pred_check_branch
        %217 = sbr.rel (%p215) target = $region28
      $region27: #{resnet1d_forward.12} parent=11 // pred_region
        _
      $region28: #{resnet1d_forward.12} parent=11 // pred_fallthru
        _
      // Predicated region
      $region29: #{resnet1d_forward.12} parent=11 // pred_check
        %p218 = pneg %p144
      $region30: #{resnet1d_forward.12} parent=11 // pred_check_branch
        %220 = sbr.rel (%p218) target = $region32
      $region31: #{resnet1d_forward.12} parent=11 // pred_region
        _
      $region32: #{resnet1d_forward.12} parent=11 // pred_fallthru
        _
      // Predicated region
      $region33: #{resnet1d_forward.12} parent=11 // pred_check
        %p221 = pneg %p165
      $region34: #{resnet1d_forward.12} parent=11 // pred_check_branch
        %223 = sbr.rel (%p221) target = $region36
      $region35: #{resnet1d_forward.12} parent=11 // pred_region
        _
      $region36: #{resnet1d_forward.12} parent=11 // pred_fallthru
        _
    $region12: #{resnet1d_forward.12} parent=5 // pred_fallthru
      _
    %p224 = scmp.lt.s32.totalorder %s13, 2
    // Predicated region
    $region37: #{resnet1d_forward.12} parent=5 // pred_check
      %p225 = pneg %p224
    $region38: #{resnet1d_forward.12} parent=5 // pred_check_branch
      %227 = sbr.rel (%p225) target = $region40
    $region39: #{resnet1d_forward.12} parent=5 // pred_region
      // Predicated region
      $region41: #{resnet1d_forward.12} parent=39 // pred_check
        %p228 = pneg %p33
      $region42: #{resnet1d_forward.12} parent=39 // pred_check_branch
        %230 = sbr.rel (%p228) target = $region44
      $region43: #{resnet1d_forward.12} parent=39 // pred_region
        %p231 = scmp.lt.s32.totalorder %s13, 1
        %s232 = scalar_select %p231, %s13, 1
        %s233 = smul.addr %s232, 8
        %s234 = scalar_lea.vmem %s0, %s233
      $region44: #{resnet1d_forward.12} parent=39 // pred_fallthru
        _
    $region40: #{resnet1d_forward.12} parent=5 // pred_fallthru
      _
    %p235 = scmp.le.s32.totalorder 1, %s13
    %p236 = scmp.lt.s32.totalorder %s13, 3
    %p237 = pnand %p235, %p236
    %p238 = pneg %p237
    // Predicated region
    $region45: #{resnet1d_forward.12} parent=5 // pred_check
      _
    $region46: #{resnet1d_forward.12} parent=5 // pred_check_branch
      %240 = sbr.rel (%p237) target = $region48
    $region47: #{resnet1d_forward.12} parent=5 // pred_region
      %s241 = ssub.s32 %s13, 1
      %p242 = scmp.lt.s32.totalorder %s18, 1
      %s243 = scalar_select %p242, %s18, 1
      %s244 = smul.addr %s243, 8
      %s245 = scalar_lea.vmem %s0, %s244
      %p246 = pneg %p39
      %p247 = pneg %p36
      %p248 = pneg %p60
      %p249 = pneg %p57
      %p250 = pneg %p81
      %p251 = pneg %p78
      %p252 = pneg %p102
      %p253 = pneg %p99
      %p254 = pneg %p123
      %p255 = pneg %p120
      %p256 = pneg %p144
      %p257 = pneg %p141
      %p258 = pneg %p165
      %p259 = pneg %p162
      %p260 = pneg %p191
      %p261 = pneg %p188
      %p262 = scmp.lt.s32.totalorder %s18, 1
      %s263 = scalar_select %p262, %s18, 1
      %s264 = smul.addr %s263, 2
      %s265 = smul.addr %s264, 8
      %s266 = scalar_lea.vmem %s7, %s265
      %p267 = scmp.lt.s32.totalorder %s18, 1
      %s268 = scalar_select %p267, %s18, 1
      %s269 = smul.addr %s268, 8
      %s270 = scalar_lea.vmem %s0, %s269
      %p271 = scmp.lt.s32.totalorder %s18, 1
      %s272 = scalar_select %p271, %s18, 1
      %s273 = smul.addr %s272, 2
      %s274 = smul.addr %s273, 8
      %s275 = scalar_lea.vmem %s7, %s274
      %v276 = vld [vmem:[%s270] sm:$0xff]
      %v277 = vld [vmem:[%s1] sm:$0xff]
      %279 = vset.pattern.permute.xlu0 0
      %280 = vperm.xlu0 %279, %v277
      %v281 = vpop.permute.xlu0 %280
      %v283 = vmul.f32 %v276, %v281
      %v284 = vld [vmem:[%s2] sm:$0xff]
      %286 = vset.pattern.permute.xlu0 0
      %287 = vperm.xlu0 %286, %v284
      %v288 = vpop.permute.xlu0 %287
      %v290 = vadd.f32 %v283, %v288
      %v291 = vmax.f32 %v290, 0.0
      %v292 = vld [vmem:[%s3] sm:$0xff]
      %v293 = vld [vmem:[%s3 + $0x8] sm:$0xff]
      %v294 = vld [vmem:[%s4] sm:$0xff]
      %v295 = vld [vmem:[%s4 + $0x8] sm:$0xff]
      %297 = vrot.lane.b32.xlu0 %v291, 1
      %v298 = vpop.permute.xlu0 %297
      %vm300 = vcmask 7168
      %v301 = vsel %vm300, 0.0, %v298
      %vm302 = vcmask 39936
      %v303 = vsel %vm302, %v301, 0.0
      %305 = vrot.lane.b32.xlu0 %v303, 127
      %v306 = vpop.permute.xlu0 %305
      %308 = vrot.lane.b32.xlu0 %v303, 126
      %v309 = vpop.permute.xlu0 %308
      %312 = vset.pattern.permute.xlu0 0
      %313 = vperm.xlu0 %312, %v294
      %v314 = vpop.permute.xlu0 %313
      %317 = vset.pattern.permute.xlu0 0
      %318 = vperm.xlu0 %317, %v295
      %v319 = vpop.permute.xlu0 %318
      %vm321 = vcmask 195584
      %v323 = vsel %vm321, %v292, 0
      %v326 = vsel %vm321, %v293, 0
      %328 = vmatprep.subr.mxu0 0.0
      %329 = vmatpush1.msra.mxu0 %v303
      %330 = vmatprep.subr.mxu0 0.0
      %331 = vmatpush1.msra.mxu0 %v306
      %332 = vmatprep.subr.mxu0 0.0
      %333 = vmatpush1.msra.mxu0 %v309
      %334 = vmatprep.subr.mxu0 0.0
      %335 = vmatpush1.msra.mxu0 0.0
      %336 = vmatprep.subr.mxu0 0.0
      %337 = vmatpush1.msra.mxu0 0.0
      %338 = vmatprep.subr.mxu0 0.0
      %339 = vmatpush1.msra.mxu0 0.0
      %340 = vmatprep.subr.mxu0 0.0
      %341 = vmatpush1.msra.mxu0 0.0
      %342 = vmatprep.subr.mxu0 0.0
      %343 = vmatpush1.msra.mxu0 0.0
      %344 = vmatprep.subr.mxu0 0.0
      %345 = vmatpush1.msra.mxu0 0.0
      %346 = vmatprep.subr.mxu0 0.0
      %347 = vmatpush1.msra.mxu0 0.0
      %348 = vmatprep.subr.mxu0 0.0
      %349 = vmatpush1.msra.mxu0 0.0
      %350 = vmatprep.subr.mxu0 0.0
      %351 = vmatpush1.msra.mxu0 0.0
      %352 = vmatprep.subr.mxu0 0.0
      %353 = vmatpush1.msra.mxu0 0.0
      %354 = vmatprep.subr.mxu0 0.0
      %355 = vmatpush1.msra.mxu0 0.0
      %356 = vmatprep.subr.mxu0 0.0
      %357 = vmatpush1.msra.mxu0 0.0
      %358 = vmatprep.subr.mxu0 0.0
      %359 = vmatpush1.msra.mxu0 0.0
      %360 = vmatprep.subr.mxu0 0.0
      %361 = vmatpush1.msra.mxu0 0.0
      %362 = vmatprep.subr.mxu0 0.0
      %363 = vmatpush1.msra.mxu0 0.0
      %364 = vmatprep.subr.mxu0 0.0
      %365 = vmatpush1.msra.mxu0 0.0
      %366 = vmatprep.subr.mxu0 0.0
      %367 = vmatpush1.msra.mxu0 0.0
      %368 = vmatprep.subr.mxu0 0.0
      %369 = vmatpush1.msra.mxu0 0.0
      %370 = vmatprep.subr.mxu0 0.0
      %371 = vmatpush1.msra.mxu0 0.0
      %372 = vmatprep.subr.mxu0 0.0
      %373 = vmatpush1.msra.mxu0 0.0
      %374 = vmatprep.subr.mxu0 0.0
      %375 = vmatpush1.msra.mxu0 0.0
      %376 = vmatprep.subr.mxu0 0.0
      %377 = vmatpush1.msra.mxu0 0.0
      %378 = vmatprep.subr.mxu0 0.0
      %379 = vmatpush1.msra.mxu0 0.0
      %380 = vmatprep.subr.mxu0 0.0
      %381 = vmatpush1.msra.mxu0 0.0
      %382 = vmatprep.subr.mxu0 0.0
      %383 = vmatpush1.msra.mxu0 0.0
      %384 = vmatprep.subr.mxu0 0.0
      %385 = vmatpush1.msra.mxu0 0.0
      %386 = vmatprep.subr.mxu0 0.0
      %387 = vmatpush1.msra.mxu0 0.0
      %388 = vmatprep.subr.mxu0 0.0
      %389 = vmatpush1.msra.mxu0 0.0
      %390 = vmatprep.subr.mxu0 0.0
      %391 = vmatpush1.msra.mxu0 0.0
      %392 = vmatprep.mubr.f32.mxu0 0.0
      %393 = vmatmul.mubr.f32.gmra.mrb[0].mxu0 %v323
      %v394 = vpop.f32.mrb[0].mxu0
      %v395 = vadd.f32 %v314, %v394
      %v396 = vpop.f32.mrb[0].mxu0
      %397 = vmatprep.mubr.f32.mxu0 0.0
      %398 = vmatmul.mubr.f32.gmra.mrb[0].mxu0 %v326
      %v399 = vpop.f32.mrb[0].mxu0
      %v400 = vadd.f32 %v319, %v399
      %v401 = vpop.f32.mrb[0].mxu0
      %402 = vdwg.mxu0
      %v403 = vmax.f32 %v395, 0.0
      %v404 = vmax.f32 %v400, 0.0
      %v405 = vld [vmem:[%s5] sm:$0xff]
      %v406 = vld [vmem:[%s5 + $0x8] sm:$0xff]
      %v407 = vld [vmem:[%s6] sm:$0xff]
      %v408 = vld [vmem:[%s6 + $0x8] sm:$0xff]
      %411 = vrot.lane.b32.xlu0 %v403, 1
      %v412 = vpop.permute.xlu0 %411
      %413 = vrot.lane.b32.xlu0 %v404, 1
      %v414 = vpop.permute.xlu0 %413
      %v417 = vsel %vm300, 0.0, %v412
      %v418 = vsel %vm300, 0.0, %v414
      %v419 = vsel %vm302, %v417, 0.0
      %v420 = vsel %vm302, %v418, 0.0
      %423 = vrot.lane.b32.xlu0 %v419, 127
      %v424 = vpop.permute.xlu0 %423
      %425 = vrot.lane.b32.xlu0 %v420, 127
      %v426 = vpop.permute.xlu0 %425
      %429 = vrot.lane.b32.xlu0 %v419, 126
      %v430 = vpop.permute.xlu0 %429
      %431 = vrot.lane.b32.xlu0 %v420, 126
      %v432 = vpop.permute.xlu0 %431
      %436 = vset.pattern.permute.xlu0 0
      %437 = vperm.xlu0 %436, %v407
      %v438 = vpop.permute.xlu0 %437
      %441 = vset.pattern.permute.xlu0 0
      %442 = vperm.xlu0 %441, %v408
      %v443 = vpop.permute.xlu0 %442
      %vm445 = vcmask 392192
      %v447 = vsel %vm445, %v405, 0
      %v450 = vsel %vm445, %v406, 0
      %452 = vmatprep.subr.mxu0 0.0
      %453 = vmatpush1.msra.mxu0 %v419
      %454 = vmatprep.subr.mxu0 0.0
      %455 = vmatpush1.msra.mxu0 %v420
      %456 = vmatprep.subr.mxu0 0.0
      %457 = vmatpush1.msra.mxu0 %v424
      %458 = vmatprep.subr.mxu0 0.0
      %459 = vmatpush1.msra.mxu0 %v426
      %460 = vmatprep.subr.mxu0 0.0
      %461 = vmatpush1.msra.mxu0 %v430
      %462 = vmatprep.subr.mxu0 0.0
      %463 = vmatpush1.msra.mxu0 %v432
      %464 = vmatprep.subr.mxu0 0.0
      %465 = vmatpush1.msra.mxu0 0.0
      %466 = vmatprep.subr.mxu0 0.0
      %467 = vmatpush1.msra.mxu0 0.0
      %468 = vmatprep.subr.mxu0 0.0
      %469 = vmatpush1.msra.mxu0 0.0
      %470 = vmatprep.subr.mxu0 0.0
      %471 = vmatpush1.msra.mxu0 0.0
      %472 = vmatprep.subr.mxu0 0.0
      %473 = vmatpush1.msra.mxu0 0.0
      %474 = vmatprep.subr.mxu0 0.0
      %475 = vmatpush1.msra.mxu0 0.0
      %476 = vmatprep.subr.mxu0 0.0
      %477 = vmatpush1.msra.mxu0 0.0
      %478 = vmatprep.subr.mxu0 0.0
      %479 = vmatpush1.msra.mxu0 0.0
      %480 = vmatprep.subr.mxu0 0.0
      %481 = vmatpush1.msra.mxu0 0.0
      %482 = vmatprep.subr.mxu0 0.0
      %483 = vmatpush1.msra.mxu0 0.0
      %484 = vmatprep.subr.mxu0 0.0
      %485 = vmatpush1.msra.mxu0 0.0
      %486 = vmatprep.subr.mxu0 0.0
      %487 = vmatpush1.msra.mxu0 0.0
      %488 = vmatprep.subr.mxu0 0.0
      %489 = vmatpush1.msra.mxu0 0.0
      %490 = vmatprep.subr.mxu0 0.0
      %491 = vmatpush1.msra.mxu0 0.0
      %492 = vmatprep.subr.mxu0 0.0
      %493 = vmatpush1.msra.mxu0 0.0
      %494 = vmatprep.subr.mxu0 0.0
      %495 = vmatpush1.msra.mxu0 0.0
      %496 = vmatprep.subr.mxu0 0.0
      %497 = vmatpush1.msra.mxu0 0.0
      %498 = vmatprep.subr.mxu0 0.0
      %499 = vmatpush1.msra.mxu0 0.0
      %500 = vmatprep.subr.mxu0 0.0
      %501 = vmatpush1.msra.mxu0 0.0
      %502 = vmatprep.subr.mxu0 0.0
      %503 = vmatpush1.msra.mxu0 0.0
      %504 = vmatprep.subr.mxu0 0.0
      %505 = vmatpush1.msra.mxu0 0.0
      %506 = vmatprep.subr.mxu0 0.0
      %507 = vmatpush1.msra.mxu0 0.0
      %508 = vmatprep.subr.mxu0 0.0
      %509 = vmatpush1.msra.mxu0 0.0
      %510 = vmatprep.subr.mxu0 0.0
      %511 = vmatpush1.msra.mxu0 0.0
      %512 = vmatprep.subr.mxu0 0.0
      %513 = vmatpush1.msra.mxu0 0.0
      %514 = vmatprep.subr.mxu0 0.0
      %515 = vmatpush1.msra.mxu0 0.0
      %516 = vmatprep.mubr.f32.mxu0 0.0
      %517 = vmatmul.mubr.f32.gmra.mrb[0].mxu0 %v447
      %v518 = vpop.f32.mrb[0].mxu0
      %v519 = vadd.f32 %v438, %v518
      %v520 = vpop.f32.mrb[0].mxu0
      %521 = vmatprep.mubr.f32.mxu0 0.0
      %522 = vmatmul.mubr.f32.gmra.mrb[0].mxu0 %v450
      %v523 = vpop.f32.mrb[0].mxu0
      %v524 = vadd.f32 %v443, %v523
      %v525 = vpop.f32.mrb[0].mxu0
      %526 = vdwg.mxu0
      %v528 = vrot.slane %v276, 4
      %vm530 = vcmask 1043456
      %v531 = vsel %vm530, 0.0, %v528
      %v532 = vsel %vm530, %v528, 0.0
      %v533 = vadd.f32 %v519, %v531
      %v534 = vadd.f32 %v524, %v532
      %vm535 = vcmask 31744
      %536 = vst.msk [vmem:[%s275] sm:$0xff] %vm535, %v533
      %537 = vst.msk [vmem:[%s275 + $0x8] sm:$0xff] %vm535, %v534
      %p538 = scmp.lt.s32.totalorder %s18, 1
      %s539 = scalar_select %p538, %s18, 1
      %s540 = smul.addr %s539, 2
      %s541 = smul.addr %s540, 8
      %s542 = scalar_lea.vmem %s7, %s541
      // Predicated region
      $region49: #{resnet1d_forward.12} parent=47 // pred_check
        %p543 = pneg %p188
      $region50: #{resnet1d_forward.12} parent=47 // pred_check_branch
        %545 = sbr.rel (%p543) target = $region52
      $region51: #{resnet1d_forward.12} parent=47 // pred_region
        _
      $region52: #{resnet1d_forward.12} parent=47 // pred_fallthru
        _
    $region48: #{resnet1d_forward.12} parent=5 // pred_fallthru
      _
    %p546 = scmp.le.s32.totalorder 2, %s13
    // Predicated region
    $region53: #{resnet1d_forward.12} parent=5 // pred_check
      %p547 = pneg %p546
    $region54: #{resnet1d_forward.12} parent=5 // pred_check_branch
      %549 = sbr.rel (%p547) target = $region56
    $region55: #{resnet1d_forward.12} parent=5 // pred_region
      %s550 = ssub.s32 %s13, 2
      // Predicated region
      $region57: #{resnet1d_forward.12} parent=55 // pred_check
        %p551 = pneg %p194
      $region58: #{resnet1d_forward.12} parent=55 // pred_check_branch
        %553 = sbr.rel (%p551) target = $region60
      $region59: #{resnet1d_forward.12} parent=55 // pred_region
        %p554 = scmp.lt.s32.totalorder %s19, 1
        %s555 = scalar_select %p554, %s19, 1
        %s556 = smul.addr %s555, 2
        %s557 = smul.addr %s556, 8
        %s558 = scalar_lea.vmem %s7, %s557
      $region60: #{resnet1d_forward.12} parent=55 // pred_fallthru
        _
    $region56: #{resnet1d_forward.12} parent=5 // pred_fallthru
      _
  $region6: #{resnet1d_forward.12} parent=0 // loop_footer
    %s17 = sadd.s32 1, %s13
  $region7: #{resnet1d_forward.12} parent=0 // loop_footer_branch
    %12 = sbr.rel target = $region3
  $region8: #{resnet1d_forward.12} parent=0 // loop_exit
    _

</llo_original>
